<compile_context>
chip_gen: v7x
topology: tpu7x:2x2x1
jax: 0.10.0
libtpu: 0.0.40
codegen_flags: <defaults>
</compile_context>

<pallas_src>
import numpy as np
import jax
import jax.numpy as jnp
from jax.experimental import pallas as pl
from jax.experimental.pallas import tpu as pltpu

EPS = 1e-4          # BatchNorm eps from the module
NEG_SLOPE = 0.01    # F.leaky_relu default negative_slope


# ----------------------------------------------------------------------------
# In-kernel helpers (f32 element-wise / stats math)
# ----------------------------------------------------------------------------
def _leaky(x):
    return jnp.where(x >= 0, x, NEG_SLOPE * x)


def _bn_rows(y):
    # BatchNorm1d: per-column stats over rows (batch), biased variance, no affine.
    mean = jnp.mean(y, axis=0, keepdims=True)
    d = y - mean
    var = jnp.mean(d * d, axis=0, keepdims=True)
    return d * jax.lax.rsqrt(var + EPS)


def _bn_channels(y, group_mat, count):
    # BatchNorm2d on the canonical layout (rows = H*B, lanes = W*C): per-channel
    # stats over batch + spatial.  `group_mat` (W*C, W*C) has entry 1 iff the two
    # lane positions share a channel, so one small f32 matmul both reduces over
    # the W blocks and broadcasts the result back to every (w, c) lane.
    col_sum = jnp.sum(y, axis=0, keepdims=True)                       # (1, W*C)
    mean = jnp.dot(col_sum, group_mat, preferred_element_type=jnp.float32) / count
    d = y - mean
    sq_sum = jnp.sum(d * d, axis=0, keepdims=True)
    var = jnp.dot(sq_sum, group_mat, preferred_element_type=jnp.float32) / count
    return d * jax.lax.rsqrt(var + EPS)


# ----------------------------------------------------------------------------
# The fused decoder kernel
# ----------------------------------------------------------------------------
def _decoder_kernel(x_ref, fcw_ref, w1_ref, w2_ref, w3_ref, m1_ref, m2_ref,
                    o_ref, p1, p2, p3):
    B = x_ref.shape[0]
    f32 = jnp.float32
    bf16 = jnp.bfloat16

    # ---- fc3 (no bias) -> BatchNorm1d(128) -> leaky_relu --------------------
    # fc weight columns were pre-permuted to (h, w, c) order so the (B,8,4,4)
    # view + NHWC conversion below becomes pure lane slicing.
    h = jnp.dot(x_ref[...], fcw_ref[...], preferred_element_type=f32)   # (B, 128)
    h = _leaky(_bn_rows(h))

    # ---- assemble deconv1 input (rows = (y, b), lanes = (w, c)) -------------
    # nearest-2x upsample in H (4 -> 8) + H zero-pad by 2 via scatter writes;
    # the W upsample and W padding are folded into the banded weights w1.
    p1[...] = jnp.zeros_like(p1)
    for hh in range(4):
        blk = h[:, hh * 32:(hh + 1) * 32]                 # (B, 32) = (B, W=4 x C=8)
        p1[(2 + 2 * hh) * B:(3 + 2 * hh) * B, :] = blk
        p1[(3 + 2 * hh) * B:(4 + 2 * hh) * B, :] = blk

    # ---- deconv1 (k=5, eff. pad 2) -> BN2d(32) -> leaky ---------------------
    acc = jnp.zeros((8 * B, 8 * 32), f32)
    for i in range(5):
        tap = p1[i * B:(i + 8) * B, :].astype(bf16)       # (8B, 32)
        acc = acc + jnp.dot(tap, w1_ref[i], preferred_element_type=f32)
    y = _leaky(_bn_channels(acc, m1_ref[...], float(B * 8 * 8)))        # (8B, 256)

    # ---- assemble deconv2 input: H-up 8 -> 16, H-pad 1 ----------------------
    p2[...] = jnp.zeros_like(p2)
    for hh in range(8):
        blk = y[hh * B:(hh + 1) * B, :]                   # (B, 256)
        p2[(1 + 2 * hh) * B:(2 + 2 * hh) * B, :] = blk
        p2[(2 + 2 * hh) * B:(3 + 2 * hh) * B, :] = blk

    # ---- deconv2 (k=5, eff. pad 1) -> BN2d(16) -> leaky ---------------------
    acc = jnp.zeros((14 * B, 14 * 16), f32)
    for i in range(5):
        tap = p2[i * B:(i + 14) * B, :].astype(bf16)      # (14B, 256)
        acc = acc + jnp.dot(tap, w2_ref[i], preferred_element_type=f32)
    y = _leaky(_bn_channels(acc, m2_ref[...], float(B * 14 * 14)))      # (14B, 224)

    # ---- assemble deconv3 input: H-up 14 -> 28, H-pad 2 ---------------------
    p3[...] = jnp.zeros_like(p3)
    for hh in range(14):
        blk = y[hh * B:(hh + 1) * B, :]                   # (B, 224)
        p3[(2 + 2 * hh) * B:(3 + 2 * hh) * B, :] = blk
        p3[(3 + 2 * hh) * B:(4 + 2 * hh) * B, :] = blk

    # ---- deconv3 (k=5, eff. pad 2) -> sigmoid --------------------------------
    acc = jnp.zeros((28 * B, 28), f32)
    for i in range(5):
        tap = p3[i * B:(i + 28) * B, :].astype(bf16)      # (28B, 224)
        acc = acc + jnp.dot(tap, w3_ref[i], preferred_element_type=f32)
    o_ref[...] = jax.nn.sigmoid(acc)                      # (28B, 28)


def _build_pallas_decoder(B):
    cost = pl.CostEstimate(
        flops=int(2 * B * 64 * 128
                  + 2 * 5 * (8 * B) * 32 * 256
                  + 2 * 5 * (14 * B) * 256 * 224
                  + 2 * 5 * (28 * B) * 224 * 28
                  + 2 * 2 * (256 * 256 + 224 * 224)),
        transcendentals=int(28 * 28 * B + 128 + 256 + 224),
        bytes_accessed=int(B * 64 * 4 + 64 * 128 * 4
                           + 2 * 5 * (32 * 256 + 256 * 224 + 224 * 28)
                           + 4 * (256 * 256 + 224 * 224)
                           + 28 * B * 28 * 4),
    )
    return pl.pallas_call(
        _decoder_kernel,
        out_shape=jax.ShapeDtypeStruct((28 * B, 28), jnp.float32),
        in_specs=[pl.BlockSpec(memory_space=pltpu.MemorySpace.VMEM)] * 7,
        out_specs=pl.BlockSpec(memory_space=pltpu.MemorySpace.VMEM),
        scratch_shapes=[
            pltpu.VMEM((12 * B, 4 * 8), jnp.float32),     # deconv1 input (H-up + H-pad)
            pltpu.VMEM((18 * B, 8 * 32), jnp.float32),    # deconv2 input
            pltpu.VMEM((32 * B, 14 * 16), jnp.float32),   # deconv3 input
        ],
        cost_estimate=cost,
    )


def lenet_decoder_forward(x, params):
    """x: (B, 64) float32 -> (B, 1, 28, 28) float32 (NCHW, like PyTorch)."""
    B = x.shape[0]
    out2d = _build_pallas_decoder(B)(
        x.astype(jnp.float32), params["fcw"], params["w1"], params["w2"],
        params["w3"], params["m1"], params["m2"])
    # Canonical rows are (h, b); un-interleave the tiny final tensor outside.
    y = out2d.reshape(28, B, 28)
    y = jnp.transpose(y, (1, 0, 2))
    return y[:, None, :, :]


# ----------------------------------------------------------------------------
# Host-side weight preparation (numpy, runs once at init)
# ----------------------------------------------------------------------------
def _corr_kernel(wt):
    # ConvTranspose2d weight (Cin, Cout, k, k) -> correlation kernel K with
    # K[co, ci, i, j] = wt[ci, co, k-1-i, k-1-j]  (stride-1 transposed conv ==
    # correlation with the flipped kernel and padding k-1-p).
    return np.transpose(wt[:, :, ::-1, ::-1], (1, 0, 2, 3))


def _banded_tap_weights(K, w_stored, w_out, pad):
    # Per H-tap matmul weights (k, w_stored*Cin, w_out*Cout).  The activation lane
    # axis is (w, c); the banded matrix realizes the W-direction correlation, the
    # W zero-padding AND the preceding nearest-2x W-upsample of the input.
    cout, cin, k, _ = K.shape
    w_up = 2 * w_stored
    U = np.zeros((k, w_stored * cin, w_out * cout), dtype=np.float32)
    for i in range(k):
        for wo in range(w_out):
            for j in range(k):
                xu = wo + j - pad              # coord in the upsampled, unpadded W axis
                if 0 <= xu < w_up:
                    ws = xu // 2               # pre-upsample (stored) W coordinate
                    U[i, ws * cin:(ws + 1) * cin, wo * cout:(wo + 1) * cout] += \
                        K[:, :, i, j].T
    return U


def _channel_group_matrix(w, c):
    m = np.zeros((w * c, w * c), dtype=np.float32)
    eye = np.eye(c, dtype=np.float32)
    for a in range(w):
        for b in range(w):
            m[a * c:(a + 1) * c, b * c:(b + 1) * c] = eye
    return m


def prepare_params(fc_w, wt1, wt2, wt3):
    """fc_w: (128, 64) = nn.Linear(64,128).weight;  wt*: ConvTranspose2d weights
    in the PyTorch layout (Cin, Cout, 5, 5)."""
    fc_w = np.asarray(fc_w, np.float32)
    wt1 = np.asarray(wt1, np.float32)
    wt2 = np.asarray(wt2, np.float32)
    wt3 = np.asarray(wt3, np.float32)

    # Permute fc output features from the (c, h, w) order of the (B,8,4,4) view to
    # (h, w, c) so the spatial re-layout inside the kernel is pure slicing.
    perm = np.zeros(128, np.int64)
    q = 0
    for h in range(4):
        for w in range(4):
            for c in range(8):
                perm[q] = c * 16 + h * 4 + w
                q += 1
    fcw = fc_w.T[:, perm]                                  # (64, 128)

    u1 = _banded_tap_weights(_corr_kernel(wt1), w_stored=4, w_out=8, pad=2)   # deconv1
    u2 = _banded_tap_weights(_corr_kernel(wt2), w_stored=8, w_out=14, pad=1)  # deconv2
    u3 = _banded_tap_weights(_corr_kernel(wt3), w_stored=14, w_out=28, pad=2) # deconv3

    return {
        "fcw": jnp.asarray(fcw, jnp.float32),   # fc kept f32 (BN1d over a tiny batch)
        "w1": jnp.asarray(u1, jnp.bfloat16),
        "w2": jnp.asarray(u2, jnp.bfloat16),
        "w3": jnp.asarray(u3, jnp.bfloat16),
        "m1": jnp.asarray(_channel_group_matrix(8, 32), jnp.float32),
        "m2": jnp.asarray(_channel_group_matrix(14, 16), jnp.float32),
    }


# ----------------------------------------------------------------------------
# Independent numpy reference of the PyTorch module (for the self-check)
# ----------------------------------------------------------------------------
def _np_conv_transpose2d(x, wt, pad):
    B, cin, H, W = x.shape
    _, cout, k, _ = wt.shape
    full = np.zeros((B, cout, H + k - 1, W + k - 1), dtype=np.float64)
    for i in range(k):
        for j in range(k):
            full[:, :, i:i + H, j:j + W] += np.einsum('bchw,cd->bdhw', x, wt[:, :, i, j])
    ho, wo = H + k - 1 - 2 * pad, W + k - 1 - 2 * pad
    return full[:, :, pad:pad + ho, pad:pad + wo]


def _np_bn(x, axes):
    mean = x.mean(axis=axes, keepdims=True)
    var = ((x - mean) ** 2).mean(axis=axes, keepdims=True)
    return (x - mean) / np.sqrt(var + EPS)


def _np_leaky(x):
    return np.where(x >= 0, x, NEG_SLOPE * x)


def _np_up2(x):
    return np.repeat(np.repeat(x, 2, axis=2), 2, axis=3)


def reference_forward(x, fc_w, wt1, wt2, wt3):
    x = np.asarray(x, np.float64)
    fc_w = np.asarray(fc_w, np.float64)
    wt1 = np.asarray(wt1, np.float64)
    wt2 = np.asarray(wt2, np.float64)
    wt3 = np.asarray(wt3, np.float64)
    B = x.shape[0]
    h = x @ fc_w.T                                         # (B, 128)
    h = _np_bn(h, axes=(0,)).reshape(B, 8, 4, 4)
    h = _np_up2(_np_leaky(h))                              # (B, 8, 8, 8)
    h = _np_conv_transpose2d(h, wt1, pad=2)                # (B, 32, 8, 8)
    h = _np_up2(_np_leaky(_np_bn(h, axes=(0, 2, 3))))      # (B, 32, 16, 16)
    h = _np_conv_transpose2d(h, wt2, pad=3)                # (B, 16, 14, 14)
    h = _np_up2(_np_leaky(_np_bn(h, axes=(0, 2, 3))))      # (B, 16, 28, 28)
    h = _np_conv_transpose2d(h, wt3, pad=2)                # (B, 1, 28, 28)
    return 1.0 / (1.0 + np.exp(-h))


# ----------------------------------------------------------------------------
if __name__ == "__main__":
    key = jax.random.PRNGKey(0)
    kx, k1, k2, k3, k4 = jax.random.split(key, 5)

    B = 2
    x = jax.random.normal(kx, (B, 64), jnp.float32)        # rep_dim = 64

    # Raw weights in the PyTorch layouts.
    fc_w = jax.random.normal(k1, (128, 64), jnp.float32) * (1.0 / 64.0) ** 0.5
    wt1 = jax.random.normal(k2, (8, 32, 5, 5), jnp.float32) * (1.0 / (8 * 25)) ** 0.5
    wt2 = jax.random.normal(k3, (32, 16, 5, 5), jnp.float32) * (1.0 / (32 * 25)) ** 0.5
    wt3 = jax.random.normal(k4, (16, 1, 5, 5), jnp.float32) * (1.0 / (16 * 25)) ** 0.5

    params = prepare_params(fc_w, wt1, wt2, wt3)

    fwd = jax.jit(lenet_decoder_forward)
    out = jax.block_until_ready(fwd(x, params))

    assert out.shape == (B, 1, 28, 28), out.shape
    out_np = np.asarray(out)
    assert np.all(np.isfinite(out_np))
    assert np.all((out_np >= 0.0) & (out_np <= 1.0))       # sigmoid range

    ref = reference_forward(np.asarray(x), np.asarray(fc_w), np.asarray(wt1),
                            np.asarray(wt2), np.asarray(wt3))
    max_err = float(np.max(np.abs(out_np - ref)))
    assert max_err < 0.1, max_err                          # bf16 conv matmuls, f32 BN

    print("KERNEL_OK")
</pallas_src>

<mosaic_0001>
module attributes {stable_mosaic.version = 11 : i64} {
  func.func @_decoder_kernel(%arg0: memref<2x64xf32, #tpu.memory_space<vmem>>, %arg1: memref<64x128xf32, #tpu.memory_space<vmem>>, %arg2: memref<5x32x256xbf16, #tpu.memory_space<vmem>>, %arg3: memref<5x256x224xbf16, #tpu.memory_space<vmem>>, %arg4: memref<5x224x28xbf16, #tpu.memory_space<vmem>>, %arg5: memref<256x256xf32, #tpu.memory_space<vmem>>, %arg6: memref<224x224xf32, #tpu.memory_space<vmem>>, %arg7: memref<56x28xf32, #tpu.memory_space<vmem>>, %arg8: memref<24x32xf32, #tpu.memory_space<vmem>>, %arg9: memref<36x256xf32, #tpu.memory_space<vmem>>, %arg10: memref<64x224xf32, #tpu.memory_space<vmem>>) attributes {dimension_semantics = [], scalar_prefetch = 0 : i64, scratch_operands = 3 : i64, tpu.core_type = #tpu.core_type<tc>} {
    %c0 = arith.constant 0 : index
    %c0_0 = arith.constant 0 : index
    %0 = vector.load %arg0[%c0, %c0_0] : memref<2x64xf32, #tpu.memory_space<vmem>>, vector<2x64xf32>
    %c0_1 = arith.constant 0 : index
    %c0_2 = arith.constant 0 : index
    %1 = vector.load %arg1[%c0_1, %c0_2] : memref<64x128xf32, #tpu.memory_space<vmem>>, vector<64x128xf32>
    %cst = arith.constant dense<0.000000e+00> : vector<2x128xf32>
    %2 = tpu.matmul %0, %1, %cst {dimension_numbers = #tpu.dot_dimension_numbers<[1], [0], [0], [1], [0, 0, 1, 1], [], []>} : vector<2x64xf32>, vector<64x128xf32>, vector<2x128xf32> -> vector<2x128xf32>
    %cst_3 = arith.constant dense<0.000000e+00> : vector<128xf32>
    %3 = vector.multi_reduction <add>, %2, %cst_3 [0] : vector<2x128xf32> to vector<128xf32>
    %4 = vector.shape_cast %3 : vector<128xf32> to vector<1x128xf32>
    %cst_4 = arith.constant 2.000000e+00 : f32
    %5 = vector.broadcast %cst_4 : f32 to vector<1x128xf32>
    %6 = arith.divf %4, %5 : vector<1x128xf32>
    %7 = vector.broadcast %6 : vector<1x128xf32> to vector<2x128xf32>
    %8 = arith.subf %2, %7 : vector<2x128xf32>
    %9 = arith.mulf %8, %8 : vector<2x128xf32>
    %cst_5 = arith.constant dense<0.000000e+00> : vector<128xf32>
    %10 = vector.multi_reduction <add>, %9, %cst_5 [0] : vector<2x128xf32> to vector<128xf32>
    %11 = vector.shape_cast %10 : vector<128xf32> to vector<1x128xf32>
    %cst_6 = arith.constant 2.000000e+00 : f32
    %12 = vector.broadcast %cst_6 : f32 to vector<1x128xf32>
    %13 = arith.divf %11, %12 : vector<1x128xf32>
    %cst_7 = arith.constant 9.99999974E-5 : f32
    %14 = vector.broadcast %cst_7 : f32 to vector<1x128xf32>
    %15 = arith.addf %13, %14 : vector<1x128xf32>
    %16 = math.rsqrt %15 : vector<1x128xf32>
    %17 = vector.broadcast %16 : vector<1x128xf32> to vector<2x128xf32>
    %18 = arith.mulf %8, %17 : vector<2x128xf32>
    %cst_8 = arith.constant 0.000000e+00 : f32
    %19 = vector.broadcast %cst_8 : f32 to vector<2x128xf32>
    %20 = arith.cmpf oge, %18, %19 : vector<2x128xf32>
    %cst_9 = arith.constant 0.00999999977 : f32
    %21 = vector.broadcast %cst_9 : f32 to vector<2x128xf32>
    %22 = arith.mulf %21, %18 : vector<2x128xf32>
    %23 = arith.select %20, %18, %22 : vector<2x128xi1>, vector<2x128xf32>
    %cst_10 = arith.constant 0.000000e+00 : f32
    %24 = vector.broadcast %cst_10 : f32 to vector<24x32xf32>
    %c0_11 = arith.constant 0 : index
    %c0_12 = arith.constant 0 : index
    %25 = vector.load %arg8[%c0_11, %c0_12] : memref<24x32xf32, #tpu.memory_space<vmem>>, vector<24x32xf32>
    tpu.vector_store %arg8[%c0_11, %c0_12], %24 {strides = array<i32>} : memref<24x32xf32, #tpu.memory_space<vmem>>, vector<24x32xf32>,
    %26 = vector.extract_strided_slice %23 {offsets = [0, 0], sizes = [2, 32], strides = [1, 1]} : vector<2x128xf32> to vector<2x32xf32>
    %c4 = arith.constant 4 : index
    %c0_13 = arith.constant 0 : index
    %27 = vector.load %arg8[%c4, %c0_13] : memref<24x32xf32, #tpu.memory_space<vmem>>, vector<2x32xf32>
    tpu.vector_store %arg8[%c4, %c0_13], %26 {strides = array<i32>} : memref<24x32xf32, #tpu.memory_space<vmem>>, vector<2x32xf32>,
    %c6 = arith.constant 6 : index
    %c0_14 = arith.constant 0 : index
    %28 = vector.load %arg8[%c6, %c0_14] : memref<24x32xf32, #tpu.memory_space<vmem>>, vector<2x32xf32>
    tpu.vector_store %arg8[%c6, %c0_14], %26 {strides = array<i32>} : memref<24x32xf32, #tpu.memory_space<vmem>>, vector<2x32xf32>,
    %29 = vector.extract_strided_slice %23 {offsets = [0, 32], sizes = [2, 32], strides = [1, 1]} : vector<2x128xf32> to vector<2x32xf32>
    %c8 = arith.constant 8 : index
    %c0_15 = arith.constant 0 : index
    %30 = vector.load %arg8[%c8, %c0_15] : memref<24x32xf32, #tpu.memory_space<vmem>>, vector<2x32xf32>
    tpu.vector_store %arg8[%c8, %c0_15], %29 {strides = array<i32>} : memref<24x32xf32, #tpu.memory_space<vmem>>, vector<2x32xf32>,
    %c10 = arith.constant 10 : index
    %c0_16 = arith.constant 0 : index
    %31 = vector.load %arg8[%c10, %c0_16] : memref<24x32xf32, #tpu.memory_space<vmem>>, vector<2x32xf32>
    tpu.vector_store %arg8[%c10, %c0_16], %29 {strides = array<i32>} : memref<24x32xf32, #tpu.memory_space<vmem>>, vector<2x32xf32>,
    %32 = vector.extract_strided_slice %23 {offsets = [0, 64], sizes = [2, 32], strides = [1, 1]} : vector<2x128xf32> to vector<2x32xf32>
    %c12 = arith.constant 12 : index
    %c0_17 = arith.constant 0 : index
    %33 = vector.load %arg8[%c12, %c0_17] : memref<24x32xf32, #tpu.memory_space<vmem>>, vector<2x32xf32>
    tpu.vector_store %arg8[%c12, %c0_17], %32 {strides = array<i32>} : memref<24x32xf32, #tpu.memory_space<vmem>>, vector<2x32xf32>,
    %c14 = arith.constant 14 : index
    %c0_18 = arith.constant 0 : index
    %34 = vector.load %arg8[%c14, %c0_18] : memref<24x32xf32, #tpu.memory_space<vmem>>, vector<2x32xf32>
    tpu.vector_store %arg8[%c14, %c0_18], %32 {strides = array<i32>} : memref<24x32xf32, #tpu.memory_space<vmem>>, vector<2x32xf32>,
    %35 = vector.extract_strided_slice %23 {offsets = [0, 96], sizes = [2, 32], strides = [1, 1]} : vector<2x128xf32> to vector<2x32xf32>
    %c16 = arith.constant 16 : index
    %c0_19 = arith.constant 0 : index
    %36 = vector.load %arg8[%c16, %c0_19] : memref<24x32xf32, #tpu.memory_space<vmem>>, vector<2x32xf32>
    tpu.vector_store %arg8[%c16, %c0_19], %35 {strides = array<i32>} : memref<24x32xf32, #tpu.memory_space<vmem>>, vector<2x32xf32>,
    %c18 = arith.constant 18 : index
    %c0_20 = arith.constant 0 : index
    %37 = vector.load %arg8[%c18, %c0_20] : memref<24x32xf32, #tpu.memory_space<vmem>>, vector<2x32xf32>
    tpu.vector_store %arg8[%c18, %c0_20], %35 {strides = array<i32>} : memref<24x32xf32, #tpu.memory_space<vmem>>, vector<2x32xf32>,
    %cst_21 = arith.constant 0.000000e+00 : f32
    %38 = vector.broadcast %cst_21 : f32 to vector<16x256xf32>
    %c0_22 = arith.constant 0 : index
    %c0_23 = arith.constant 0 : index
    %39 = vector.load %arg8[%c0_22, %c0_23] : memref<24x32xf32, #tpu.memory_space<vmem>>, vector<16x32xf32>
    %40 = arith.truncf %39 : vector<16x32xf32> to vector<16x32xbf16>
    %c0_24 = arith.constant 0 : index
    %c0_25 = arith.constant 0 : index
    %c0_26 = arith.constant 0 : index
    %41 = vector.load %arg2[%c0_24, %c0_25, %c0_26] : memref<5x32x256xbf16, #tpu.memory_space<vmem>>, vector<1x32x256xbf16>
    %42 = vector.shape_cast %41 : vector<1x32x256xbf16> to vector<32x256xbf16>
    %cst_27 = arith.constant dense<0.000000e+00> : vector<16x256xf32>
    %43 = tpu.matmul %40, %42, %cst_27 {dimension_numbers = #tpu.dot_dimension_numbers<[1], [0], [0], [1], [0, 0, 1, 1], [], []>} : vector<16x32xbf16>, vector<32x256xbf16>, vector<16x256xf32> -> vector<16x256xf32>
    %44 = arith.addf %38, %43 : vector<16x256xf32>
    %c2 = arith.constant 2 : index
    %c0_28 = arith.constant 0 : index
    %45 = vector.load %arg8[%c2, %c0_28] : memref<24x32xf32, #tpu.memory_space<vmem>>, vector<16x32xf32>
    %46 = arith.truncf %45 : vector<16x32xf32> to vector<16x32xbf16>
    %c1 = arith.constant 1 : index
    %c0_29 = arith.constant 0 : index
    %c0_30 = arith.constant 0 : index
    %47 = vector.load %arg2[%c1, %c0_29, %c0_30] : memref<5x32x256xbf16, #tpu.memory_space<vmem>>, vector<1x32x256xbf16>
    %48 = vector.shape_cast %47 : vector<1x32x256xbf16> to vector<32x256xbf16>
    %cst_31 = arith.constant dense<0.000000e+00> : vector<16x256xf32>
    %49 = tpu.matmul %46, %48, %cst_31 {dimension_numbers = #tpu.dot_dimension_numbers<[1], [0], [0], [1], [0, 0, 1, 1], [], []>} : vector<16x32xbf16>, vector<32x256xbf16>, vector<16x256xf32> -> vector<16x256xf32>
    %50 = arith.addf %44, %49 : vector<16x256xf32>
    %c4_32 = arith.constant 4 : index
    %c0_33 = arith.constant 0 : index
    %51 = vector.load %arg8[%c4_32, %c0_33] : memref<24x32xf32, #tpu.memory_space<vmem>>, vector<16x32xf32>
    %52 = arith.truncf %51 : vector<16x32xf32> to vector<16x32xbf16>
    %c2_34 = arith.constant 2 : index
    %c0_35 = arith.constant 0 : index
    %c0_36 = arith.constant 0 : index
    %53 = vector.load %arg2[%c2_34, %c0_35, %c0_36] : memref<5x32x256xbf16, #tpu.memory_space<vmem>>, vector<1x32x256xbf16>
    %54 = vector.shape_cast %53 : vector<1x32x256xbf16> to vector<32x256xbf16>
    %cst_37 = arith.constant dense<0.000000e+00> : vector<16x256xf32>
    %55 = tpu.matmul %52, %54, %cst_37 {dimension_numbers = #tpu.dot_dimension_numbers<[1], [0], [0], [1], [0, 0, 1, 1], [], []>} : vector<16x32xbf16>, vector<32x256xbf16>, vector<16x256xf32> -> vector<16x256xf32>
    %56 = arith.addf %50, %55 : vector<16x256xf32>
    %c6_38 = arith.constant 6 : index
    %c0_39 = arith.constant 0 : index
    %57 = vector.load %arg8[%c6_38, %c0_39] : memref<24x32xf32, #tpu.memory_space<vmem>>, vector<16x32xf32>
    %58 = arith.truncf %57 : vector<16x32xf32> to vector<16x32xbf16>
    %c3 = arith.constant 3 : index
    %c0_40 = arith.constant 0 : index
    %c0_41 = arith.constant 0 : index
    %59 = vector.load %arg2[%c3, %c0_40, %c0_41] : memref<5x32x256xbf16, #tpu.memory_space<vmem>>, vector<1x32x256xbf16>
    %60 = vector.shape_cast %59 : vector<1x32x256xbf16> to vector<32x256xbf16>
    %cst_42 = arith.constant dense<0.000000e+00> : vector<16x256xf32>
    %61 = tpu.matmul %58, %60, %cst_42 {dimension_numbers = #tpu.dot_dimension_numbers<[1], [0], [0], [1], [0, 0, 1, 1], [], []>} : vector<16x32xbf16>, vector<32x256xbf16>, vector<16x256xf32> -> vector<16x256xf32>
    %62 = arith.addf %56, %61 : vector<16x256xf32>
    %c8_43 = arith.constant 8 : index
    %c0_44 = arith.constant 0 : index
    %63 = vector.load %arg8[%c8_43, %c0_44] : memref<24x32xf32, #tpu.memory_space<vmem>>, vector<16x32xf32>
    %64 = arith.truncf %63 : vector<16x32xf32> to vector<16x32xbf16>
    %c4_45 = arith.constant 4 : index
    %c0_46 = arith.constant 0 : index
    %c0_47 = arith.constant 0 : index
    %65 = vector.load %arg2[%c4_45, %c0_46, %c0_47] : memref<5x32x256xbf16, #tpu.memory_space<vmem>>, vector<1x32x256xbf16>
    %66 = vector.shape_cast %65 : vector<1x32x256xbf16> to vector<32x256xbf16>
    %cst_48 = arith.constant dense<0.000000e+00> : vector<16x256xf32>
    %67 = tpu.matmul %64, %66, %cst_48 {dimension_numbers = #tpu.dot_dimension_numbers<[1], [0], [0], [1], [0, 0, 1, 1], [], []>} : vector<16x32xbf16>, vector<32x256xbf16>, vector<16x256xf32> -> vector<16x256xf32>
    %68 = arith.addf %62, %67 : vector<16x256xf32>
    %c0_49 = arith.constant 0 : index
    %c0_50 = arith.constant 0 : index
    %69 = vector.load %arg5[%c0_49, %c0_50] : memref<256x256xf32, #tpu.memory_space<vmem>>, vector<256x256xf32>
    %cst_51 = arith.constant dense<0.000000e+00> : vector<256xf32>
    %70 = vector.multi_reduction <add>, %68, %cst_51 [0] : vector<16x256xf32> to vector<256xf32>
    %71 = vector.shape_cast %70 : vector<256xf32> to vector<1x256xf32>
    %cst_52 = arith.constant dense<0.000000e+00> : vector<1x256xf32>
    %72 = tpu.matmul %71, %69, %cst_52 {dimension_numbers = #tpu.dot_dimension_numbers<[1], [0], [0], [1], [0, 0, 1, 1], [], []>} : vector<1x256xf32>, vector<256x256xf32>, vector<1x256xf32> -> vector<1x256xf32>
    %cst_53 = arith.constant 1.280000e+02 : f32
    %73 = vector.broadcast %cst_53 : f32 to vector<1x256xf32>
    %74 = arith.divf %72, %73 : vector<1x256xf32>
    %75 = vector.broadcast %74 : vector<1x256xf32> to vector<16x256xf32>
    %76 = arith.subf %68, %75 : vector<16x256xf32>
    %77 = arith.mulf %76, %76 : vector<16x256xf32>
    %cst_54 = arith.constant dense<0.000000e+00> : vector<256xf32>
    %78 = vector.multi_reduction <add>, %77, %cst_54 [0] : vector<16x256xf32> to vector<256xf32>
    %79 = vector.shape_cast %78 : vector<256xf32> to vector<1x256xf32>
    %cst_55 = arith.constant dense<0.000000e+00> : vector<1x256xf32>
    %80 = tpu.matmul %79, %69, %cst_55 {dimension_numbers = #tpu.dot_dimension_numbers<[1], [0], [0], [1], [0, 0, 1, 1], [], []>} : vector<1x256xf32>, vector<256x256xf32>, vector<1x256xf32> -> vector<1x256xf32>
    %cst_56 = arith.constant 1.280000e+02 : f32
    %81 = vector.broadcast %cst_56 : f32 to vector<1x256xf32>
    %82 = arith.divf %80, %81 : vector<1x256xf32>
    %cst_57 = arith.constant 9.99999974E-5 : f32
    %83 = vector.broadcast %cst_57 : f32 to vector<1x256xf32>
    %84 = arith.addf %82, %83 : vector<1x256xf32>
    %85 = math.rsqrt %84 : vector<1x256xf32>
    %86 = vector.broadcast %85 : vector<1x256xf32> to vector<16x256xf32>
    %87 = arith.mulf %76, %86 : vector<16x256xf32>
    %cst_58 = arith.constant 0.000000e+00 : f32
    %88 = vector.broadcast %cst_58 : f32 to vector<16x256xf32>
    %89 = arith.cmpf oge, %87, %88 : vector<16x256xf32>
    %cst_59 = arith.constant 0.00999999977 : f32
    %90 = vector.broadcast %cst_59 : f32 to vector<16x256xf32>
    %91 = arith.mulf %90, %87 : vector<16x256xf32>
    %92 = arith.select %89, %87, %91 : vector<16x256xi1>, vector<16x256xf32>
    %cst_60 = arith.constant 0.000000e+00 : f32
    %93 = vector.broadcast %cst_60 : f32 to vector<36x256xf32>
    %c0_61 = arith.constant 0 : index
    %c0_62 = arith.constant 0 : index
    %94 = vector.load %arg9[%c0_61, %c0_62] : memref<36x256xf32, #tpu.memory_space<vmem>>, vector<36x256xf32>
    tpu.vector_store %arg9[%c0_61, %c0_62], %93 {strides = array<i32>} : memref<36x256xf32, #tpu.memory_space<vmem>>, vector<36x256xf32>,
    %95 = vector.extract_strided_slice %92 {offsets = [0, 0], sizes = [2, 256], strides = [1, 1]} : vector<16x256xf32> to vector<2x256xf32>
    %c2_63 = arith.constant 2 : index
    %c0_64 = arith.constant 0 : index
    %96 = vector.load %arg9[%c2_63, %c0_64] : memref<36x256xf32, #tpu.memory_space<vmem>>, vector<2x256xf32>
    tpu.vector_store %arg9[%c2_63, %c0_64], %95 {strides = array<i32>} : memref<36x256xf32, #tpu.memory_space<vmem>>, vector<2x256xf32>,
    %c4_65 = arith.constant 4 : index
    %c0_66 = arith.constant 0 : index
    %97 = vector.load %arg9[%c4_65, %c0_66] : memref<36x256xf32, #tpu.memory_space<vmem>>, vector<2x256xf32>
    tpu.vector_store %arg9[%c4_65, %c0_66], %95 {strides = array<i32>} : memref<36x256xf32, #tpu.memory_space<vmem>>, vector<2x256xf32>,
    %98 = vector.extract_strided_slice %92 {offsets = [2, 0], sizes = [2, 256], strides = [1, 1]} : vector<16x256xf32> to vector<2x256xf32>
    %c6_67 = arith.constant 6 : index
    %c0_68 = arith.constant 0 : index
    %99 = vector.load %arg9[%c6_67, %c0_68] : memref<36x256xf32, #tpu.memory_space<vmem>>, vector<2x256xf32>
    tpu.vector_store %arg9[%c6_67, %c0_68], %98 {strides = array<i32>} : memref<36x256xf32, #tpu.memory_space<vmem>>, vector<2x256xf32>,
    %c8_69 = arith.constant 8 : index
    %c0_70 = arith.constant 0 : index
    %100 = vector.load %arg9[%c8_69, %c0_70] : memref<36x256xf32, #tpu.memory_space<vmem>>, vector<2x256xf32>
    tpu.vector_store %arg9[%c8_69, %c0_70], %98 {strides = array<i32>} : memref<36x256xf32, #tpu.memory_space<vmem>>, vector<2x256xf32>,
    %101 = vector.extract_strided_slice %92 {offsets = [4, 0], sizes = [2, 256], strides = [1, 1]} : vector<16x256xf32> to vector<2x256xf32>
    %c10_71 = arith.constant 10 : index
    %c0_72 = arith.constant 0 : index
    %102 = vector.load %arg9[%c10_71, %c0_72] : memref<36x256xf32, #tpu.memory_space<vmem>>, vector<2x256xf32>
    tpu.vector_store %arg9[%c10_71, %c0_72], %101 {strides = array<i32>} : memref<36x256xf32, #tpu.memory_space<vmem>>, vector<2x256xf32>,
    %c12_73 = arith.constant 12 : index
    %c0_74 = arith.constant 0 : index
    %103 = vector.load %arg9[%c12_73, %c0_74] : memref<36x256xf32, #tpu.memory_space<vmem>>, vector<2x256xf32>
    tpu.vector_store %arg9[%c12_73, %c0_74], %101 {strides = array<i32>} : memref<36x256xf32, #tpu.memory_space<vmem>>, vector<2x256xf32>,
    %104 = vector.extract_strided_slice %92 {offsets = [6, 0], sizes = [2, 256], strides = [1, 1]} : vector<16x256xf32> to vector<2x256xf32>
    %c14_75 = arith.constant 14 : index
    %c0_76 = arith.constant 0 : index
    %105 = vector.load %arg9[%c14_75, %c0_76] : memref<36x256xf32, #tpu.memory_space<vmem>>, vector<2x256xf32>
    tpu.vector_store %arg9[%c14_75, %c0_76], %104 {strides = array<i32>} : memref<36x256xf32, #tpu.memory_space<vmem>>, vector<2x256xf32>,
    %c16_77 = arith.constant 16 : index
    %c0_78 = arith.constant 0 : index
    %106 = vector.load %arg9[%c16_77, %c0_78] : memref<36x256xf32, #tpu.memory_space<vmem>>, vector<2x256xf32>
    tpu.vector_store %arg9[%c16_77, %c0_78], %104 {strides = array<i32>} : memref<36x256xf32, #tpu.memory_space<vmem>>, vector<2x256xf32>,
    %107 = vector.extract_strided_slice %92 {offsets = [8, 0], sizes = [2, 256], strides = [1, 1]} : vector<16x256xf32> to vector<2x256xf32>
    %c18_79 = arith.constant 18 : index
    %c0_80 = arith.constant 0 : index
    %108 = vector.load %arg9[%c18_79, %c0_80] : memref<36x256xf32, #tpu.memory_space<vmem>>, vector<2x256xf32>
    tpu.vector_store %arg9[%c18_79, %c0_80], %107 {strides = array<i32>} : memref<36x256xf32, #tpu.memory_space<vmem>>, vector<2x256xf32>,
    %c20 = arith.constant 20 : index
    %c0_81 = arith.constant 0 : index
    %109 = vector.load %arg9[%c20, %c0_81] : memref<36x256xf32, #tpu.memory_space<vmem>>, vector<2x256xf32>
    tpu.vector_store %arg9[%c20, %c0_81], %107 {strides = array<i32>} : memref<36x256xf32, #tpu.memory_space<vmem>>, vector<2x256xf32>,
    %110 = vector.extract_strided_slice %92 {offsets = [10, 0], sizes = [2, 256], strides = [1, 1]} : vector<16x256xf32> to vector<2x256xf32>
    %c22 = arith.constant 22 : index
    %c0_82 = arith.constant 0 : index
    %111 = vector.load %arg9[%c22, %c0_82] : memref<36x256xf32, #tpu.memory_space<vmem>>, vector<2x256xf32>
    tpu.vector_store %arg9[%c22, %c0_82], %110 {strides = array<i32>} : memref<36x256xf32, #tpu.memory_space<vmem>>, vector<2x256xf32>,
    %c24 = arith.constant 24 : index
    %c0_83 = arith.constant 0 : index
    %112 = vector.load %arg9[%c24, %c0_83] : memref<36x256xf32, #tpu.memory_space<vmem>>, vector<2x256xf32>
    tpu.vector_store %arg9[%c24, %c0_83], %110 {strides = array<i32>} : memref<36x256xf32, #tpu.memory_space<vmem>>, vector<2x256xf32>,
    %113 = vector.extract_strided_slice %92 {offsets = [12, 0], sizes = [2, 256], strides = [1, 1]} : vector<16x256xf32> to vector<2x256xf32>
    %c26 = arith.constant 26 : index
    %c0_84 = arith.constant 0 : index
    %114 = vector.load %arg9[%c26, %c0_84] : memref<36x256xf32, #tpu.memory_space<vmem>>, vector<2x256xf32>
    tpu.vector_store %arg9[%c26, %c0_84], %113 {strides = array<i32>} : memref<36x256xf32, #tpu.memory_space<vmem>>, vector<2x256xf32>,
    %c28 = arith.constant 28 : index
    %c0_85 = arith.constant 0 : index
    %115 = vector.load %arg9[%c28, %c0_85] : memref<36x256xf32, #tpu.memory_space<vmem>>, vector<2x256xf32>
    tpu.vector_store %arg9[%c28, %c0_85], %113 {strides = array<i32>} : memref<36x256xf32, #tpu.memory_space<vmem>>, vector<2x256xf32>,
    %116 = vector.extract_strided_slice %92 {offsets = [14, 0], sizes = [2, 256], strides = [1, 1]} : vector<16x256xf32> to vector<2x256xf32>
    %c30 = arith.constant 30 : index
    %c0_86 = arith.constant 0 : index
    %117 = vector.load %arg9[%c30, %c0_86] : memref<36x256xf32, #tpu.memory_space<vmem>>, vector<2x256xf32>
    tpu.vector_store %arg9[%c30, %c0_86], %116 {strides = array<i32>} : memref<36x256xf32, #tpu.memory_space<vmem>>, vector<2x256xf32>,
    %c32 = arith.constant 32 : index
    %c0_87 = arith.constant 0 : index
    %118 = vector.load %arg9[%c32, %c0_87] : memref<36x256xf32, #tpu.memory_space<vmem>>, vector<2x256xf32>
    tpu.vector_store %arg9[%c32, %c0_87], %116 {strides = array<i32>} : memref<36x256xf32, #tpu.memory_space<vmem>>, vector<2x256xf32>,
    %cst_88 = arith.constant 0.000000e+00 : f32
    %119 = vector.broadcast %cst_88 : f32 to vector<28x224xf32>
    %c0_89 = arith.constant 0 : index
    %c0_90 = arith.constant 0 : index
    %120 = vector.load %arg9[%c0_89, %c0_90] : memref<36x256xf32, #tpu.memory_space<vmem>>, vector<28x256xf32>
    %121 = arith.truncf %120 : vector<28x256xf32> to vector<28x256xbf16>
    %c0_91 = arith.constant 0 : index
    %c0_92 = arith.constant 0 : index
    %c0_93 = arith.constant 0 : index
    %122 = vector.load %arg3[%c0_91, %c0_92, %c0_93] : memref<5x256x224xbf16, #tpu.memory_space<vmem>>, vector<1x256x224xbf16>
    %123 = vector.shape_cast %122 : vector<1x256x224xbf16> to vector<256x224xbf16>
    %cst_94 = arith.constant dense<0.000000e+00> : vector<28x224xf32>
    %124 = tpu.matmul %121, %123, %cst_94 {dimension_numbers = #tpu.dot_dimension_numbers<[1], [0], [0], [1], [0, 0, 1, 1], [], []>} : vector<28x256xbf16>, vector<256x224xbf16>, vector<28x224xf32> -> vector<28x224xf32>
    %125 = arith.addf %119, %124 : vector<28x224xf32>
    %c2_95 = arith.constant 2 : index
    %c0_96 = arith.constant 0 : index
    %126 = vector.load %arg9[%c2_95, %c0_96] : memref<36x256xf32, #tpu.memory_space<vmem>>, vector<28x256xf32>
    %127 = arith.truncf %126 : vector<28x256xf32> to vector<28x256xbf16>
    %c1_97 = arith.constant 1 : index
    %c0_98 = arith.constant 0 : index
    %c0_99 = arith.constant 0 : index
    %128 = vector.load %arg3[%c1_97, %c0_98, %c0_99] : memref<5x256x224xbf16, #tpu.memory_space<vmem>>, vector<1x256x224xbf16>
    %129 = vector.shape_cast %128 : vector<1x256x224xbf16> to vector<256x224xbf16>
    %cst_100 = arith.constant dense<0.000000e+00> : vector<28x224xf32>
    %130 = tpu.matmul %127, %129, %cst_100 {dimension_numbers = #tpu.dot_dimension_numbers<[1], [0], [0], [1], [0, 0, 1, 1], [], []>} : vector<28x256xbf16>, vector<256x224xbf16>, vector<28x224xf32> -> vector<28x224xf32>
    %131 = arith.addf %125, %130 : vector<28x224xf32>
    %c4_101 = arith.constant 4 : index
    %c0_102 = arith.constant 0 : index
    %132 = vector.load %arg9[%c4_101, %c0_102] : memref<36x256xf32, #tpu.memory_space<vmem>>, vector<28x256xf32>
    %133 = arith.truncf %132 : vector<28x256xf32> to vector<28x256xbf16>
    %c2_103 = arith.constant 2 : index
    %c0_104 = arith.constant 0 : index
    %c0_105 = arith.constant 0 : index
    %134 = vector.load %arg3[%c2_103, %c0_104, %c0_105] : memref<5x256x224xbf16, #tpu.memory_space<vmem>>, vector<1x256x224xbf16>
    %135 = vector.shape_cast %134 : vector<1x256x224xbf16> to vector<256x224xbf16>
    %cst_106 = arith.constant dense<0.000000e+00> : vector<28x224xf32>
    %136 = tpu.matmul %133, %135, %cst_106 {dimension_numbers = #tpu.dot_dimension_numbers<[1], [0], [0], [1], [0, 0, 1, 1], [], []>} : vector<28x256xbf16>, vector<256x224xbf16>, vector<28x224xf32> -> vector<28x224xf32>
    %137 = arith.addf %131, %136 : vector<28x224xf32>
    %c6_107 = arith.constant 6 : index
    %c0_108 = arith.constant 0 : index
    %138 = vector.load %arg9[%c6_107, %c0_108] : memref<36x256xf32, #tpu.memory_space<vmem>>, vector<28x256xf32>
    %139 = arith.truncf %138 : vector<28x256xf32> to vector<28x256xbf16>
    %c3_109 = arith.constant 3 : index
    %c0_110 = arith.constant 0 : index
    %c0_111 = arith.constant 0 : index
    %140 = vector.load %arg3[%c3_109, %c0_110, %c0_111] : memref<5x256x224xbf16, #tpu.memory_space<vmem>>, vector<1x256x224xbf16>
    %141 = vector.shape_cast %140 : vector<1x256x224xbf16> to vector<256x224xbf16>
    %cst_112 = arith.constant dense<0.000000e+00> : vector<28x224xf32>
    %142 = tpu.matmul %139, %141, %cst_112 {dimension_numbers = #tpu.dot_dimension_numbers<[1], [0], [0], [1], [0, 0, 1, 1], [], []>} : vector<28x256xbf16>, vector<256x224xbf16>, vector<28x224xf32> -> vector<28x224xf32>
    %143 = arith.addf %137, %142 : vector<28x224xf32>
    %c8_113 = arith.constant 8 : index
    %c0_114 = arith.constant 0 : index
    %144 = vector.load %arg9[%c8_113, %c0_114] : memref<36x256xf32, #tpu.memory_space<vmem>>, vector<28x256xf32>
    %145 = arith.truncf %144 : vector<28x256xf32> to vector<28x256xbf16>
    %c4_115 = arith.constant 4 : index
    %c0_116 = arith.constant 0 : index
    %c0_117 = arith.constant 0 : index
    %146 = vector.load %arg3[%c4_115, %c0_116, %c0_117] : memref<5x256x224xbf16, #tpu.memory_space<vmem>>, vector<1x256x224xbf16>
    %147 = vector.shape_cast %146 : vector<1x256x224xbf16> to vector<256x224xbf16>
    %cst_118 = arith.constant dense<0.000000e+00> : vector<28x224xf32>
    %148 = tpu.matmul %145, %147, %cst_118 {dimension_numbers = #tpu.dot_dimension_numbers<[1], [0], [0], [1], [0, 0, 1, 1], [], []>} : vector<28x256xbf16>, vector<256x224xbf16>, vector<28x224xf32> -> vector<28x224xf32>
    %149 = arith.addf %143, %148 : vector<28x224xf32>
    %c0_119 = arith.constant 0 : index
    %c0_120 = arith.constant 0 : index
    %150 = vector.load %arg6[%c0_119, %c0_120] : memref<224x224xf32, #tpu.memory_space<vmem>>, vector<224x224xf32>
    %cst_121 = arith.constant dense<0.000000e+00> : vector<224xf32>
    %151 = vector.multi_reduction <add>, %149, %cst_121 [0] : vector<28x224xf32> to vector<224xf32>
    %152 = vector.shape_cast %151 : vector<224xf32> to vector<1x224xf32>
    %cst_122 = arith.constant dense<0.000000e+00> : vector<1x224xf32>
    %153 = tpu.matmul %152, %150, %cst_122 {dimension_numbers = #tpu.dot_dimension_numbers<[1], [0], [0], [1], [0, 0, 1, 1], [], []>} : vector<1x224xf32>, vector<224x224xf32>, vector<1x224xf32> -> vector<1x224xf32>
    %cst_123 = arith.constant 3.920000e+02 : f32
    %154 = vector.broadcast %cst_123 : f32 to vector<1x224xf32>
    %155 = arith.divf %153, %154 : vector<1x224xf32>
    %156 = vector.broadcast %155 : vector<1x224xf32> to vector<28x224xf32>
    %157 = arith.subf %149, %156 : vector<28x224xf32>
    %158 = arith.mulf %157, %157 : vector<28x224xf32>
    %cst_124 = arith.constant dense<0.000000e+00> : vector<224xf32>
    %159 = vector.multi_reduction <add>, %158, %cst_124 [0] : vector<28x224xf32> to vector<224xf32>
    %160 = vector.shape_cast %159 : vector<224xf32> to vector<1x224xf32>
    %cst_125 = arith.constant dense<0.000000e+00> : vector<1x224xf32>
    %161 = tpu.matmul %160, %150, %cst_125 {dimension_numbers = #tpu.dot_dimension_numbers<[1], [0], [0], [1], [0, 0, 1, 1], [], []>} : vector<1x224xf32>, vector<224x224xf32>, vector<1x224xf32> -> vector<1x224xf32>
    %cst_126 = arith.constant 3.920000e+02 : f32
    %162 = vector.broadcast %cst_126 : f32 to vector<1x224xf32>
    %163 = arith.divf %161, %162 : vector<1x224xf32>
    %cst_127 = arith.constant 9.99999974E-5 : f32
    %164 = vector.broadcast %cst_127 : f32 to vector<1x224xf32>
    %165 = arith.addf %163, %164 : vector<1x224xf32>
    %166 = math.rsqrt %165 : vector<1x224xf32>
    %167 = vector.broadcast %166 : vector<1x224xf32> to vector<28x224xf32>
    %168 = arith.mulf %157, %167 : vector<28x224xf32>
    %cst_128 = arith.constant 0.000000e+00 : f32
    %169 = vector.broadcast %cst_128 : f32 to vector<28x224xf32>
    %170 = arith.cmpf oge, %168, %169 : vector<28x224xf32>
    %cst_129 = arith.constant 0.00999999977 : f32
    %171 = vector.broadcast %cst_129 : f32 to vector<28x224xf32>
    %172 = arith.mulf %171, %168 : vector<28x224xf32>
    %173 = arith.select %170, %168, %172 : vector<28x224xi1>, vector<28x224xf32>
    %cst_130 = arith.constant 0.000000e+00 : f32
    %174 = vector.broadcast %cst_130 : f32 to vector<64x224xf32>
    %c0_131 = arith.constant 0 : index
    %c0_132 = arith.constant 0 : index
    %175 = vector.load %arg10[%c0_131, %c0_132] : memref<64x224xf32, #tpu.memory_space<vmem>>, vector<64x224xf32>
    tpu.vector_store %arg10[%c0_131, %c0_132], %174 {strides = array<i32>} : memref<64x224xf32, #tpu.memory_space<vmem>>, vector<64x224xf32>,
    %176 = vector.extract_strided_slice %173 {offsets = [0, 0], sizes = [2, 224], strides = [1, 1]} : vector<28x224xf32> to vector<2x224xf32>
    %c4_133 = arith.constant 4 : index
    %c0_134 = arith.constant 0 : index
    %177 = vector.load %arg10[%c4_133, %c0_134] : memref<64x224xf32, #tpu.memory_space<vmem>>, vector<2x224xf32>
    tpu.vector_store %arg10[%c4_133, %c0_134], %176 {strides = array<i32>} : memref<64x224xf32, #tpu.memory_space<vmem>>, vector<2x224xf32>,
    %c6_135 = arith.constant 6 : index
    %c0_136 = arith.constant 0 : index
    %178 = vector.load %arg10[%c6_135, %c0_136] : memref<64x224xf32, #tpu.memory_space<vmem>>, vector<2x224xf32>
    tpu.vector_store %arg10[%c6_135, %c0_136], %176 {strides = array<i32>} : memref<64x224xf32, #tpu.memory_space<vmem>>, vector<2x224xf32>,
    %179 = vector.extract_strided_slice %173 {offsets = [2, 0], sizes = [2, 224], strides = [1, 1]} : vector<28x224xf32> to vector<2x224xf32>
    %c8_137 = arith.constant 8 : index
    %c0_138 = arith.constant 0 : index
    %180 = vector.load %arg10[%c8_137, %c0_138] : memref<64x224xf32, #tpu.memory_space<vmem>>, vector<2x224xf32>
    tpu.vector_store %arg10[%c8_137, %c0_138], %179 {strides = array<i32>} : memref<64x224xf32, #tpu.memory_space<vmem>>, vector<2x224xf32>,
    %c10_139 = arith.constant 10 : index
    %c0_140 = arith.constant 0 : index
    %181 = vector.load %arg10[%c10_139, %c0_140] : memref<64x224xf32, #tpu.memory_space<vmem>>, vector<2x224xf32>
    tpu.vector_store %arg10[%c10_139, %c0_140], %179 {strides = array<i32>} : memref<64x224xf32, #tpu.memory_space<vmem>>, vector<2x224xf32>,
    %182 = vector.extract_strided_slice %173 {offsets = [4, 0], sizes = [2, 224], strides = [1, 1]} : vector<28x224xf32> to vector<2x224xf32>
    %c12_141 = arith.constant 12 : index
    %c0_142 = arith.constant 0 : index
    %183 = vector.load %arg10[%c12_141, %c0_142] : memref<64x224xf32, #tpu.memory_space<vmem>>, vector<2x224xf32>
    tpu.vector_store %arg10[%c12_141, %c0_142], %182 {strides = array<i32>} : memref<64x224xf32, #tpu.memory_space<vmem>>, vector<2x224xf32>,
    %c14_143 = arith.constant 14 : index
    %c0_144 = arith.constant 0 : index
    %184 = vector.load %arg10[%c14_143, %c0_144] : memref<64x224xf32, #tpu.memory_space<vmem>>, vector<2x224xf32>
    tpu.vector_store %arg10[%c14_143, %c0_144], %182 {strides = array<i32>} : memref<64x224xf32, #tpu.memory_space<vmem>>, vector<2x224xf32>,
    %185 = vector.extract_strided_slice %173 {offsets = [6, 0], sizes = [2, 224], strides = [1, 1]} : vector<28x224xf32> to vector<2x224xf32>
    %c16_145 = arith.constant 16 : index
    %c0_146 = arith.constant 0 : index
    %186 = vector.load %arg10[%c16_145, %c0_146] : memref<64x224xf32, #tpu.memory_space<vmem>>, vector<2x224xf32>
    tpu.vector_store %arg10[%c16_145, %c0_146], %185 {strides = array<i32>} : memref<64x224xf32, #tpu.memory_space<vmem>>, vector<2x224xf32>,
    %c18_147 = arith.constant 18 : index
    %c0_148 = arith.constant 0 : index
    %187 = vector.load %arg10[%c18_147, %c0_148] : memref<64x224xf32, #tpu.memory_space<vmem>>, vector<2x224xf32>
    tpu.vector_store %arg10[%c18_147, %c0_148], %185 {strides = array<i32>} : memref<64x224xf32, #tpu.memory_space<vmem>>, vector<2x224xf32>,
    %188 = vector.extract_strided_slice %173 {offsets = [8, 0], sizes = [2, 224], strides = [1, 1]} : vector<28x224xf32> to vector<2x224xf32>
    %c20_149 = arith.constant 20 : index
    %c0_150 = arith.constant 0 : index
    %189 = vector.load %arg10[%c20_149, %c0_150] : memref<64x224xf32, #tpu.memory_space<vmem>>, vector<2x224xf32>
    tpu.vector_store %arg10[%c20_149, %c0_150], %188 {strides = array<i32>} : memref<64x224xf32, #tpu.memory_space<vmem>>, vector<2x224xf32>,
    %c22_151 = arith.constant 22 : index
    %c0_152 = arith.constant 0 : index
    %190 = vector.load %arg10[%c22_151, %c0_152] : memref<64x224xf32, #tpu.memory_space<vmem>>, vector<2x224xf32>
    tpu.vector_store %arg10[%c22_151, %c0_152], %188 {strides = array<i32>} : memref<64x224xf32, #tpu.memory_space<vmem>>, vector<2x224xf32>,
    %191 = vector.extract_strided_slice %173 {offsets = [10, 0], sizes = [2, 224], strides = [1, 1]} : vector<28x224xf32> to vector<2x224xf32>
    %c24_153 = arith.constant 24 : index
    %c0_154 = arith.constant 0 : index
    %192 = vector.load %arg10[%c24_153, %c0_154] : memref<64x224xf32, #tpu.memory_space<vmem>>, vector<2x224xf32>
    tpu.vector_store %arg10[%c24_153, %c0_154], %191 {strides = array<i32>} : memref<64x224xf32, #tpu.memory_space<vmem>>, vector<2x224xf32>,
    %c26_155 = arith.constant 26 : index
    %c0_156 = arith.constant 0 : index
    %193 = vector.load %arg10[%c26_155, %c0_156] : memref<64x224xf32, #tpu.memory_space<vmem>>, vector<2x224xf32>
    tpu.vector_store %arg10[%c26_155, %c0_156], %191 {strides = array<i32>} : memref<64x224xf32, #tpu.memory_space<vmem>>, vector<2x224xf32>,
    %194 = vector.extract_strided_slice %173 {offsets = [12, 0], sizes = [2, 224], strides = [1, 1]} : vector<28x224xf32> to vector<2x224xf32>
    %c28_157 = arith.constant 28 : index
    %c0_158 = arith.constant 0 : index
    %195 = vector.load %arg10[%c28_157, %c0_158] : memref<64x224xf32, #tpu.memory_space<vmem>>, vector<2x224xf32>
    tpu.vector_store %arg10[%c28_157, %c0_158], %194 {strides = array<i32>} : memref<64x224xf32, #tpu.memory_space<vmem>>, vector<2x224xf32>,
    %c30_159 = arith.constant 30 : index
    %c0_160 = arith.constant 0 : index
    %196 = vector.load %arg10[%c30_159, %c0_160] : memref<64x224xf32, #tpu.memory_space<vmem>>, vector<2x224xf32>
    tpu.vector_store %arg10[%c30_159, %c0_160], %194 {strides = array<i32>} : memref<64x224xf32, #tpu.memory_space<vmem>>, vector<2x224xf32>,
    %197 = vector.extract_strided_slice %173 {offsets = [14, 0], sizes = [2, 224], strides = [1, 1]} : vector<28x224xf32> to vector<2x224xf32>
    %c32_161 = arith.constant 32 : index
    %c0_162 = arith.constant 0 : index
    %198 = vector.load %arg10[%c32_161, %c0_162] : memref<64x224xf32, #tpu.memory_space<vmem>>, vector<2x224xf32>
    tpu.vector_store %arg10[%c32_161, %c0_162], %197 {strides = array<i32>} : memref<64x224xf32, #tpu.memory_space<vmem>>, vector<2x224xf32>,
    %c34 = arith.constant 34 : index
    %c0_163 = arith.constant 0 : index
    %199 = vector.load %arg10[%c34, %c0_163] : memref<64x224xf32, #tpu.memory_space<vmem>>, vector<2x224xf32>
    tpu.vector_store %arg10[%c34, %c0_163], %197 {strides = array<i32>} : memref<64x224xf32, #tpu.memory_space<vmem>>, vector<2x224xf32>,
    %200 = vector.extract_strided_slice %173 {offsets = [16, 0], sizes = [2, 224], strides = [1, 1]} : vector<28x224xf32> to vector<2x224xf32>
    %c36 = arith.constant 36 : index
    %c0_164 = arith.constant 0 : index
    %201 = vector.load %arg10[%c36, %c0_164] : memref<64x224xf32, #tpu.memory_space<vmem>>, vector<2x224xf32>
    tpu.vector_store %arg10[%c36, %c0_164], %200 {strides = array<i32>} : memref<64x224xf32, #tpu.memory_space<vmem>>, vector<2x224xf32>,
    %c38 = arith.constant 38 : index
    %c0_165 = arith.constant 0 : index
    %202 = vector.load %arg10[%c38, %c0_165] : memref<64x224xf32, #tpu.memory_space<vmem>>, vector<2x224xf32>
    tpu.vector_store %arg10[%c38, %c0_165], %200 {strides = array<i32>} : memref<64x224xf32, #tpu.memory_space<vmem>>, vector<2x224xf32>,
    %203 = vector.extract_strided_slice %173 {offsets = [18, 0], sizes = [2, 224], strides = [1, 1]} : vector<28x224xf32> to vector<2x224xf32>
    %c40 = arith.constant 40 : index
    %c0_166 = arith.constant 0 : index
    %204 = vector.load %arg10[%c40, %c0_166] : memref<64x224xf32, #tpu.memory_space<vmem>>, vector<2x224xf32>
    tpu.vector_store %arg10[%c40, %c0_166], %203 {strides = array<i32>} : memref<64x224xf32, #tpu.memory_space<vmem>>, vector<2x224xf32>,
    %c42 = arith.constant 42 : index
    %c0_167 = arith.constant 0 : index
    %205 = vector.load %arg10[%c42, %c0_167] : memref<64x224xf32, #tpu.memory_space<vmem>>, vector<2x224xf32>
    tpu.vector_store %arg10[%c42, %c0_167], %203 {strides = array<i32>} : memref<64x224xf32, #tpu.memory_space<vmem>>, vector<2x224xf32>,
    %206 = vector.extract_strided_slice %173 {offsets = [20, 0], sizes = [2, 224], strides = [1, 1]} : vector<28x224xf32> to vector<2x224xf32>
    %c44 = arith.constant 44 : index
    %c0_168 = arith.constant 0 : index
    %207 = vector.load %arg10[%c44, %c0_168] : memref<64x224xf32, #tpu.memory_space<vmem>>, vector<2x224xf32>
    tpu.vector_store %arg10[%c44, %c0_168], %206 {strides = array<i32>} : memref<64x224xf32, #tpu.memory_space<vmem>>, vector<2x224xf32>,
    %c46 = arith.constant 46 : index
    %c0_169 = arith.constant 0 : index
    %208 = vector.load %arg10[%c46, %c0_169] : memref<64x224xf32, #tpu.memory_space<vmem>>, vector<2x224xf32>
    tpu.vector_store %arg10[%c46, %c0_169], %206 {strides = array<i32>} : memref<64x224xf32, #tpu.memory_space<vmem>>, vector<2x224xf32>,
    %209 = vector.extract_strided_slice %173 {offsets = [22, 0], sizes = [2, 224], strides = [1, 1]} : vector<28x224xf32> to vector<2x224xf32>
    %c48 = arith.constant 48 : index
    %c0_170 = arith.constant 0 : index
    %210 = vector.load %arg10[%c48, %c0_170] : memref<64x224xf32, #tpu.memory_space<vmem>>, vector<2x224xf32>
    tpu.vector_store %arg10[%c48, %c0_170], %209 {strides = array<i32>} : memref<64x224xf32, #tpu.memory_space<vmem>>, vector<2x224xf32>,
    %c50 = arith.constant 50 : index
    %c0_171 = arith.constant 0 : index
    %211 = vector.load %arg10[%c50, %c0_171] : memref<64x224xf32, #tpu.memory_space<vmem>>, vector<2x224xf32>
    tpu.vector_store %arg10[%c50, %c0_171], %209 {strides = array<i32>} : memref<64x224xf32, #tpu.memory_space<vmem>>, vector<2x224xf32>,
    %212 = vector.extract_strided_slice %173 {offsets = [24, 0], sizes = [2, 224], strides = [1, 1]} : vector<28x224xf32> to vector<2x224xf32>
    %c52 = arith.constant 52 : index
    %c0_172 = arith.constant 0 : index
    %213 = vector.load %arg10[%c52, %c0_172] : memref<64x224xf32, #tpu.memory_space<vmem>>, vector<2x224xf32>
    tpu.vector_store %arg10[%c52, %c0_172], %212 {strides = array<i32>} : memref<64x224xf32, #tpu.memory_space<vmem>>, vector<2x224xf32>,
    %c54 = arith.constant 54 : index
    %c0_173 = arith.constant 0 : index
    %214 = vector.load %arg10[%c54, %c0_173] : memref<64x224xf32, #tpu.memory_space<vmem>>, vector<2x224xf32>
    tpu.vector_store %arg10[%c54, %c0_173], %212 {strides = array<i32>} : memref<64x224xf32, #tpu.memory_space<vmem>>, vector<2x224xf32>,
    %215 = vector.extract_strided_slice %173 {offsets = [26, 0], sizes = [2, 224], strides = [1, 1]} : vector<28x224xf32> to vector<2x224xf32>
    %c56 = arith.constant 56 : index
    %c0_174 = arith.constant 0 : index
    %216 = vector.load %arg10[%c56, %c0_174] : memref<64x224xf32, #tpu.memory_space<vmem>>, vector<2x224xf32>
    tpu.vector_store %arg10[%c56, %c0_174], %215 {strides = array<i32>} : memref<64x224xf32, #tpu.memory_space<vmem>>, vector<2x224xf32>,
    %c58 = arith.constant 58 : index
    %c0_175 = arith.constant 0 : index
    %217 = vector.load %arg10[%c58, %c0_175] : memref<64x224xf32, #tpu.memory_space<vmem>>, vector<2x224xf32>
    tpu.vector_store %arg10[%c58, %c0_175], %215 {strides = array<i32>} : memref<64x224xf32, #tpu.memory_space<vmem>>, vector<2x224xf32>,
    %cst_176 = arith.constant 0.000000e+00 : f32
    %218 = vector.broadcast %cst_176 : f32 to vector<56x28xf32>
    %c0_177 = arith.constant 0 : index
    %c0_178 = arith.constant 0 : index
    %219 = vector.load %arg10[%c0_177, %c0_178] : memref<64x224xf32, #tpu.memory_space<vmem>>, vector<56x224xf32>
    %220 = arith.truncf %219 : vector<56x224xf32> to vector<56x224xbf16>
    %c0_179 = arith.constant 0 : index
    %c0_180 = arith.constant 0 : index
    %c0_181 = arith.constant 0 : index
    %221 = vector.load %arg4[%c0_179, %c0_180, %c0_181] : memref<5x224x28xbf16, #tpu.memory_space<vmem>>, vector<1x224x28xbf16>
    %222 = vector.shape_cast %221 : vector<1x224x28xbf16> to vector<224x28xbf16>
    %cst_182 = arith.constant dense<0.000000e+00> : vector<56x28xf32>
    %223 = tpu.matmul %220, %222, %cst_182 {dimension_numbers = #tpu.dot_dimension_numbers<[1], [0], [0], [1], [0, 0, 1, 1], [], []>} : vector<56x224xbf16>, vector<224x28xbf16>, vector<56x28xf32> -> vector<56x28xf32>
    %224 = arith.addf %218, %223 : vector<56x28xf32>
    %c2_183 = arith.constant 2 : index
    %c0_184 = arith.constant 0 : index
    %225 = vector.load %arg10[%c2_183, %c0_184] : memref<64x224xf32, #tpu.memory_space<vmem>>, vector<56x224xf32>
    %226 = arith.truncf %225 : vector<56x224xf32> to vector<56x224xbf16>
    %c1_185 = arith.constant 1 : index
    %c0_186 = arith.constant 0 : index
    %c0_187 = arith.constant 0 : index
    %227 = vector.load %arg4[%c1_185, %c0_186, %c0_187] : memref<5x224x28xbf16, #tpu.memory_space<vmem>>, vector<1x224x28xbf16>
    %228 = vector.shape_cast %227 : vector<1x224x28xbf16> to vector<224x28xbf16>
    %cst_188 = arith.constant dense<0.000000e+00> : vector<56x28xf32>
    %229 = tpu.matmul %226, %228, %cst_188 {dimension_numbers = #tpu.dot_dimension_numbers<[1], [0], [0], [1], [0, 0, 1, 1], [], []>} : vector<56x224xbf16>, vector<224x28xbf16>, vector<56x28xf32> -> vector<56x28xf32>
    %230 = arith.addf %224, %229 : vector<56x28xf32>
    %c4_189 = arith.constant 4 : index
    %c0_190 = arith.constant 0 : index
    %231 = vector.load %arg10[%c4_189, %c0_190] : memref<64x224xf32, #tpu.memory_space<vmem>>, vector<56x224xf32>
    %232 = arith.truncf %231 : vector<56x224xf32> to vector<56x224xbf16>
    %c2_191 = arith.constant 2 : index
    %c0_192 = arith.constant 0 : index
    %c0_193 = arith.constant 0 : index
    %233 = vector.load %arg4[%c2_191, %c0_192, %c0_193] : memref<5x224x28xbf16, #tpu.memory_space<vmem>>, vector<1x224x28xbf16>
    %234 = vector.shape_cast %233 : vector<1x224x28xbf16> to vector<224x28xbf16>
    %cst_194 = arith.constant dense<0.000000e+00> : vector<56x28xf32>
    %235 = tpu.matmul %232, %234, %cst_194 {dimension_numbers = #tpu.dot_dimension_numbers<[1], [0], [0], [1], [0, 0, 1, 1], [], []>} : vector<56x224xbf16>, vector<224x28xbf16>, vector<56x28xf32> -> vector<56x28xf32>
    %236 = arith.addf %230, %235 : vector<56x28xf32>
    %c6_195 = arith.constant 6 : index
    %c0_196 = arith.constant 0 : index
    %237 = vector.load %arg10[%c6_195, %c0_196] : memref<64x224xf32, #tpu.memory_space<vmem>>, vector<56x224xf32>
    %238 = arith.truncf %237 : vector<56x224xf32> to vector<56x224xbf16>
    %c3_197 = arith.constant 3 : index
    %c0_198 = arith.constant 0 : index
    %c0_199 = arith.constant 0 : index
    %239 = vector.load %arg4[%c3_197, %c0_198, %c0_199] : memref<5x224x28xbf16, #tpu.memory_space<vmem>>, vector<1x224x28xbf16>
    %240 = vector.shape_cast %239 : vector<1x224x28xbf16> to vector<224x28xbf16>
    %cst_200 = arith.constant dense<0.000000e+00> : vector<56x28xf32>
    %241 = tpu.matmul %238, %240, %cst_200 {dimension_numbers = #tpu.dot_dimension_numbers<[1], [0], [0], [1], [0, 0, 1, 1], [], []>} : vector<56x224xbf16>, vector<224x28xbf16>, vector<56x28xf32> -> vector<56x28xf32>
    %242 = arith.addf %236, %241 : vector<56x28xf32>
    %c8_201 = arith.constant 8 : index
    %c0_202 = arith.constant 0 : index
    %243 = vector.load %arg10[%c8_201, %c0_202] : memref<64x224xf32, #tpu.memory_space<vmem>>, vector<56x224xf32>
    %244 = arith.truncf %243 : vector<56x224xf32> to vector<56x224xbf16>
    %c4_203 = arith.constant 4 : index
    %c0_204 = arith.constant 0 : index
    %c0_205 = arith.constant 0 : index
    %245 = vector.load %arg4[%c4_203, %c0_204, %c0_205] : memref<5x224x28xbf16, #tpu.memory_space<vmem>>, vector<1x224x28xbf16>
    %246 = vector.shape_cast %245 : vector<1x224x28xbf16> to vector<224x28xbf16>
    %cst_206 = arith.constant dense<0.000000e+00> : vector<56x28xf32>
    %247 = tpu.matmul %244, %246, %cst_206 {dimension_numbers = #tpu.dot_dimension_numbers<[1], [0], [0], [1], [0, 0, 1, 1], [], []>} : vector<56x224xbf16>, vector<224x28xbf16>, vector<56x28xf32> -> vector<56x28xf32>
    %248 = arith.addf %242, %247 : vector<56x28xf32>
    %249 = arith.negf %248 : vector<56x28xf32>
    %250 = math.exp %249 : vector<56x28xf32>
    %cst_207 = arith.constant 1.000000e+00 : f32
    %251 = vector.broadcast %cst_207 : f32 to vector<56x28xf32>
    %252 = arith.addf %251, %250 : vector<56x28xf32>
    %253 = arith.divf %251, %252 : vector<56x28xf32>
    %c0_208 = arith.constant 0 : index
    %c0_209 = arith.constant 0 : index
    %254 = vector.load %arg7[%c0_208, %c0_209] : memref<56x28xf32, #tpu.memory_space<vmem>>, vector<56x28xf32>
    tpu.vector_store %arg7[%c0_208, %c0_209], %253 {strides = array<i32>} : memref<56x28xf32, #tpu.memory_space<vmem>>, vector<56x28xf32>,
    return
  }
}

</mosaic_0001>

<llo_original>
// kernel: lenet_decoder_forward.1
$region0: #{lenet_decoder_forward.1}
  #allocation0 [shape = 'u32[]', space=smem, size = 0x4, offset = 0x4, fixed_abs, tag = 'smem constant byte address 0x4 - core index']
  #allocation1 [shape = 'u32[144,128]{1,0:T(1,128)}', space=vmem, size = 0x12000, scoped, tag = 'internal scratch']
  #allocation2 [shape = 'f32[24,32]{1,0:T(8,128)}', space=vmem, size = 0x3000, scoped, tag = 'scratch operand']
  #allocation3 [shape = 'f32[36,256]{1,0:T(8,128)}', space=vmem, size = 0xa000, scoped, tag = 'scratch operand']
  #allocation4 [shape = 'f32[64,224]{1,0:T(8,128)}', space=vmem, size = 0x10000, scoped, tag = 'scratch operand']
  %s0 = inlined_call_operand.vmem [shape: f32[2,64], index: 0, kind: input, shape index: {}]
  %s1 = inlined_call_operand.vmem [shape: f32[64,128], index: 1, kind: input, shape index: {}]
  %s2 = inlined_call_operand.vmem [shape: bf16[5,32,256], index: 2, kind: input, shape index: {}]
  %s3 = inlined_call_operand.vmem [shape: bf16[5,256,224], index: 3, kind: input, shape index: {}]
  %s4 = inlined_call_operand.vmem [shape: bf16[5,224,28], index: 4, kind: input, shape index: {}]
  %s5 = inlined_call_operand.vmem [shape: f32[256,256], index: 5, kind: input, shape index: {}]
  %s6 = inlined_call_operand.vmem [shape: f32[224,224], index: 6, kind: input, shape index: {}]
  %s7 = inlined_call_operand.vmem [shape: f32[56,28], index: 7, kind: output, shape index: {}]
  %s8 = sld [smem:[#allocation0]]
  $region38: #{lenet_decoder_forward.1} parent=0
    _
  %s10 = ssub.s32 1, %s8
  %s11 = scalar_select 0, %s10, %s8
  // Predicated region
  $region2: #{lenet_decoder_forward.1} parent=0 // pred_check
    _
  $region3: #{lenet_decoder_forward.1} parent=0 // pred_check_branch
    %13 = sbr.rel (0) target = $region5
  $region4: #{lenet_decoder_forward.1} parent=0 // pred_region
    _
  $region5: #{lenet_decoder_forward.1} parent=0 // pred_fallthru
    _
  // Predicated region
  $region6: #{lenet_decoder_forward.1} parent=0 // pred_check
    _
  $region7: #{lenet_decoder_forward.1} parent=0 // pred_check_branch
    %15 = sbr.rel (0) target = $region9
  $region8: #{lenet_decoder_forward.1} parent=0 // pred_region
    _
  $region9: #{lenet_decoder_forward.1} parent=0 // pred_fallthru
    _
  // Predicated region
  $region10: #{lenet_decoder_forward.1} parent=0 // pred_check
    _
  $region11: #{lenet_decoder_forward.1} parent=0 // pred_check_branch
    %17 = sbr.rel (0) target = $region13
  $region12: #{lenet_decoder_forward.1} parent=0 // pred_region
    _
  $region13: #{lenet_decoder_forward.1} parent=0 // pred_fallthru
    _
  // Predicated region
  $region14: #{lenet_decoder_forward.1} parent=0 // pred_check
    _
  $region15: #{lenet_decoder_forward.1} parent=0 // pred_check_branch
    %19 = sbr.rel (0) target = $region17
  $region16: #{lenet_decoder_forward.1} parent=0 // pred_region
    _
  $region17: #{lenet_decoder_forward.1} parent=0 // pred_fallthru
    _
  // Predicated region
  $region18: #{lenet_decoder_forward.1} parent=0 // pred_check
    _
  $region19: #{lenet_decoder_forward.1} parent=0 // pred_check_branch
    %21 = sbr.rel (0) target = $region21
  $region20: #{lenet_decoder_forward.1} parent=0 // pred_region
    _
  $region21: #{lenet_decoder_forward.1} parent=0 // pred_fallthru
    _
  // Predicated region
  $region22: #{lenet_decoder_forward.1} parent=0 // pred_check
    _
  $region23: #{lenet_decoder_forward.1} parent=0 // pred_check_branch
    %23 = sbr.rel (0) target = $region25
  $region24: #{lenet_decoder_forward.1} parent=0 // pred_region
    _
  $region25: #{lenet_decoder_forward.1} parent=0 // pred_fallthru
    _
  // Predicated region
  $region26: #{lenet_decoder_forward.1} parent=0 // pred_check
    _
  $region27: #{lenet_decoder_forward.1} parent=0 // pred_check_branch
    %25 = sbr.rel (0) target = $region29
  $region28: #{lenet_decoder_forward.1} parent=0 // pred_region
    _
  $region29: #{lenet_decoder_forward.1} parent=0 // pred_fallthru
    _
  %v27 = vld [vmem:[%s0] sm:$0x3]
  %v28 = vld [vmem:[%s1] sm:$0xff]
  %v29 = vld [vmem:[%s1 + $0x8] sm:$0xff]
  %v30 = vld [vmem:[%s1 + $0x10] sm:$0xff]
  %v31 = vld [vmem:[%s1 + $0x18] sm:$0xff]
  %v32 = vld [vmem:[%s1 + $0x20] sm:$0xff]
  %v33 = vld [vmem:[%s1 + $0x28] sm:$0xff]
  %v34 = vld [vmem:[%s1 + $0x30] sm:$0xff]
  %v35 = vld [vmem:[%s1 + $0x38] sm:$0xff]
  %vm36 = vcmask 523264
  %v38 = vsel %vm36, %v27, 0
  %40 = vmatprep.subr.mxu0 0.0
  %41 = vmatpush1.msra.mxu0 %v28
  %42 = vmatprep.subr.mxu0 0.0
  %43 = vmatpush1.msra.mxu0 %v29
  %44 = vmatprep.subr.mxu0 0.0
  %45 = vmatpush1.msra.mxu0 %v30
  %46 = vmatprep.subr.mxu0 0.0
  %47 = vmatpush1.msra.mxu0 %v31
  %48 = vmatprep.subr.mxu0 0.0
  %49 = vmatpush1.msra.mxu0 %v32
  %50 = vmatprep.subr.mxu0 0.0
  %51 = vmatpush1.msra.mxu0 %v33
  %52 = vmatprep.subr.mxu0 0.0
  %53 = vmatpush1.msra.mxu0 %v34
  %54 = vmatprep.subr.mxu0 0.0
  %55 = vmatpush1.msra.mxu0 %v35
  %56 = vmatprep.subr.mxu0 0.0
  %57 = vmatpush1.msra.mxu0 0.0
  %58 = vmatprep.subr.mxu0 0.0
  %59 = vmatpush1.msra.mxu0 0.0
  %60 = vmatprep.subr.mxu0 0.0
  %61 = vmatpush1.msra.mxu0 0.0
  %62 = vmatprep.subr.mxu0 0.0
  %63 = vmatpush1.msra.mxu0 0.0
  %64 = vmatprep.subr.mxu0 0.0
  %65 = vmatpush1.msra.mxu0 0.0
  %66 = vmatprep.subr.mxu0 0.0
  %67 = vmatpush1.msra.mxu0 0.0
  %68 = vmatprep.subr.mxu0 0.0
  %69 = vmatpush1.msra.mxu0 0.0
  %70 = vmatprep.subr.mxu0 0.0
  %71 = vmatpush1.msra.mxu0 0.0
  %72 = vmatprep.subr.mxu0 0.0
  %73 = vmatpush1.msra.mxu0 0.0
  %74 = vmatprep.subr.mxu0 0.0
  %75 = vmatpush1.msra.mxu0 0.0
  %76 = vmatprep.subr.mxu0 0.0
  %77 = vmatpush1.msra.mxu0 0.0
  %78 = vmatprep.subr.mxu0 0.0
  %79 = vmatpush1.msra.mxu0 0.0
  %80 = vmatprep.subr.mxu0 0.0
  %81 = vmatpush1.msra.mxu0 0.0
  %82 = vmatprep.subr.mxu0 0.0
  %83 = vmatpush1.msra.mxu0 0.0
  %84 = vmatprep.subr.mxu0 0.0
  %85 = vmatpush1.msra.mxu0 0.0
  %86 = vmatprep.subr.mxu0 0.0
  %87 = vmatpush1.msra.mxu0 0.0
  %88 = vmatprep.subr.mxu0 0.0
  %89 = vmatpush1.msra.mxu0 0.0
  %90 = vmatprep.subr.mxu0 0.0
  %91 = vmatpush1.msra.mxu0 0.0
  %92 = vmatprep.subr.mxu0 0.0
  %93 = vmatpush1.msra.mxu0 0.0
  %94 = vmatprep.subr.mxu0 0.0
  %95 = vmatpush1.msra.mxu0 0.0
  %96 = vmatprep.subr.mxu0 0.0
  %97 = vmatpush1.msra.mxu0 0.0
  %98 = vmatprep.subr.mxu0 0.0
  %99 = vmatpush1.msra.mxu0 0.0
  %100 = vmatprep.subr.mxu0 0.0
  %101 = vmatpush1.msra.mxu0 0.0
  %102 = vmatprep.subr.mxu0 0.0
  %103 = vmatpush1.msra.mxu0 0.0
  %104 = vmatprep.mubr.f32.mxu0 0.0
  %105 = vmatmul.mubr.f32.gmra.mrb[0].mxu0 %v38
  %v106 = vpop.f32.mrb[0].mxu0
  %v107 = vadd.f32 0.0, %v106
  %v108 = vpop.f32.mrb[0].mxu0
  %109 = vdwg.mxu0
  %vm110 = vcmask 1041408
  %v111 = vsel %vm110, %v107, 0.0
  %v112 = vrot.slane %v111, 4
  %v113 = vadd.f32 %v111, %v112
  %v114 = vrot.slane %v113, 2
  %v115 = vadd.f32 %v113, %v114
  %v116 = vrot.slane %v115, 1
  %v117 = vadd.f32 %v115, %v116
  %v118 = vrcp.pop 2.0
  %v119 = vmul.f32 %v117, %v118
  %v120 = vsub.f32 %v107, %v119
  %v121 = vmul.f32 %v120, %v120
  %v122 = vsel %vm110, %v121, 0.0
  %v123 = vrot.slane %v122, 4
  %v124 = vadd.f32 %v122, %v123
  %v125 = vrot.slane %v124, 2
  %v126 = vadd.f32 %v124, %v125
  %v127 = vrot.slane %v126, 1
  %v128 = vadd.f32 %v126, %v127
  %v129 = vmul.f32 %v128, %v118
  %v130 = vadd.f32 %v129, 0.0001
  %v131 = vrsqrt.pop %v130
  %v132 = vmul.f32 %v120, %v131
  %vm133 = vcmp.ge.f32.partialorder %v132, 0.0
  %v134 = vmul.f32 %v132, 0.01
  %v135 = vsel %vm133, %v132, %v134
  %vm136 = vcmask 261120
  %137 = vst.msk [vmem:[#allocation2] sm:$0xff] %vm136, 0.0
  %138 = vst.msk [vmem:[#allocation2 + $0x8] sm:$0xff] %vm136, 0.0
  %139 = vst.msk [vmem:[#allocation2 + $0x10] sm:$0xff] %vm136, 0.0
  %vm140 = vcmask 254976
  %141 = vst.msk [vmem:[#allocation2 + $0x4] sm:$0x3] %vm140, %v135
  %142 = vst.msk [vmem:[#allocation2 + $0x6] sm:$0x3] %vm140, %v135
  %144 = vrot.lane.b32.xlu0 %v135, 96
  %v145 = vpop.permute.xlu0 %144
  %147 = vst.msk [vmem:[#allocation2 + $0x8] sm:$0x3] %vm140, %v145
  %148 = vst.msk [vmem:[#allocation2 + $0xa] sm:$0x3] %vm140, %v145
  %149 = vrot.lane.b32.xlu0 %v135, 64
  %v150 = vpop.permute.xlu0 %149
  %152 = vst.msk [vmem:[#allocation2 + $0xc] sm:$0x3] %vm140, %v150
  %153 = vst.msk [vmem:[#allocation2 + $0xe] sm:$0x3] %vm140, %v150
  %154 = vrot.lane.b32.xlu0 %v135, 32
  %v155 = vpop.permute.xlu0 %154
  %157 = vst.msk [vmem:[#allocation2 + $0x10] sm:$0x3] %vm140, %v155
  %158 = vst.msk [vmem:[#allocation2 + $0x12] sm:$0x3] %vm140, %v155
  %v159 = vld [vmem:[#allocation2] sm:$0xff]
  %v160 = vld [vmem:[#allocation2 + $0x8] sm:$0xff]
  %v161 = vpack.c.bf16 %v160, %v159
  %v162 = vld [vmem:[%s2] sm:$0xff]
  %v163 = vld [vmem:[%s2 + $0x8] sm:$0xff]
  %v164 = vld [vmem:[%s2 + $0x10] sm:$0xff]
  %v165 = vld [vmem:[%s2 + $0x18] sm:$0xff]
  %v166 = vld [vmem:[#allocation2 + $0x2] sm:$0xff]
  %v167 = vld [vmem:[#allocation2 + $0xa] sm:$0xff]
  %v168 = vpack.c.bf16 %v167, %v166
  %s169 = scalar_lea.vmem %s2, 32
  %v170 = vld [vmem:[%s169] sm:$0xff]
  %v171 = vld [vmem:[%s169 + $0x8] sm:$0xff]
  %v172 = vld [vmem:[%s169 + $0x10] sm:$0xff]
  %v173 = vld [vmem:[%s169 + $0x18] sm:$0xff]
  %v178 = vunpack.c.l.b16 %v170
  %v179 = vunpack.c.h.b16 %v170
  %v180 = vunpack.c.l.b16 %v171
  %v181 = vunpack.c.h.b16 %v171
  %v182 = vunpack.c.l.b16 %v172
  %v183 = vunpack.c.h.b16 %v172
  %v184 = vunpack.c.l.b16 %v173
  %v185 = vunpack.c.h.b16 %v173
  %v186 = vpack.c.b16 %v180, %v178
  %v187 = vpack.c.b16 %v181, %v179
  %v188 = vpack.c.b16 %v184, %v182
  %v189 = vpack.c.b16 %v185, %v183
  %v195 = vsel %vm136, %v168, 0
  %197 = vmatprep.subr.bf16.mxu0 %v187
  %198 = vmatpush1.bf16.msra.mxu0 %v186
  %199 = vmatprep.subr.bf16.mxu0 %v189
  %200 = vmatpush1.bf16.msra.mxu0 %v188
  %201 = vmatprep.subr.bf16.mxu0 0
  %202 = vmatpush1.bf16.msra.mxu0 0
  %203 = vmatprep.subr.bf16.mxu0 0
  %204 = vmatpush1.bf16.msra.mxu0 0
  %205 = vmatprep.subr.bf16.mxu0 0
  %206 = vmatpush1.bf16.msra.mxu0 0
  %207 = vmatprep.subr.bf16.mxu0 0
  %208 = vmatpush1.bf16.msra.mxu0 0
  %209 = vmatprep.subr.bf16.mxu0 0
  %210 = vmatpush1.bf16.msra.mxu0 0
  %211 = vmatprep.subr.bf16.mxu0 0
  %212 = vmatpush1.bf16.msra.mxu0 0
  %213 = vmatprep.subr.bf16.mxu0 0
  %214 = vmatpush1.bf16.msra.mxu0 0
  %215 = vmatprep.subr.bf16.mxu0 0
  %216 = vmatpush1.bf16.msra.mxu0 0
  %217 = vmatprep.subr.bf16.mxu0 0
  %218 = vmatpush1.bf16.msra.mxu0 0
  %219 = vmatprep.subr.bf16.mxu0 0
  %220 = vmatpush1.bf16.msra.mxu0 0
  %221 = vmatprep.subr.bf16.mxu0 0
  %222 = vmatpush1.bf16.msra.mxu0 0
  %223 = vmatprep.subr.bf16.mxu0 0
  %224 = vmatpush1.bf16.msra.mxu0 0
  %225 = vmatprep.subr.bf16.mxu0 0
  %226 = vmatpush1.bf16.msra.mxu0 0
  %227 = vmatprep.subr.bf16.mxu0 0
  %228 = vmatpush1.bf16.msra.mxu0 0
  %229 = vmatprep.mubr.bf16.mxu0 0
  %230 = vmatmul.mubr.bf16.gmra.mrb[0].mxu0 %v195
  %v231 = vpop.f32.mrb[0].mxu0
  %v232 = vadd.f32 0.0, %v231
  %v233 = vpop.f32.mrb[0].mxu0
  %v234 = vadd.f32 0.0, %v233
  %v235 = vpop.f32.mrb[0].mxu0
  %v236 = vadd.f32 0.0, %v235
  %v237 = vpop.f32.mrb[0].mxu0
  %v238 = vadd.f32 0.0, %v237
  %239 = vdwg.mxu0
  %v244 = vunpack.c.l.b16 %v162
  %v245 = vunpack.c.h.b16 %v162
  %v246 = vunpack.c.l.b16 %v163
  %v247 = vunpack.c.h.b16 %v163
  %v248 = vunpack.c.l.b16 %v164
  %v249 = vunpack.c.h.b16 %v164
  %v250 = vunpack.c.l.b16 %v165
  %v251 = vunpack.c.h.b16 %v165
  %v252 = vpack.c.b16 %v246, %v244
  %v253 = vpack.c.b16 %v247, %v245
  %v254 = vpack.c.b16 %v250, %v248
  %v255 = vpack.c.b16 %v251, %v249
  %v261 = vsel %vm136, %v161, 0
  %263 = vmatprep.subr.bf16.mxu0 %v253
  %264 = vmatpush1.bf16.msra.mxu0 %v252
  %265 = vmatprep.subr.bf16.mxu0 %v255
  %266 = vmatpush1.bf16.msra.mxu0 %v254
  %267 = vmatprep.subr.bf16.mxu0 0
  %268 = vmatpush1.bf16.msra.mxu0 0
  %269 = vmatprep.subr.bf16.mxu0 0
  %270 = vmatpush1.bf16.msra.mxu0 0
  %271 = vmatprep.subr.bf16.mxu0 0
  %272 = vmatpush1.bf16.msra.mxu0 0
  %273 = vmatprep.subr.bf16.mxu0 0
  %274 = vmatpush1.bf16.msra.mxu0 0
  %275 = vmatprep.subr.bf16.mxu0 0
  %276 = vmatpush1.bf16.msra.mxu0 0
  %277 = vmatprep.subr.bf16.mxu0 0
  %278 = vmatpush1.bf16.msra.mxu0 0
  %279 = vmatprep.subr.bf16.mxu0 0
  %280 = vmatpush1.bf16.msra.mxu0 0
  %281 = vmatprep.subr.bf16.mxu0 0
  %282 = vmatpush1.bf16.msra.mxu0 0
  %283 = vmatprep.subr.bf16.mxu0 0
  %284 = vmatpush1.bf16.msra.mxu0 0
  %285 = vmatprep.subr.bf16.mxu0 0
  %286 = vmatpush1.bf16.msra.mxu0 0
  %287 = vmatprep.subr.bf16.mxu0 0
  %288 = vmatpush1.bf16.msra.mxu0 0
  %289 = vmatprep.subr.bf16.mxu0 0
  %290 = vmatpush1.bf16.msra.mxu0 0
  %291 = vmatprep.subr.bf16.mxu0 0
  %292 = vmatpush1.bf16.msra.mxu0 0
  %293 = vmatprep.subr.bf16.mxu0 0
  %294 = vmatpush1.bf16.msra.mxu0 0
  %295 = vmatprep.mubr.bf16.mxu0 0
  %296 = vmatmul.mubr.bf16.gmra.mrb[0].mxu0 %v261
  %v297 = vpop.f32.mrb[0].mxu0
  %v298 = vadd.f32 %v232, %v297
  %v299 = vpop.f32.mrb[0].mxu0
  %v300 = vadd.f32 %v234, %v299
  %v301 = vpop.f32.mrb[0].mxu0
  %v302 = vadd.f32 %v236, %v301
  %v303 = vpop.f32.mrb[0].mxu0
  %v304 = vadd.f32 %v238, %v303
  %305 = vdwg.mxu0
  %v306 = vld [vmem:[#allocation2 + $0x4] sm:$0xff]
  %v307 = vld [vmem:[#allocation2 + $0xc] sm:$0xff]
  %v308 = vpack.c.bf16 %v307, %v306
  %s309 = scalar_lea.vmem %s2, 64
  %v310 = vld [vmem:[%s309] sm:$0xff]
  %v311 = vld [vmem:[%s309 + $0x8] sm:$0xff]
  %v312 = vld [vmem:[%s309 + $0x10] sm:$0xff]
  %v313 = vld [vmem:[%s309 + $0x18] sm:$0xff]
  %v318 = vunpack.c.l.b16 %v310
  %v319 = vunpack.c.h.b16 %v310
  %v320 = vunpack.c.l.b16 %v311
  %v321 = vunpack.c.h.b16 %v311
  %v322 = vunpack.c.l.b16 %v312
  %v323 = vunpack.c.h.b16 %v312
  %v324 = vunpack.c.l.b16 %v313
  %v325 = vunpack.c.h.b16 %v313
  %v326 = vpack.c.b16 %v320, %v318
  %v327 = vpack.c.b16 %v321, %v319
  %v328 = vpack.c.b16 %v324, %v322
  %v329 = vpack.c.b16 %v325, %v323
  %v335 = vsel %vm136, %v308, 0
  %337 = vmatprep.subr.bf16.mxu0 %v327
  %338 = vmatpush1.bf16.msra.mxu0 %v326
  %339 = vmatprep.subr.bf16.mxu0 %v329
  %340 = vmatpush1.bf16.msra.mxu0 %v328
  %341 = vmatprep.subr.bf16.mxu0 0
  %342 = vmatpush1.bf16.msra.mxu0 0
  %343 = vmatprep.subr.bf16.mxu0 0
  %344 = vmatpush1.bf16.msra.mxu0 0
  %345 = vmatprep.subr.bf16.mxu0 0
  %346 = vmatpush1.bf16.msra.mxu0 0
  %347 = vmatprep.subr.bf16.mxu0 0
  %348 = vmatpush1.bf16.msra.mxu0 0
  %349 = vmatprep.subr.bf16.mxu0 0
  %350 = vmatpush1.bf16.msra.mxu0 0
  %351 = vmatprep.subr.bf16.mxu0 0
  %352 = vmatpush1.bf16.msra.mxu0 0
  %353 = vmatprep.subr.bf16.mxu0 0
  %354 = vmatpush1.bf16.msra.mxu0 0
  %355 = vmatprep.subr.bf16.mxu0 0
  %356 = vmatpush1.bf16.msra.mxu0 0
  %357 = vmatprep.subr.bf16.mxu0 0
  %358 = vmatpush1.bf16.msra.mxu0 0
  %359 = vmatprep.subr.bf16.mxu0 0
  %360 = vmatpush1.bf16.msra.mxu0 0
  %361 = vmatprep.subr.bf16.mxu0 0
  %362 = vmatpush1.bf16.msra.mxu0 0
  %363 = vmatprep.subr.bf16.mxu0 0
  %364 = vmatpush1.bf16.msra.mxu0 0
  %365 = vmatprep.subr.bf16.mxu0 0
  %366 = vmatpush1.bf16.msra.mxu0 0
  %367 = vmatprep.subr.bf16.mxu0 0
  %368 = vmatpush1.bf16.msra.mxu0 0
  %369 = vmatprep.mubr.bf16.mxu0 0
  %370 = vmatmul.mubr.bf16.gmra.mrb[0].mxu0 %v335
  %v371 = vpop.f32.mrb[0].mxu0
  %v372 = vadd.f32 0.0, %v371
  %v373 = vpop.f32.mrb[0].mxu0
  %v374 = vadd.f32 0.0, %v373
  %v375 = vpop.f32.mrb[0].mxu0
  %v376 = vadd.f32 0.0, %v375
  %v377 = vpop.f32.mrb[0].mxu0
  %v378 = vadd.f32 0.0, %v377
  %379 = vdwg.mxu0
  %v380 = vadd.f32 %v298, %v372
  %v381 = vadd.f32 %v300, %v374
  %v382 = vadd.f32 %v302, %v376
  %v383 = vadd.f32 %v304, %v378
  %v384 = vld [vmem:[#allocation2 + $0x6] sm:$0xff]
  %v385 = vld [vmem:[#allocation2 + $0xe] sm:$0xff]
  %v386 = vpack.c.bf16 %v385, %v384
  %s387 = scalar_lea.vmem %s2, 96
  %v388 = vld [vmem:[%s387] sm:$0xff]
  %v389 = vld [vmem:[%s387 + $0x8] sm:$0xff]
  %v390 = vld [vmem:[%s387 + $0x10] sm:$0xff]
  %v391 = vld [vmem:[%s387 + $0x18] sm:$0xff]
  %v396 = vunpack.c.l.b16 %v388
  %v397 = vunpack.c.h.b16 %v388
  %v398 = vunpack.c.l.b16 %v389
  %v399 = vunpack.c.h.b16 %v389
  %v400 = vunpack.c.l.b16 %v390
  %v401 = vunpack.c.h.b16 %v390
  %v402 = vunpack.c.l.b16 %v391
  %v403 = vunpack.c.h.b16 %v391
  %v404 = vpack.c.b16 %v398, %v396
  %v405 = vpack.c.b16 %v399, %v397
  %v406 = vpack.c.b16 %v402, %v400
  %v407 = vpack.c.b16 %v403, %v401
  %v413 = vsel %vm136, %v386, 0
  %415 = vmatprep.subr.bf16.mxu0 %v405
  %416 = vmatpush1.bf16.msra.mxu0 %v404
  %417 = vmatprep.subr.bf16.mxu0 %v407
  %418 = vmatpush1.bf16.msra.mxu0 %v406
  %419 = vmatprep.subr.bf16.mxu0 0
  %420 = vmatpush1.bf16.msra.mxu0 0
  %421 = vmatprep.subr.bf16.mxu0 0
  %422 = vmatpush1.bf16.msra.mxu0 0
  %423 = vmatprep.subr.bf16.mxu0 0
  %424 = vmatpush1.bf16.msra.mxu0 0
  %425 = vmatprep.subr.bf16.mxu0 0
  %426 = vmatpush1.bf16.msra.mxu0 0
  %427 = vmatprep.subr.bf16.mxu0 0
  %428 = vmatpush1.bf16.msra.mxu0 0
  %429 = vmatprep.subr.bf16.mxu0 0
  %430 = vmatpush1.bf16.msra.mxu0 0
  %431 = vmatprep.subr.bf16.mxu0 0
  %432 = vmatpush1.bf16.msra.mxu0 0
  %433 = vmatprep.subr.bf16.mxu0 0
  %434 = vmatpush1.bf16.msra.mxu0 0
  %435 = vmatprep.subr.bf16.mxu0 0
  %436 = vmatpush1.bf16.msra.mxu0 0
  %437 = vmatprep.subr.bf16.mxu0 0
  %438 = vmatpush1.bf16.msra.mxu0 0
  %439 = vmatprep.subr.bf16.mxu0 0
  %440 = vmatpush1.bf16.msra.mxu0 0
  %441 = vmatprep.subr.bf16.mxu0 0
  %442 = vmatpush1.bf16.msra.mxu0 0
  %443 = vmatprep.subr.bf16.mxu0 0
  %444 = vmatpush1.bf16.msra.mxu0 0
  %445 = vmatprep.subr.bf16.mxu0 0
  %446 = vmatpush1.bf16.msra.mxu0 0
  %447 = vmatprep.mubr.bf16.mxu0 0
  %448 = vmatmul.mubr.bf16.gmra.mrb[0].mxu0 %v413
  %v449 = vpop.f32.mrb[0].mxu0
  %v450 = vadd.f32 0.0, %v449
  %v451 = vpop.f32.mrb[0].mxu0
  %v452 = vadd.f32 0.0, %v451
  %v453 = vpop.f32.mrb[0].mxu0
  %v454 = vadd.f32 0.0, %v453
  %v455 = vpop.f32.mrb[0].mxu0
  %v456 = vadd.f32 0.0, %v455
  %457 = vdwg.mxu0
  %v458 = vadd.f32 %v380, %v450
  %v459 = vadd.f32 %v381, %v452
  %v460 = vadd.f32 %v382, %v454
  %v461 = vadd.f32 %v383, %v456
  %v462 = vld [vmem:[#allocation2 + $0x8] sm:$0xff]
  %v463 = vld [vmem:[#allocation2 + $0x10] sm:$0xff]
  %v464 = vpack.c.bf16 %v463, %v462
  %s465 = scalar_lea.vmem %s2, 128
  %v466 = vld [vmem:[%s465] sm:$0xff]
  %v467 = vld [vmem:[%s465 + $0x8] sm:$0xff]
  %v468 = vld [vmem:[%s465 + $0x10] sm:$0xff]
  %v469 = vld [vmem:[%s465 + $0x18] sm:$0xff]
  %v474 = vunpack.c.l.b16 %v466
  %v475 = vunpack.c.h.b16 %v466
  %v476 = vunpack.c.l.b16 %v467
  %v477 = vunpack.c.h.b16 %v467
  %v478 = vunpack.c.l.b16 %v468
  %v479 = vunpack.c.h.b16 %v468
  %v480 = vunpack.c.l.b16 %v469
  %v481 = vunpack.c.h.b16 %v469
  %v482 = vpack.c.b16 %v476, %v474
  %v483 = vpack.c.b16 %v477, %v475
  %v484 = vpack.c.b16 %v480, %v478
  %v485 = vpack.c.b16 %v481, %v479
  %v491 = vsel %vm136, %v464, 0
  %493 = vmatprep.subr.bf16.mxu0 %v483
  %494 = vmatpush1.bf16.msra.mxu0 %v482
  %495 = vmatprep.subr.bf16.mxu0 %v485
  %496 = vmatpush1.bf16.msra.mxu0 %v484
  %497 = vmatprep.subr.bf16.mxu0 0
  %498 = vmatpush1.bf16.msra.mxu0 0
  %499 = vmatprep.subr.bf16.mxu0 0
  %500 = vmatpush1.bf16.msra.mxu0 0
  %501 = vmatprep.subr.bf16.mxu0 0
  %502 = vmatpush1.bf16.msra.mxu0 0
  %503 = vmatprep.subr.bf16.mxu0 0
  %504 = vmatpush1.bf16.msra.mxu0 0
  %505 = vmatprep.subr.bf16.mxu0 0
  %506 = vmatpush1.bf16.msra.mxu0 0
  %507 = vmatprep.subr.bf16.mxu0 0
  %508 = vmatpush1.bf16.msra.mxu0 0
  %509 = vmatprep.subr.bf16.mxu0 0
  %510 = vmatpush1.bf16.msra.mxu0 0
  %511 = vmatprep.subr.bf16.mxu0 0
  %512 = vmatpush1.bf16.msra.mxu0 0
  %513 = vmatprep.subr.bf16.mxu0 0
  %514 = vmatpush1.bf16.msra.mxu0 0
  %515 = vmatprep.subr.bf16.mxu0 0
  %516 = vmatpush1.bf16.msra.mxu0 0
  %517 = vmatprep.subr.bf16.mxu0 0
  %518 = vmatpush1.bf16.msra.mxu0 0
  %519 = vmatprep.subr.bf16.mxu0 0
  %520 = vmatpush1.bf16.msra.mxu0 0
  %521 = vmatprep.subr.bf16.mxu0 0
  %522 = vmatpush1.bf16.msra.mxu0 0
  %523 = vmatprep.subr.bf16.mxu0 0
  %524 = vmatpush1.bf16.msra.mxu0 0
  %525 = vmatprep.mubr.bf16.mxu0 0
  %526 = vmatmul.mubr.bf16.gmra.mrb[0].mxu0 %v491
  %v527 = vpop.f32.mrb[0].mxu0
  %v528 = vadd.f32 0.0, %v527
  %v529 = vpop.f32.mrb[0].mxu0
  %v530 = vadd.f32 0.0, %v529
  %v531 = vpop.f32.mrb[0].mxu0
  %v532 = vadd.f32 0.0, %v531
  %v533 = vpop.f32.mrb[0].mxu0
  %v534 = vadd.f32 0.0, %v533
  %535 = vdwg.mxu0
  %v536 = vadd.f32 %v458, %v528
  %v537 = vadd.f32 %v459, %v530
  %v538 = vadd.f32 %v460, %v532
  %v539 = vadd.f32 %v461, %v534
  %v540 = vld [vmem:[%s5] sm:$0xff]
  %v541 = vld [vmem:[%s5 + $0x8] sm:$0xff]
  %v542 = vld [vmem:[%s5 + $0x10] sm:$0xff]
  %v543 = vld [vmem:[%s5 + $0x18] sm:$0xff]
  %v544 = vld [vmem:[%s5 + $0x20] sm:$0xff]
  %v545 = vld [vmem:[%s5 + $0x28] sm:$0xff]
  %v546 = vld [vmem:[%s5 + $0x30] sm:$0xff]
  %v547 = vld [vmem:[%s5 + $0x38] sm:$0xff]
  %v548 = vld [vmem:[%s5 + $0x40] sm:$0xff]
  %v549 = vld [vmem:[%s5 + $0x48] sm:$0xff]
  %v550 = vld [vmem:[%s5 + $0x50] sm:$0xff]
  %v551 = vld [vmem:[%s5 + $0x58] sm:$0xff]
  %v552 = vld [vmem:[%s5 + $0x60] sm:$0xff]
  %v553 = vld [vmem:[%s5 + $0x68] sm:$0xff]
  %v554 = vld [vmem:[%s5 + $0x70] sm:$0xff]
  %v555 = vld [vmem:[%s5 + $0x78] sm:$0xff]
  %v556 = vld [vmem:[%s5 + $0x80] sm:$0xff]
  %v557 = vld [vmem:[%s5 + $0x88] sm:$0xff]
  %v558 = vld [vmem:[%s5 + $0x90] sm:$0xff]
  %v559 = vld [vmem:[%s5 + $0x98] sm:$0xff]
  %v560 = vld [vmem:[%s5 + $0xa0] sm:$0xff]
  %v561 = vld [vmem:[%s5 + $0xa8] sm:$0xff]
  %v562 = vld [vmem:[%s5 + $0xb0] sm:$0xff]
  %v563 = vld [vmem:[%s5 + $0xb8] sm:$0xff]
  %v564 = vld [vmem:[%s5 + $0xc0] sm:$0xff]
  %v565 = vld [vmem:[%s5 + $0xc8] sm:$0xff]
  %v566 = vld [vmem:[%s5 + $0xd0] sm:$0xff]
  %v567 = vld [vmem:[%s5 + $0xd8] sm:$0xff]
  %v568 = vld [vmem:[%s5 + $0xe0] sm:$0xff]
  %v569 = vld [vmem:[%s5 + $0xe8] sm:$0xff]
  %v570 = vld [vmem:[%s5 + $0xf0] sm:$0xff]
  %v571 = vld [vmem:[%s5 + $0xf8] sm:$0xff]
  %v572 = vld [vmem:[%s5 + $0x100] sm:$0xff]
  %v573 = vld [vmem:[%s5 + $0x108] sm:$0xff]
  %v574 = vld [vmem:[%s5 + $0x110] sm:$0xff]
  %v575 = vld [vmem:[%s5 + $0x118] sm:$0xff]
  %v576 = vld [vmem:[%s5 + $0x120] sm:$0xff]
  %v577 = vld [vmem:[%s5 + $0x128] sm:$0xff]
  %v578 = vld [vmem:[%s5 + $0x130] sm:$0xff]
  %v579 = vld [vmem:[%s5 + $0x138] sm:$0xff]
  %v580 = vld [vmem:[%s5 + $0x140] sm:$0xff]
  %v581 = vld [vmem:[%s5 + $0x148] sm:$0xff]
  %v582 = vld [vmem:[%s5 + $0x150] sm:$0xff]
  %v583 = vld [vmem:[%s5 + $0x158] sm:$0xff]
  %v584 = vld [vmem:[%s5 + $0x160] sm:$0xff]
  %v585 = vld [vmem:[%s5 + $0x168] sm:$0xff]
  %v586 = vld [vmem:[%s5 + $0x170] sm:$0xff]
  %v587 = vld [vmem:[%s5 + $0x178] sm:$0xff]
  %v588 = vld [vmem:[%s5 + $0x180] sm:$0xff]
  %v589 = vld [vmem:[%s5 + $0x188] sm:$0xff]
  %v590 = vld [vmem:[%s5 + $0x190] sm:$0xff]
  %v591 = vld [vmem:[%s5 + $0x198] sm:$0xff]
  %v592 = vld [vmem:[%s5 + $0x1a0] sm:$0xff]
  %v593 = vld [vmem:[%s5 + $0x1a8] sm:$0xff]
  %v594 = vld [vmem:[%s5 + $0x1b0] sm:$0xff]
  %v595 = vld [vmem:[%s5 + $0x1b8] sm:$0xff]
  %v596 = vld [vmem:[%s5 + $0x1c0] sm:$0xff]
  %v597 = vld [vmem:[%s5 + $0x1c8] sm:$0xff]
  %v598 = vld [vmem:[%s5 + $0x1d0] sm:$0xff]
  %v599 = vld [vmem:[%s5 + $0x1d8] sm:$0xff]
  %v600 = vld [vmem:[%s5 + $0x1e0] sm:$0xff]
  %v601 = vld [vmem:[%s5 + $0x1e8] sm:$0xff]
  %v602 = vld [vmem:[%s5 + $0x1f0] sm:$0xff]
  %v603 = vld [vmem:[%s5 + $0x1f8] sm:$0xff]
  %v604 = vadd.f32 %v536, %v538
  %v605 = vrot.slane %v604, 4
  %v606 = vadd.f32 %v604, %v605
  %v607 = vrot.slane %v606, 2
  %v608 = vadd.f32 %v606, %v607
  %v609 = vrot.slane %v608, 1
  %v610 = vadd.f32 %v608, %v609
  %v611 = vadd.f32 %v537, %v539
  %v612 = vrot.slane %v611, 4
  %v613 = vadd.f32 %v611, %v612
  %v614 = vrot.slane %v613, 2
  %v615 = vadd.f32 %v613, %v614
  %v616 = vrot.slane %v615, 1
  %v617 = vadd.f32 %v615, %v616
  %618 = vmatprep.subr.mxu0 %v541
  %619 = vmatpush1.msra.mxu0 %v540
  %620 = vmatprep.subr.mxu0 %v543
  %621 = vmatpush1.msra.mxu0 %v542
  %622 = vmatprep.subr.mxu0 %v545
  %623 = vmatpush1.msra.mxu0 %v544
  %624 = vmatprep.subr.mxu0 %v547
  %625 = vmatpush1.msra.mxu0 %v546
  %626 = vmatprep.subr.mxu0 %v549
  %627 = vmatpush1.msra.mxu0 %v548
  %628 = vmatprep.subr.mxu0 %v551
  %629 = vmatpush1.msra.mxu0 %v550
  %630 = vmatprep.subr.mxu0 %v553
  %631 = vmatpush1.msra.mxu0 %v552
  %632 = vmatprep.subr.mxu0 %v555
  %633 = vmatpush1.msra.mxu0 %v554
  %634 = vmatprep.subr.mxu0 %v557
  %635 = vmatpush1.msra.mxu0 %v556
  %636 = vmatprep.subr.mxu0 %v559
  %637 = vmatpush1.msra.mxu0 %v558
  %638 = vmatprep.subr.mxu0 %v561
  %639 = vmatpush1.msra.mxu0 %v560
  %640 = vmatprep.subr.mxu0 %v563
  %641 = vmatpush1.msra.mxu0 %v562
  %642 = vmatprep.subr.mxu0 %v565
  %643 = vmatpush1.msra.mxu0 %v564
  %644 = vmatprep.subr.mxu0 %v567
  %645 = vmatpush1.msra.mxu0 %v566
  %646 = vmatprep.subr.mxu0 %v569
  %647 = vmatpush1.msra.mxu0 %v568
  %648 = vmatprep.subr.mxu0 %v571
  %649 = vmatpush1.msra.mxu0 %v570
  %650 = vmatprep.subr.mxu0 %v573
  %651 = vmatpush1.msra.mxu0 %v572
  %652 = vmatprep.subr.mxu0 %v575
  %653 = vmatpush1.msra.mxu0 %v574
  %654 = vmatprep.subr.mxu0 %v577
  %655 = vmatpush1.msra.mxu0 %v576
  %656 = vmatprep.subr.mxu0 %v579
  %657 = vmatpush1.msra.mxu0 %v578
  %658 = vmatprep.subr.mxu0 %v581
  %659 = vmatpush1.msra.mxu0 %v580
  %660 = vmatprep.subr.mxu0 %v583
  %661 = vmatpush1.msra.mxu0 %v582
  %662 = vmatprep.subr.mxu0 %v585
  %663 = vmatpush1.msra.mxu0 %v584
  %664 = vmatprep.subr.mxu0 %v587
  %665 = vmatpush1.msra.mxu0 %v586
  %666 = vmatprep.subr.mxu0 %v589
  %667 = vmatpush1.msra.mxu0 %v588
  %668 = vmatprep.subr.mxu0 %v591
  %669 = vmatpush1.msra.mxu0 %v590
  %670 = vmatprep.subr.mxu0 %v593
  %671 = vmatpush1.msra.mxu0 %v592
  %672 = vmatprep.subr.mxu0 %v595
  %673 = vmatpush1.msra.mxu0 %v594
  %674 = vmatprep.subr.mxu0 %v597
  %675 = vmatpush1.msra.mxu0 %v596
  %676 = vmatprep.subr.mxu0 %v599
  %677 = vmatpush1.msra.mxu0 %v598
  %678 = vmatprep.subr.mxu0 %v601
  %679 = vmatpush1.msra.mxu0 %v600
  %680 = vmatprep.subr.mxu0 %v603
  %681 = vmatpush1.msra.mxu0 %v602
  %682 = vmatprep.mubr.f32.mxu0 %v617
  %683 = vmatmul.mubr.f32.gmra.mrb[0].mxu0 %v610
  %v684 = vpop.f32.mrb[0].mxu0
  %v685 = vadd.f32 0.0, %v684
  %v686 = vpop.f32.mrb[0].mxu0
  %v687 = vadd.f32 0.0, %v686
  %688 = vdwg.mxu0
  %v689 = vrcp.pop 128.0
  %v690 = vmul.f32 %v685, %v689
  %v691 = vmul.f32 %v687, %v689
  %v692 = vlaneseq
  %v693 = vshrl.u32 %v692, 7
  %v694 = vsub.s32 0, %v693
  %v695 = vrot.slane %v690, %v694
  %v696 = vlaneseq
  %v697 = vshrl.u32 %v696, 7
  %v698 = vsub.s32 0, %v697
  %v699 = vrot.slane %v691, %v698
  %v700 = vsub.f32 %v536, %v695
  %v701 = vsub.f32 %v537, %v699
  %v702 = vsub.f32 %v538, %v695
  %v703 = vsub.f32 %v539, %v699
  %v704 = vmul.f32 %v700, %v700
  %v705 = vmul.f32 %v701, %v701
  %v706 = vmul.f32 %v702, %v702
  %v707 = vmul.f32 %v703, %v703
  %v708 = vadd.f32 %v704, %v706
  %v709 = vrot.slane %v708, 4
  %v710 = vadd.f32 %v708, %v709
  %v711 = vrot.slane %v710, 2
  %v712 = vadd.f32 %v710, %v711
  %v713 = vrot.slane %v712, 1
  %v714 = vadd.f32 %v712, %v713
  %v715 = vadd.f32 %v705, %v707
  %v716 = vrot.slane %v715, 4
  %v717 = vadd.f32 %v715, %v716
  %v718 = vrot.slane %v717, 2
  %v719 = vadd.f32 %v717, %v718
  %v720 = vrot.slane %v719, 1
  %v721 = vadd.f32 %v719, %v720
  %722 = vmatprep.subr.mxu0 %v541
  %723 = vmatpush1.msra.mxu0 %v540
  %724 = vmatprep.subr.mxu0 %v543
  %725 = vmatpush1.msra.mxu0 %v542
  %726 = vmatprep.subr.mxu0 %v545
  %727 = vmatpush1.msra.mxu0 %v544
  %728 = vmatprep.subr.mxu0 %v547
  %729 = vmatpush1.msra.mxu0 %v546
  %730 = vmatprep.subr.mxu0 %v549
  %731 = vmatpush1.msra.mxu0 %v548
  %732 = vmatprep.subr.mxu0 %v551
  %733 = vmatpush1.msra.mxu0 %v550
  %734 = vmatprep.subr.mxu0 %v553
  %735 = vmatpush1.msra.mxu0 %v552
  %736 = vmatprep.subr.mxu0 %v555
  %737 = vmatpush1.msra.mxu0 %v554
  %738 = vmatprep.subr.mxu0 %v557
  %739 = vmatpush1.msra.mxu0 %v556
  %740 = vmatprep.subr.mxu0 %v559
  %741 = vmatpush1.msra.mxu0 %v558
  %742 = vmatprep.subr.mxu0 %v561
  %743 = vmatpush1.msra.mxu0 %v560
  %744 = vmatprep.subr.mxu0 %v563
  %745 = vmatpush1.msra.mxu0 %v562
  %746 = vmatprep.subr.mxu0 %v565
  %747 = vmatpush1.msra.mxu0 %v564
  %748 = vmatprep.subr.mxu0 %v567
  %749 = vmatpush1.msra.mxu0 %v566
  %750 = vmatprep.subr.mxu0 %v569
  %751 = vmatpush1.msra.mxu0 %v568
  %752 = vmatprep.subr.mxu0 %v571
  %753 = vmatpush1.msra.mxu0 %v570
  %754 = vmatprep.subr.mxu0 %v573
  %755 = vmatpush1.msra.mxu0 %v572
  %756 = vmatprep.subr.mxu0 %v575
  %757 = vmatpush1.msra.mxu0 %v574
  %758 = vmatprep.subr.mxu0 %v577
  %759 = vmatpush1.msra.mxu0 %v576
  %760 = vmatprep.subr.mxu0 %v579
  %761 = vmatpush1.msra.mxu0 %v578
  %762 = vmatprep.subr.mxu0 %v581
  %763 = vmatpush1.msra.mxu0 %v580
  %764 = vmatprep.subr.mxu0 %v583
  %765 = vmatpush1.msra.mxu0 %v582
  %766 = vmatprep.subr.mxu0 %v585
  %767 = vmatpush1.msra.mxu0 %v584
  %768 = vmatprep.subr.mxu0 %v587
  %769 = vmatpush1.msra.mxu0 %v586
  %770 = vmatprep.subr.mxu0 %v589
  %771 = vmatpush1.msra.mxu0 %v588
  %772 = vmatprep.subr.mxu0 %v591
  %773 = vmatpush1.msra.mxu0 %v590
  %774 = vmatprep.subr.mxu0 %v593
  %775 = vmatpush1.msra.mxu0 %v592
  %776 = vmatprep.subr.mxu0 %v595
  %777 = vmatpush1.msra.mxu0 %v594
  %778 = vmatprep.subr.mxu0 %v597
  %779 = vmatpush1.msra.mxu0 %v596
  %780 = vmatprep.subr.mxu0 %v599
  %781 = vmatpush1.msra.mxu0 %v598
  %782 = vmatprep.subr.mxu0 %v601
  %783 = vmatpush1.msra.mxu0 %v600
  %784 = vmatprep.subr.mxu0 %v603
  %785 = vmatpush1.msra.mxu0 %v602
  %786 = vmatprep.mubr.f32.mxu0 %v721
  %787 = vmatmul.mubr.f32.gmra.mrb[0].mxu0 %v714
  %v788 = vpop.f32.mrb[0].mxu0
  %v789 = vadd.f32 0.0, %v788
  %v790 = vpop.f32.mrb[0].mxu0
  %v791 = vadd.f32 0.0, %v790
  %792 = vdwg.mxu0
  %v793 = vmul.f32 %v789, %v689
  %v794 = vmul.f32 %v791, %v689
  %v795 = vadd.f32 %v793, 0.0001
  %v796 = vadd.f32 %v794, 0.0001
  %v797 = vrsqrt.pop %v795
  %v798 = vrsqrt.pop %v796
  %v799 = vlaneseq
  %v800 = vshrl.u32 %v799, 7
  %v801 = vsub.s32 0, %v800
  %v802 = vrot.slane %v797, %v801
  %v803 = vlaneseq
  %v804 = vshrl.u32 %v803, 7
  %v805 = vsub.s32 0, %v804
  %v806 = vrot.slane %v798, %v805
  %v807 = vmul.f32 %v700, %v802
  %v808 = vmul.f32 %v701, %v806
  %v809 = vmul.f32 %v702, %v802
  %v810 = vmul.f32 %v703, %v806
  %vm811 = vcmp.ge.f32.partialorder %v807, 0.0
  %vm812 = vcmp.ge.f32.partialorder %v808, 0.0
  %vm813 = vcmp.ge.f32.partialorder %v809, 0.0
  %vm814 = vcmp.ge.f32.partialorder %v810, 0.0
  %v815 = vmul.f32 %v807, 0.01
  %v816 = vmul.f32 %v808, 0.01
  %v817 = vmul.f32 %v809, 0.01
  %v818 = vmul.f32 %v810, 0.01
  %v819 = vsel %vm811, %v807, %v815
  %v820 = vsel %vm812, %v808, %v816
  %v821 = vsel %vm813, %v809, %v817
  %v822 = vsel %vm814, %v810, %v818
  %823 = vst [vmem:[#allocation3] sm:$0xff] 0.0
  %824 = vst [vmem:[#allocation3 + $0x8] sm:$0xff] 0.0
  %825 = vst [vmem:[#allocation3 + $0x10] sm:$0xff] 0.0
  %826 = vst [vmem:[#allocation3 + $0x18] sm:$0xff] 0.0
  %827 = vst [vmem:[#allocation3 + $0x20] sm:$0xff] 0.0
  %828 = vst [vmem:[#allocation3 + $0x28] sm:$0xff] 0.0
  %829 = vst [vmem:[#allocation3 + $0x30] sm:$0xff] 0.0
  %830 = vst [vmem:[#allocation3 + $0x38] sm:$0xff] 0.0
  %831 = vst [vmem:[#allocation3 + $0x40] sm:$0xf] 0.0
  %832 = vst [vmem:[#allocation3 + $0x48] sm:$0xf] 0.0
  %v835 = vrot.slane %v819, 6
  %v836 = vrot.slane %v820, 6
  %839 = vst [vmem:[#allocation3] sm:$0xc] %v835
  %840 = vst [vmem:[#allocation3 + $0x8] sm:$0xc] %v836
  %v841 = vrot.slane %v819, 4
  %v842 = vrot.slane %v820, 4
  %845 = vst [vmem:[#allocation3] sm:$0x30] %v841
  %846 = vst [vmem:[#allocation3 + $0x8] sm:$0x30] %v842
  %847 = vst [vmem:[#allocation3] sm:$0xc0] %v841
  %848 = vst [vmem:[#allocation3 + $0x8] sm:$0xc0] %v842
  %v849 = vrot.slane %v819, 2
  %v850 = vrot.slane %v820, 2
  %853 = vst [vmem:[#allocation3 + $0x10] sm:$0x3] %v849
  %854 = vst [vmem:[#allocation3 + $0x18] sm:$0x3] %v850
  %855 = vst [vmem:[#allocation3 + $0x10] sm:$0xc] %v849
  %856 = vst [vmem:[#allocation3 + $0x18] sm:$0xc] %v850
  %857 = vst [vmem:[#allocation3 + $0x10] sm:$0x30] %v819
  %858 = vst [vmem:[#allocation3 + $0x18] sm:$0x30] %v820
  %859 = vst [vmem:[#allocation3 + $0x10] sm:$0xc0] %v819
  %860 = vst [vmem:[#allocation3 + $0x18] sm:$0xc0] %v820
  %861 = vst [vmem:[#allocation3 + $0x20] sm:$0x3] %v835
  %862 = vst [vmem:[#allocation3 + $0x28] sm:$0x3] %v836
  %v865 = vrot.slane %v821, 6
  %v866 = vrot.slane %v822, 6
  %869 = vst [vmem:[#allocation3 + $0x20] sm:$0xc] %v865
  %870 = vst [vmem:[#allocation3 + $0x28] sm:$0xc] %v866
  %v871 = vrot.slane %v821, 4
  %v872 = vrot.slane %v822, 4
  %875 = vst [vmem:[#allocation3 + $0x20] sm:$0x30] %v871
  %876 = vst [vmem:[#allocation3 + $0x28] sm:$0x30] %v872
  %877 = vst [vmem:[#allocation3 + $0x20] sm:$0xc0] %v871
  %878 = vst [vmem:[#allocation3 + $0x28] sm:$0xc0] %v872
  %v879 = vrot.slane %v821, 2
  %v880 = vrot.slane %v822, 2
  %883 = vst [vmem:[#allocation3 + $0x30] sm:$0x3] %v879
  %884 = vst [vmem:[#allocation3 + $0x38] sm:$0x3] %v880
  %885 = vst [vmem:[#allocation3 + $0x30] sm:$0xc] %v879
  %886 = vst [vmem:[#allocation3 + $0x38] sm:$0xc] %v880
  %887 = vst [vmem:[#allocation3 + $0x30] sm:$0x30] %v821
  %888 = vst [vmem:[#allocation3 + $0x38] sm:$0x30] %v822
  %889 = vst [vmem:[#allocation3 + $0x30] sm:$0xc0] %v821
  %890 = vst [vmem:[#allocation3 + $0x38] sm:$0xc0] %v822
  %891 = vst [vmem:[#allocation3 + $0x40] sm:$0x3] %v865
  %892 = vst [vmem:[#allocation3 + $0x48] sm:$0x3] %v866
  %v893 = vld [vmem:[#allocation3] sm:$0xff]
  %v894 = vld [vmem:[#allocation3 + $0x8] sm:$0xff]
  %v895 = vld [vmem:[#allocation3 + $0x10] sm:$0xff]
  %v896 = vld [vmem:[#allocation3 + $0x18] sm:$0xff]
  %v897 = vld [vmem:[#allocation3 + $0x20] sm:$0xff]
  %v898 = vld [vmem:[#allocation3 + $0x28] sm:$0xff]
  %v899 = vld [vmem:[#allocation3 + $0x30] sm:$0xf]
  %v900 = vld [vmem:[#allocation3 + $0x38] sm:$0xf]
  %v901 = vpack.c.bf16 %v895, %v893
  %v902 = vpack.c.bf16 %v896, %v894
  %v903 = vpack.c.bf16 %v899, %v897
  %v904 = vpack.c.bf16 %v900, %v898
  %v905 = vld [vmem:[%s3] sm:$0xff]
  %v906 = vld [vmem:[%s3 + $0x8] sm:$0xff]
  %v907 = vld [vmem:[%s3 + $0x10] sm:$0xff]
  %v908 = vld [vmem:[%s3 + $0x18] sm:$0xff]
  %v909 = vld [vmem:[%s3 + $0x20] sm:$0xff]
  %v910 = vld [vmem:[%s3 + $0x28] sm:$0xff]
  %v911 = vld [vmem:[%s3 + $0x30] sm:$0xff]
  %v912 = vld [vmem:[%s3 + $0x38] sm:$0xff]
  %v913 = vld [vmem:[%s3 + $0x40] sm:$0xff]
  %v914 = vld [vmem:[%s3 + $0x48] sm:$0xff]
  %v915 = vld [vmem:[%s3 + $0x50] sm:$0xff]
  %v916 = vld [vmem:[%s3 + $0x58] sm:$0xff]
  %v917 = vld [vmem:[%s3 + $0x60] sm:$0xff]
  %v918 = vld [vmem:[%s3 + $0x68] sm:$0xff]
  %v919 = vld [vmem:[%s3 + $0x70] sm:$0xff]
  %v920 = vld [vmem:[%s3 + $0x78] sm:$0xff]
  %v921 = vld [vmem:[%s3 + $0x80] sm:$0xff]
  %v922 = vld [vmem:[%s3 + $0x88] sm:$0xff]
  %v923 = vld [vmem:[%s3 + $0x90] sm:$0xff]
  %v924 = vld [vmem:[%s3 + $0x98] sm:$0xff]
  %v925 = vld [vmem:[%s3 + $0xa0] sm:$0xff]
  %v926 = vld [vmem:[%s3 + $0xa8] sm:$0xff]
  %v927 = vld [vmem:[%s3 + $0xb0] sm:$0xff]
  %v928 = vld [vmem:[%s3 + $0xb8] sm:$0xff]
  %v929 = vld [vmem:[%s3 + $0xc0] sm:$0xff]
  %v930 = vld [vmem:[%s3 + $0xc8] sm:$0xff]
  %v931 = vld [vmem:[%s3 + $0xd0] sm:$0xff]
  %v932 = vld [vmem:[%s3 + $0xd8] sm:$0xff]
  %v933 = vld [vmem:[%s3 + $0xe0] sm:$0xff]
  %v934 = vld [vmem:[%s3 + $0xe8] sm:$0xff]
  %v935 = vld [vmem:[%s3 + $0xf0] sm:$0xff]
  %v936 = vld [vmem:[%s3 + $0xf8] sm:$0xff]
  %v937 = vld [vmem:[#allocation3] sm:$0xfc]
  %v938 = vld [vmem:[#allocation3 + $0x8] sm:$0xfc]
  %v939 = vld [vmem:[#allocation3 + $0x30] sm:$0x3f]
  %v940 = vld [vmem:[#allocation3 + $0x38] sm:$0x3f]
  %v941 = vpack.c.bf16 %v895, %v937
  %v942 = vpack.c.bf16 %v896, %v938
  %v943 = vpack.c.bf16 %v939, %v897
  %v944 = vpack.c.bf16 %v940, %v898
  %s945 = scalar_lea.vmem %s3, 256
  %v946 = vld [vmem:[%s945] sm:$0xff]
  %v947 = vld [vmem:[%s945 + $0x8] sm:$0xff]
  %v948 = vld [vmem:[%s945 + $0x10] sm:$0xff]
  %v949 = vld [vmem:[%s945 + $0x18] sm:$0xff]
  %v950 = vld [vmem:[%s945 + $0x20] sm:$0xff]
  %v951 = vld [vmem:[%s945 + $0x28] sm:$0xff]
  %v952 = vld [vmem:[%s945 + $0x30] sm:$0xff]
  %v953 = vld [vmem:[%s945 + $0x38] sm:$0xff]
  %v954 = vld [vmem:[%s945 + $0x40] sm:$0xff]
  %v955 = vld [vmem:[%s945 + $0x48] sm:$0xff]
  %v956 = vld [vmem:[%s945 + $0x50] sm:$0xff]
  %v957 = vld [vmem:[%s945 + $0x58] sm:$0xff]
  %v958 = vld [vmem:[%s945 + $0x60] sm:$0xff]
  %v959 = vld [vmem:[%s945 + $0x68] sm:$0xff]
  %v960 = vld [vmem:[%s945 + $0x70] sm:$0xff]
  %v961 = vld [vmem:[%s945 + $0x78] sm:$0xff]
  %v962 = vld [vmem:[%s945 + $0x80] sm:$0xff]
  %v963 = vld [vmem:[%s945 + $0x88] sm:$0xff]
  %v964 = vld [vmem:[%s945 + $0x90] sm:$0xff]
  %v965 = vld [vmem:[%s945 + $0x98] sm:$0xff]
  %v966 = vld [vmem:[%s945 + $0xa0] sm:$0xff]
  %v967 = vld [vmem:[%s945 + $0xa8] sm:$0xff]
  %v968 = vld [vmem:[%s945 + $0xb0] sm:$0xff]
  %v969 = vld [vmem:[%s945 + $0xb8] sm:$0xff]
  %v970 = vld [vmem:[%s945 + $0xc0] sm:$0xff]
  %v971 = vld [vmem:[%s945 + $0xc8] sm:$0xff]
  %v972 = vld [vmem:[%s945 + $0xd0] sm:$0xff]
  %v973 = vld [vmem:[%s945 + $0xd8] sm:$0xff]
  %v974 = vld [vmem:[%s945 + $0xe0] sm:$0xff]
  %v975 = vld [vmem:[%s945 + $0xe8] sm:$0xff]
  %v976 = vld [vmem:[%s945 + $0xf0] sm:$0xff]
  %v977 = vld [vmem:[%s945 + $0xf8] sm:$0xff]
  %vm982 = vcmask 1046528
  %v983 = vrot.slane %v941, 1
  %v984 = vrot.slane %v943, 1
  %v985 = vsel %vm982, %v983, %v984
  %v986 = vrot.slane %v942, 1
  %v987 = vrot.slane %v944, 1
  %v988 = vsel %vm982, %v986, %v987
  %v1025 = vunpack.c.l.b16 %v946
  %v1026 = vunpack.c.h.b16 %v946
  %v1027 = vunpack.c.l.b16 %v947
  %v1028 = vunpack.c.h.b16 %v947
  %v1029 = vunpack.c.l.b16 %v948
  %v1030 = vunpack.c.h.b16 %v948
  %v1031 = vunpack.c.l.b16 %v949
  %v1032 = vunpack.c.h.b16 %v949
  %v1033 = vunpack.c.l.b16 %v950
  %v1034 = vunpack.c.h.b16 %v950
  %v1035 = vunpack.c.l.b16 %v951
  %v1036 = vunpack.c.h.b16 %v951
  %v1037 = vunpack.c.l.b16 %v952
  %v1038 = vunpack.c.h.b16 %v952
  %v1039 = vunpack.c.l.b16 %v953
  %v1040 = vunpack.c.h.b16 %v953
  %v1041 = vunpack.c.l.b16 %v954
  %v1042 = vunpack.c.h.b16 %v954
  %v1043 = vunpack.c.l.b16 %v955
  %v1044 = vunpack.c.h.b16 %v955
  %v1045 = vunpack.c.l.b16 %v956
  %v1046 = vunpack.c.h.b16 %v956
  %v1047 = vunpack.c.l.b16 %v957
  %v1048 = vunpack.c.h.b16 %v957
  %v1049 = vunpack.c.l.b16 %v958
  %v1050 = vunpack.c.h.b16 %v958
  %v1051 = vunpack.c.l.b16 %v959
  %v1052 = vunpack.c.h.b16 %v959
  %v1053 = vunpack.c.l.b16 %v960
  %v1054 = vunpack.c.h.b16 %v960
  %v1055 = vunpack.c.l.b16 %v961
  %v1056 = vunpack.c.h.b16 %v961
  %v1057 = vunpack.c.l.b16 %v962
  %v1058 = vunpack.c.h.b16 %v962
  %v1059 = vunpack.c.l.b16 %v963
  %v1060 = vunpack.c.h.b16 %v963
  %v1061 = vunpack.c.l.b16 %v964
  %v1062 = vunpack.c.h.b16 %v964
  %v1063 = vunpack.c.l.b16 %v965
  %v1064 = vunpack.c.h.b16 %v965
  %v1065 = vunpack.c.l.b16 %v966
  %v1066 = vunpack.c.h.b16 %v966
  %v1067 = vunpack.c.l.b16 %v967
  %v1068 = vunpack.c.h.b16 %v967
  %v1069 = vunpack.c.l.b16 %v968
  %v1070 = vunpack.c.h.b16 %v968
  %v1071 = vunpack.c.l.b16 %v969
  %v1072 = vunpack.c.h.b16 %v969
  %v1073 = vunpack.c.l.b16 %v970
  %v1074 = vunpack.c.h.b16 %v970
  %v1075 = vunpack.c.l.b16 %v971
  %v1076 = vunpack.c.h.b16 %v971
  %v1077 = vunpack.c.l.b16 %v972
  %v1078 = vunpack.c.h.b16 %v972
  %v1079 = vunpack.c.l.b16 %v973
  %v1080 = vunpack.c.h.b16 %v973
  %v1081 = vunpack.c.l.b16 %v974
  %v1082 = vunpack.c.h.b16 %v974
  %v1083 = vunpack.c.l.b16 %v975
  %v1084 = vunpack.c.h.b16 %v975
  %v1085 = vunpack.c.l.b16 %v976
  %v1086 = vunpack.c.h.b16 %v976
  %v1087 = vunpack.c.l.b16 %v977
  %v1088 = vunpack.c.h.b16 %v977
  %v1089 = vpack.c.b16 %v1027, %v1025
  %v1090 = vpack.c.b16 %v1028, %v1026
  %v1091 = vpack.c.b16 %v1031, %v1029
  %v1092 = vpack.c.b16 %v1032, %v1030
  %v1093 = vpack.c.b16 %v1035, %v1033
  %v1094 = vpack.c.b16 %v1036, %v1034
  %v1095 = vpack.c.b16 %v1039, %v1037
  %v1096 = vpack.c.b16 %v1040, %v1038
  %v1097 = vpack.c.b16 %v1043, %v1041
  %v1098 = vpack.c.b16 %v1044, %v1042
  %v1099 = vpack.c.b16 %v1047, %v1045
  %v1100 = vpack.c.b16 %v1048, %v1046
  %v1101 = vpack.c.b16 %v1051, %v1049
  %v1102 = vpack.c.b16 %v1052, %v1050
  %v1103 = vpack.c.b16 %v1055, %v1053
  %v1104 = vpack.c.b16 %v1056, %v1054
  %v1105 = vpack.c.b16 %v1059, %v1057
  %v1106 = vpack.c.b16 %v1060, %v1058
  %v1107 = vpack.c.b16 %v1063, %v1061
  %v1108 = vpack.c.b16 %v1064, %v1062
  %v1109 = vpack.c.b16 %v1067, %v1065
  %v1110 = vpack.c.b16 %v1068, %v1066
  %v1111 = vpack.c.b16 %v1071, %v1069
  %v1112 = vpack.c.b16 %v1072, %v1070
  %v1113 = vpack.c.b16 %v1075, %v1073
  %v1114 = vpack.c.b16 %v1076, %v1074
  %v1115 = vpack.c.b16 %v1079, %v1077
  %v1116 = vpack.c.b16 %v1080, %v1078
  %v1117 = vpack.c.b16 %v1083, %v1081
  %v1118 = vpack.c.b16 %v1084, %v1082
  %v1119 = vpack.c.b16 %v1087, %v1085
  %v1120 = vpack.c.b16 %v1088, %v1086
  %1153 = vmatprep.subr.bf16.mxu0 %v1090
  %1154 = vmatpush1.bf16.msra.mxu0 %v1089
  %1155 = vmatprep.subr.bf16.mxu0 %v1092
  %1156 = vmatpush1.bf16.msra.mxu0 %v1091
  %1157 = vmatprep.subr.bf16.mxu0 %v1094
  %1158 = vmatpush1.bf16.msra.mxu0 %v1093
  %1159 = vmatprep.subr.bf16.mxu0 %v1096
  %1160 = vmatpush1.bf16.msra.mxu0 %v1095
  %1161 = vmatprep.subr.bf16.mxu0 %v1098
  %1162 = vmatpush1.bf16.msra.mxu0 %v1097
  %1163 = vmatprep.subr.bf16.mxu0 %v1100
  %1164 = vmatpush1.bf16.msra.mxu0 %v1099
  %1165 = vmatprep.subr.bf16.mxu0 %v1102
  %1166 = vmatpush1.bf16.msra.mxu0 %v1101
  %1167 = vmatprep.subr.bf16.mxu0 %v1104
  %1168 = vmatpush1.bf16.msra.mxu0 %v1103
  %1169 = vmatprep.subr.bf16.mxu0 %v1106
  %1170 = vmatpush1.bf16.msra.mxu0 %v1105
  %1171 = vmatprep.subr.bf16.mxu0 %v1108
  %1172 = vmatpush1.bf16.msra.mxu0 %v1107
  %1173 = vmatprep.subr.bf16.mxu0 %v1110
  %1174 = vmatpush1.bf16.msra.mxu0 %v1109
  %1175 = vmatprep.subr.bf16.mxu0 %v1112
  %1176 = vmatpush1.bf16.msra.mxu0 %v1111
  %1177 = vmatprep.subr.bf16.mxu0 %v1114
  %1178 = vmatpush1.bf16.msra.mxu0 %v1113
  %1179 = vmatprep.subr.bf16.mxu0 %v1116
  %1180 = vmatpush1.bf16.msra.mxu0 %v1115
  %1181 = vmatprep.subr.bf16.mxu0 %v1118
  %1182 = vmatpush1.bf16.msra.mxu0 %v1117
  %1183 = vmatprep.subr.bf16.mxu0 %v1120
  %1184 = vmatpush1.bf16.msra.mxu0 %v1119
  %1185 = vmatprep.mubr.bf16.mxu0 %v988
  %1186 = vmatmul.mubr.bf16.gmra.mrb[0].mxu0 %v985
  %v1187 = vpop.f32.mrb[0].mxu0
  %v1188 = vadd.f32 0.0, %v1187
  %v1189 = vpop.f32.mrb[0].mxu0
  %v1190 = vadd.f32 0.0, %v1189
  %v1191 = vpop.f32.mrb[0].mxu0
  %v1192 = vadd.f32 0.0, %v1191
  %v1193 = vpop.f32.mrb[0].mxu0
  %v1194 = vadd.f32 0.0, %v1193
  %1195 = vmatprep.mubr.bf16.mxu0 %v987
  %1196 = vmatmul.mubr.bf16.gmra.mrb[0].mxu0 %v984
  %v1197 = vpop.f32.mrb[0].mxu0
  %v1198 = vadd.f32 0.0, %v1197
  %v1199 = vpop.f32.mrb[0].mxu0
  %v1200 = vadd.f32 0.0, %v1199
  %v1201 = vpop.f32.mrb[0].mxu0
  %v1202 = vadd.f32 0.0, %v1201
  %v1203 = vpop.f32.mrb[0].mxu0
  %v1204 = vadd.f32 0.0, %v1203
  %1205 = vdwg.mxu0
  %v1238 = vunpack.c.l.b16 %v905
  %v1239 = vunpack.c.h.b16 %v905
  %v1240 = vunpack.c.l.b16 %v906
  %v1241 = vunpack.c.h.b16 %v906
  %v1242 = vunpack.c.l.b16 %v907
  %v1243 = vunpack.c.h.b16 %v907
  %v1244 = vunpack.c.l.b16 %v908
  %v1245 = vunpack.c.h.b16 %v908
  %v1246 = vunpack.c.l.b16 %v909
  %v1247 = vunpack.c.h.b16 %v909
  %v1248 = vunpack.c.l.b16 %v910
  %v1249 = vunpack.c.h.b16 %v910
  %v1250 = vunpack.c.l.b16 %v911
  %v1251 = vunpack.c.h.b16 %v911
  %v1252 = vunpack.c.l.b16 %v912
  %v1253 = vunpack.c.h.b16 %v912
  %v1254 = vunpack.c.l.b16 %v913
  %v1255 = vunpack.c.h.b16 %v913
  %v1256 = vunpack.c.l.b16 %v914
  %v1257 = vunpack.c.h.b16 %v914
  %v1258 = vunpack.c.l.b16 %v915
  %v1259 = vunpack.c.h.b16 %v915
  %v1260 = vunpack.c.l.b16 %v916
  %v1261 = vunpack.c.h.b16 %v916
  %v1262 = vunpack.c.l.b16 %v917
  %v1263 = vunpack.c.h.b16 %v917
  %v1264 = vunpack.c.l.b16 %v918
  %v1265 = vunpack.c.h.b16 %v918
  %v1266 = vunpack.c.l.b16 %v919
  %v1267 = vunpack.c.h.b16 %v919
  %v1268 = vunpack.c.l.b16 %v920
  %v1269 = vunpack.c.h.b16 %v920
  %v1270 = vunpack.c.l.b16 %v921
  %v1271 = vunpack.c.h.b16 %v921
  %v1272 = vunpack.c.l.b16 %v922
  %v1273 = vunpack.c.h.b16 %v922
  %v1274 = vunpack.c.l.b16 %v923
  %v1275 = vunpack.c.h.b16 %v923
  %v1276 = vunpack.c.l.b16 %v924
  %v1277 = vunpack.c.h.b16 %v924
  %v1278 = vunpack.c.l.b16 %v925
  %v1279 = vunpack.c.h.b16 %v925
  %v1280 = vunpack.c.l.b16 %v926
  %v1281 = vunpack.c.h.b16 %v926
  %v1282 = vunpack.c.l.b16 %v927
  %v1283 = vunpack.c.h.b16 %v927
  %v1284 = vunpack.c.l.b16 %v928
  %v1285 = vunpack.c.h.b16 %v928
  %v1286 = vunpack.c.l.b16 %v929
  %v1287 = vunpack.c.h.b16 %v929
  %v1288 = vunpack.c.l.b16 %v930
  %v1289 = vunpack.c.h.b16 %v930
  %v1290 = vunpack.c.l.b16 %v931
  %v1291 = vunpack.c.h.b16 %v931
  %v1292 = vunpack.c.l.b16 %v932
  %v1293 = vunpack.c.h.b16 %v932
  %v1294 = vunpack.c.l.b16 %v933
  %v1295 = vunpack.c.h.b16 %v933
  %v1296 = vunpack.c.l.b16 %v934
  %v1297 = vunpack.c.h.b16 %v934
  %v1298 = vunpack.c.l.b16 %v935
  %v1299 = vunpack.c.h.b16 %v935
  %v1300 = vunpack.c.l.b16 %v936
  %v1301 = vunpack.c.h.b16 %v936
  %v1302 = vpack.c.b16 %v1240, %v1238
  %v1303 = vpack.c.b16 %v1241, %v1239
  %v1304 = vpack.c.b16 %v1244, %v1242
  %v1305 = vpack.c.b16 %v1245, %v1243
  %v1306 = vpack.c.b16 %v1248, %v1246
  %v1307 = vpack.c.b16 %v1249, %v1247
  %v1308 = vpack.c.b16 %v1252, %v1250
  %v1309 = vpack.c.b16 %v1253, %v1251
  %v1310 = vpack.c.b16 %v1256, %v1254
  %v1311 = vpack.c.b16 %v1257, %v1255
  %v1312 = vpack.c.b16 %v1260, %v1258
  %v1313 = vpack.c.b16 %v1261, %v1259
  %v1314 = vpack.c.b16 %v1264, %v1262
  %v1315 = vpack.c.b16 %v1265, %v1263
  %v1316 = vpack.c.b16 %v1268, %v1266
  %v1317 = vpack.c.b16 %v1269, %v1267
  %v1318 = vpack.c.b16 %v1272, %v1270
  %v1319 = vpack.c.b16 %v1273, %v1271
  %v1320 = vpack.c.b16 %v1276, %v1274
  %v1321 = vpack.c.b16 %v1277, %v1275
  %v1322 = vpack.c.b16 %v1280, %v1278
  %v1323 = vpack.c.b16 %v1281, %v1279
  %v1324 = vpack.c.b16 %v1284, %v1282
  %v1325 = vpack.c.b16 %v1285, %v1283
  %v1326 = vpack.c.b16 %v1288, %v1286
  %v1327 = vpack.c.b16 %v1289, %v1287
  %v1328 = vpack.c.b16 %v1292, %v1290
  %v1329 = vpack.c.b16 %v1293, %v1291
  %v1330 = vpack.c.b16 %v1296, %v1294
  %v1331 = vpack.c.b16 %v1297, %v1295
  %v1332 = vpack.c.b16 %v1300, %v1298
  %v1333 = vpack.c.b16 %v1301, %v1299
  %1366 = vmatprep.subr.bf16.mxu0 %v1303
  %1367 = vmatpush1.bf16.msra.mxu0 %v1302
  %1368 = vmatprep.subr.bf16.mxu0 %v1305
  %1369 = vmatpush1.bf16.msra.mxu0 %v1304
  %1370 = vmatprep.subr.bf16.mxu0 %v1307
  %1371 = vmatpush1.bf16.msra.mxu0 %v1306
  %1372 = vmatprep.subr.bf16.mxu0 %v1309
  %1373 = vmatpush1.bf16.msra.mxu0 %v1308
  %1374 = vmatprep.subr.bf16.mxu0 %v1311
  %1375 = vmatpush1.bf16.msra.mxu0 %v1310
  %1376 = vmatprep.subr.bf16.mxu0 %v1313
  %1377 = vmatpush1.bf16.msra.mxu0 %v1312
  %1378 = vmatprep.subr.bf16.mxu0 %v1315
  %1379 = vmatpush1.bf16.msra.mxu0 %v1314
  %1380 = vmatprep.subr.bf16.mxu0 %v1317
  %1381 = vmatpush1.bf16.msra.mxu0 %v1316
  %1382 = vmatprep.subr.bf16.mxu0 %v1319
  %1383 = vmatpush1.bf16.msra.mxu0 %v1318
  %1384 = vmatprep.subr.bf16.mxu0 %v1321
  %1385 = vmatpush1.bf16.msra.mxu0 %v1320
  %1386 = vmatprep.subr.bf16.mxu0 %v1323
  %1387 = vmatpush1.bf16.msra.mxu0 %v1322
  %1388 = vmatprep.subr.bf16.mxu0 %v1325
  %1389 = vmatpush1.bf16.msra.mxu0 %v1324
  %1390 = vmatprep.subr.bf16.mxu0 %v1327
  %1391 = vmatpush1.bf16.msra.mxu0 %v1326
  %1392 = vmatprep.subr.bf16.mxu0 %v1329
  %1393 = vmatpush1.bf16.msra.mxu0 %v1328
  %1394 = vmatprep.subr.bf16.mxu0 %v1331
  %1395 = vmatpush1.bf16.msra.mxu0 %v1330
  %1396 = vmatprep.subr.bf16.mxu0 %v1333
  %1397 = vmatpush1.bf16.msra.mxu0 %v1332
  %1398 = vmatprep.mubr.bf16.mxu0 %v902
  %1399 = vmatmul.mubr.bf16.gmra.mrb[0].mxu0 %v901
  %v1400 = vpop.f32.mrb[0].mxu0
  %v1401 = vadd.f32 %v1188, %v1400
  %v1402 = vpop.f32.mrb[0].mxu0
  %v1403 = vadd.f32 %v1190, %v1402
  %v1404 = vpop.f32.mrb[0].mxu0
  %v1405 = vadd.f32 %v1192, %v1404
  %v1406 = vpop.f32.mrb[0].mxu0
  %v1407 = vadd.f32 %v1194, %v1406
  %1408 = vmatprep.mubr.bf16.mxu0 %v904
  %1409 = vmatmul.mubr.bf16.gmra.mrb[0].mxu0 %v903
  %v1410 = vpop.f32.mrb[0].mxu0
  %v1411 = vadd.f32 %v1198, %v1410
  %v1412 = vpop.f32.mrb[0].mxu0
  %v1413 = vadd.f32 %v1200, %v1412
  %v1414 = vpop.f32.mrb[0].mxu0
  %v1415 = vadd.f32 %v1202, %v1414
  %v1416 = vpop.f32.mrb[0].mxu0
  %v1417 = vadd.f32 %v1204, %v1416
  %1418 = vdwg.mxu0
  %v1419 = vld [vmem:[#allocation3] sm:$0xf0]
  %v1420 = vld [vmem:[#allocation3 + $0x8] sm:$0xf0]
  %v1421 = vld [vmem:[#allocation3 + $0x30] sm:$0xff]
  %v1422 = vld [vmem:[#allocation3 + $0x38] sm:$0xff]
  %v1423 = vpack.c.bf16 %v895, %v1419
  %v1424 = vpack.c.bf16 %v896, %v1420
  %v1425 = vpack.c.bf16 %v1421, %v897
  %v1426 = vpack.c.bf16 %v1422, %v898
  %s1427 = scalar_lea.vmem %s3, 512
  %v1428 = vld [vmem:[%s1427] sm:$0xff]
  %v1429 = vld [vmem:[%s1427 + $0x8] sm:$0xff]
  %v1430 = vld [vmem:[%s1427 + $0x10] sm:$0xff]
  %v1431 = vld [vmem:[%s1427 + $0x18] sm:$0xff]
  %v1432 = vld [vmem:[%s1427 + $0x20] sm:$0xff]
  %v1433 = vld [vmem:[%s1427 + $0x28] sm:$0xff]
  %v1434 = vld [vmem:[%s1427 + $0x30] sm:$0xff]
  %v1435 = vld [vmem:[%s1427 + $0x38] sm:$0xff]
  %v1436 = vld [vmem:[%s1427 + $0x40] sm:$0xff]
  %v1437 = vld [vmem:[%s1427 + $0x48] sm:$0xff]
  %v1438 = vld [vmem:[%s1427 + $0x50] sm:$0xff]
  %v1439 = vld [vmem:[%s1427 + $0x58] sm:$0xff]
  %v1440 = vld [vmem:[%s1427 + $0x60] sm:$0xff]
  %v1441 = vld [vmem:[%s1427 + $0x68] sm:$0xff]
  %v1442 = vld [vmem:[%s1427 + $0x70] sm:$0xff]
  %v1443 = vld [vmem:[%s1427 + $0x78] sm:$0xff]
  %v1444 = vld [vmem:[%s1427 + $0x80] sm:$0xff]
  %v1445 = vld [vmem:[%s1427 + $0x88] sm:$0xff]
  %v1446 = vld [vmem:[%s1427 + $0x90] sm:$0xff]
  %v1447 = vld [vmem:[%s1427 + $0x98] sm:$0xff]
  %v1448 = vld [vmem:[%s1427 + $0xa0] sm:$0xff]
  %v1449 = vld [vmem:[%s1427 + $0xa8] sm:$0xff]
  %v1450 = vld [vmem:[%s1427 + $0xb0] sm:$0xff]
  %v1451 = vld [vmem:[%s1427 + $0xb8] sm:$0xff]
  %v1452 = vld [vmem:[%s1427 + $0xc0] sm:$0xff]
  %v1453 = vld [vmem:[%s1427 + $0xc8] sm:$0xff]
  %v1454 = vld [vmem:[%s1427 + $0xd0] sm:$0xff]
  %v1455 = vld [vmem:[%s1427 + $0xd8] sm:$0xff]
  %v1456 = vld [vmem:[%s1427 + $0xe0] sm:$0xff]
  %v1457 = vld [vmem:[%s1427 + $0xe8] sm:$0xff]
  %v1458 = vld [vmem:[%s1427 + $0xf0] sm:$0xff]
  %v1459 = vld [vmem:[%s1427 + $0xf8] sm:$0xff]
  %vm1464 = vcmask 1045504
  %v1465 = vrot.slane %v1423, 2
  %v1466 = vrot.slane %v1425, 2
  %v1467 = vsel %vm1464, %v1465, %v1466
  %v1468 = vrot.slane %v1424, 2
  %v1469 = vrot.slane %v1426, 2
  %v1470 = vsel %vm1464, %v1468, %v1469
  %v1507 = vunpack.c.l.b16 %v1428
  %v1508 = vunpack.c.h.b16 %v1428
  %v1509 = vunpack.c.l.b16 %v1429
  %v1510 = vunpack.c.h.b16 %v1429
  %v1511 = vunpack.c.l.b16 %v1430
  %v1512 = vunpack.c.h.b16 %v1430
  %v1513 = vunpack.c.l.b16 %v1431
  %v1514 = vunpack.c.h.b16 %v1431
  %v1515 = vunpack.c.l.b16 %v1432
  %v1516 = vunpack.c.h.b16 %v1432
  %v1517 = vunpack.c.l.b16 %v1433
  %v1518 = vunpack.c.h.b16 %v1433
  %v1519 = vunpack.c.l.b16 %v1434
  %v1520 = vunpack.c.h.b16 %v1434
  %v1521 = vunpack.c.l.b16 %v1435
  %v1522 = vunpack.c.h.b16 %v1435
  %v1523 = vunpack.c.l.b16 %v1436
  %v1524 = vunpack.c.h.b16 %v1436
  %v1525 = vunpack.c.l.b16 %v1437
  %v1526 = vunpack.c.h.b16 %v1437
  %v1527 = vunpack.c.l.b16 %v1438
  %v1528 = vunpack.c.h.b16 %v1438
  %v1529 = vunpack.c.l.b16 %v1439
  %v1530 = vunpack.c.h.b16 %v1439
  %v1531 = vunpack.c.l.b16 %v1440
  %v1532 = vunpack.c.h.b16 %v1440
  %v1533 = vunpack.c.l.b16 %v1441
  %v1534 = vunpack.c.h.b16 %v1441
  %v1535 = vunpack.c.l.b16 %v1442
  %v1536 = vunpack.c.h.b16 %v1442
  %v1537 = vunpack.c.l.b16 %v1443
  %v1538 = vunpack.c.h.b16 %v1443
  %v1539 = vunpack.c.l.b16 %v1444
  %v1540 = vunpack.c.h.b16 %v1444
  %v1541 = vunpack.c.l.b16 %v1445
  %v1542 = vunpack.c.h.b16 %v1445
  %v1543 = vunpack.c.l.b16 %v1446
  %v1544 = vunpack.c.h.b16 %v1446
  %v1545 = vunpack.c.l.b16 %v1447
  %v1546 = vunpack.c.h.b16 %v1447
  %v1547 = vunpack.c.l.b16 %v1448
  %v1548 = vunpack.c.h.b16 %v1448
  %v1549 = vunpack.c.l.b16 %v1449
  %v1550 = vunpack.c.h.b16 %v1449
  %v1551 = vunpack.c.l.b16 %v1450
  %v1552 = vunpack.c.h.b16 %v1450
  %v1553 = vunpack.c.l.b16 %v1451
  %v1554 = vunpack.c.h.b16 %v1451
  %v1555 = vunpack.c.l.b16 %v1452
  %v1556 = vunpack.c.h.b16 %v1452
  %v1557 = vunpack.c.l.b16 %v1453
  %v1558 = vunpack.c.h.b16 %v1453
  %v1559 = vunpack.c.l.b16 %v1454
  %v1560 = vunpack.c.h.b16 %v1454
  %v1561 = vunpack.c.l.b16 %v1455
  %v1562 = vunpack.c.h.b16 %v1455
  %v1563 = vunpack.c.l.b16 %v1456
  %v1564 = vunpack.c.h.b16 %v1456
  %v1565 = vunpack.c.l.b16 %v1457
  %v1566 = vunpack.c.h.b16 %v1457
  %v1567 = vunpack.c.l.b16 %v1458
  %v1568 = vunpack.c.h.b16 %v1458
  %v1569 = vunpack.c.l.b16 %v1459
  %v1570 = vunpack.c.h.b16 %v1459
  %v1571 = vpack.c.b16 %v1509, %v1507
  %v1572 = vpack.c.b16 %v1510, %v1508
  %v1573 = vpack.c.b16 %v1513, %v1511
  %v1574 = vpack.c.b16 %v1514, %v1512
  %v1575 = vpack.c.b16 %v1517, %v1515
  %v1576 = vpack.c.b16 %v1518, %v1516
  %v1577 = vpack.c.b16 %v1521, %v1519
  %v1578 = vpack.c.b16 %v1522, %v1520
  %v1579 = vpack.c.b16 %v1525, %v1523
  %v1580 = vpack.c.b16 %v1526, %v1524
  %v1581 = vpack.c.b16 %v1529, %v1527
  %v1582 = vpack.c.b16 %v1530, %v1528
  %v1583 = vpack.c.b16 %v1533, %v1531
  %v1584 = vpack.c.b16 %v1534, %v1532
  %v1585 = vpack.c.b16 %v1537, %v1535
  %v1586 = vpack.c.b16 %v1538, %v1536
  %v1587 = vpack.c.b16 %v1541, %v1539
  %v1588 = vpack.c.b16 %v1542, %v1540
  %v1589 = vpack.c.b16 %v1545, %v1543
  %v1590 = vpack.c.b16 %v1546, %v1544
  %v1591 = vpack.c.b16 %v1549, %v1547
  %v1592 = vpack.c.b16 %v1550, %v1548
  %v1593 = vpack.c.b16 %v1553, %v1551
  %v1594 = vpack.c.b16 %v1554, %v1552
  %v1595 = vpack.c.b16 %v1557, %v1555
  %v1596 = vpack.c.b16 %v1558, %v1556
  %v1597 = vpack.c.b16 %v1561, %v1559
  %v1598 = vpack.c.b16 %v1562, %v1560
  %v1599 = vpack.c.b16 %v1565, %v1563
  %v1600 = vpack.c.b16 %v1566, %v1564
  %v1601 = vpack.c.b16 %v1569, %v1567
  %v1602 = vpack.c.b16 %v1570, %v1568
  %1635 = vmatprep.subr.bf16.mxu0 %v1572
  %1636 = vmatpush1.bf16.msra.mxu0 %v1571
  %1637 = vmatprep.subr.bf16.mxu0 %v1574
  %1638 = vmatpush1.bf16.msra.mxu0 %v1573
  %1639 = vmatprep.subr.bf16.mxu0 %v1576
  %1640 = vmatpush1.bf16.msra.mxu0 %v1575
  %1641 = vmatprep.subr.bf16.mxu0 %v1578
  %1642 = vmatpush1.bf16.msra.mxu0 %v1577
  %1643 = vmatprep.subr.bf16.mxu0 %v1580
  %1644 = vmatpush1.bf16.msra.mxu0 %v1579
  %1645 = vmatprep.subr.bf16.mxu0 %v1582
  %1646 = vmatpush1.bf16.msra.mxu0 %v1581
  %1647 = vmatprep.subr.bf16.mxu0 %v1584
  %1648 = vmatpush1.bf16.msra.mxu0 %v1583
  %1649 = vmatprep.subr.bf16.mxu0 %v1586
  %1650 = vmatpush1.bf16.msra.mxu0 %v1585
  %1651 = vmatprep.subr.bf16.mxu0 %v1588
  %1652 = vmatpush1.bf16.msra.mxu0 %v1587
  %1653 = vmatprep.subr.bf16.mxu0 %v1590
  %1654 = vmatpush1.bf16.msra.mxu0 %v1589
  %1655 = vmatprep.subr.bf16.mxu0 %v1592
  %1656 = vmatpush1.bf16.msra.mxu0 %v1591
  %1657 = vmatprep.subr.bf16.mxu0 %v1594
  %1658 = vmatpush1.bf16.msra.mxu0 %v1593
  %1659 = vmatprep.subr.bf16.mxu0 %v1596
  %1660 = vmatpush1.bf16.msra.mxu0 %v1595
  %1661 = vmatprep.subr.bf16.mxu0 %v1598
  %1662 = vmatpush1.bf16.msra.mxu0 %v1597
  %1663 = vmatprep.subr.bf16.mxu0 %v1600
  %1664 = vmatpush1.bf16.msra.mxu0 %v1599
  %1665 = vmatprep.subr.bf16.mxu0 %v1602
  %1666 = vmatpush1.bf16.msra.mxu0 %v1601
  %1667 = vmatprep.mubr.bf16.mxu0 %v1470
  %1668 = vmatmul.mubr.bf16.gmra.mrb[0].mxu0 %v1467
  %v1669 = vpop.f32.mrb[0].mxu0
  %v1670 = vadd.f32 0.0, %v1669
  %v1671 = vpop.f32.mrb[0].mxu0
  %v1672 = vadd.f32 0.0, %v1671
  %v1673 = vpop.f32.mrb[0].mxu0
  %v1674 = vadd.f32 0.0, %v1673
  %v1675 = vpop.f32.mrb[0].mxu0
  %v1676 = vadd.f32 0.0, %v1675
  %1677 = vmatprep.mubr.bf16.mxu0 %v1469
  %1678 = vmatmul.mubr.bf16.gmra.mrb[0].mxu0 %v1466
  %v1679 = vpop.f32.mrb[0].mxu0
  %v1680 = vadd.f32 0.0, %v1679
  %v1681 = vpop.f32.mrb[0].mxu0
  %v1682 = vadd.f32 0.0, %v1681
  %v1683 = vpop.f32.mrb[0].mxu0
  %v1684 = vadd.f32 0.0, %v1683
  %v1685 = vpop.f32.mrb[0].mxu0
  %v1686 = vadd.f32 0.0, %v1685
  %1687 = vdwg.mxu0
  %v1688 = vadd.f32 %v1401, %v1670
  %v1689 = vadd.f32 %v1403, %v1672
  %v1690 = vadd.f32 %v1405, %v1674
  %v1691 = vadd.f32 %v1407, %v1676
  %v1692 = vadd.f32 %v1411, %v1680
  %v1693 = vadd.f32 %v1413, %v1682
  %v1694 = vadd.f32 %v1415, %v1684
  %v1695 = vadd.f32 %v1417, %v1686
  %v1696 = vld [vmem:[#allocation3] sm:$0xc0]
  %v1697 = vld [vmem:[#allocation3 + $0x8] sm:$0xc0]
  %v1698 = vld [vmem:[#allocation3 + $0x10] sm:$0xff]
  %v1699 = vld [vmem:[#allocation3 + $0x18] sm:$0xff]
  %v1700 = vld [vmem:[#allocation3 + $0x20] sm:$0xff]
  %v1701 = vld [vmem:[#allocation3 + $0x28] sm:$0xff]
  %v1702 = vld [vmem:[#allocation3 + $0x30] sm:$0xff]
  %v1703 = vld [vmem:[#allocation3 + $0x38] sm:$0xff]
  %v1704 = vld [vmem:[#allocation3 + $0x40] sm:$0x3]
  %v1705 = vld [vmem:[#allocation3 + $0x48] sm:$0x3]
  %v1706 = vpack.c.bf16 %v1698, %v1696
  %v1707 = vpack.c.bf16 %v1699, %v1697
  %v1708 = vpack.c.bf16 %v1702, %v1700
  %v1709 = vpack.c.bf16 %v1703, %v1701
  %v1710 = vpack.c.bf16 %v1704, %v1704
  %v1711 = vpack.c.bf16 %v1705, %v1705
  %s1712 = scalar_lea.vmem %s3, 768
  %v1713 = vld [vmem:[%s1712] sm:$0xff]
  %v1714 = vld [vmem:[%s1712 + $0x8] sm:$0xff]
  %v1715 = vld [vmem:[%s1712 + $0x10] sm:$0xff]
  %v1716 = vld [vmem:[%s1712 + $0x18] sm:$0xff]
  %v1717 = vld [vmem:[%s1712 + $0x20] sm:$0xff]
  %v1718 = vld [vmem:[%s1712 + $0x28] sm:$0xff]
  %v1719 = vld [vmem:[%s1712 + $0x30] sm:$0xff]
  %v1720 = vld [vmem:[%s1712 + $0x38] sm:$0xff]
  %v1721 = vld [vmem:[%s1712 + $0x40] sm:$0xff]
  %v1722 = vld [vmem:[%s1712 + $0x48] sm:$0xff]
  %v1723 = vld [vmem:[%s1712 + $0x50] sm:$0xff]
  %v1724 = vld [vmem:[%s1712 + $0x58] sm:$0xff]
  %v1725 = vld [vmem:[%s1712 + $0x60] sm:$0xff]
  %v1726 = vld [vmem:[%s1712 + $0x68] sm:$0xff]
  %v1727 = vld [vmem:[%s1712 + $0x70] sm:$0xff]
  %v1728 = vld [vmem:[%s1712 + $0x78] sm:$0xff]
  %v1729 = vld [vmem:[%s1712 + $0x80] sm:$0xff]
  %v1730 = vld [vmem:[%s1712 + $0x88] sm:$0xff]
  %v1731 = vld [vmem:[%s1712 + $0x90] sm:$0xff]
  %v1732 = vld [vmem:[%s1712 + $0x98] sm:$0xff]
  %v1733 = vld [vmem:[%s1712 + $0xa0] sm:$0xff]
  %v1734 = vld [vmem:[%s1712 + $0xa8] sm:$0xff]
  %v1735 = vld [vmem:[%s1712 + $0xb0] sm:$0xff]
  %v1736 = vld [vmem:[%s1712 + $0xb8] sm:$0xff]
  %v1737 = vld [vmem:[%s1712 + $0xc0] sm:$0xff]
  %v1738 = vld [vmem:[%s1712 + $0xc8] sm:$0xff]
  %v1739 = vld [vmem:[%s1712 + $0xd0] sm:$0xff]
  %v1740 = vld [vmem:[%s1712 + $0xd8] sm:$0xff]
  %v1741 = vld [vmem:[%s1712 + $0xe0] sm:$0xff]
  %v1742 = vld [vmem:[%s1712 + $0xe8] sm:$0xff]
  %v1743 = vld [vmem:[%s1712 + $0xf0] sm:$0xff]
  %v1744 = vld [vmem:[%s1712 + $0xf8] sm:$0xff]
  %vm1751 = vcmask 1044480
  %v1752 = vrot.slane %v1706, 3
  %v1753 = vrot.slane %v1708, 3
  %v1754 = vsel %vm1751, %v1752, %v1753
  %v1755 = vrot.slane %v1707, 3
  %v1756 = vrot.slane %v1709, 3
  %v1757 = vsel %vm1751, %v1755, %v1756
  %v1758 = vrot.slane %v1710, 3
  %v1759 = vsel %vm1751, %v1753, %v1758
  %v1760 = vrot.slane %v1711, 3
  %v1761 = vsel %vm1751, %v1756, %v1760
  %v1798 = vunpack.c.l.b16 %v1713
  %v1799 = vunpack.c.h.b16 %v1713
  %v1800 = vunpack.c.l.b16 %v1714
  %v1801 = vunpack.c.h.b16 %v1714
  %v1802 = vunpack.c.l.b16 %v1715
  %v1803 = vunpack.c.h.b16 %v1715
  %v1804 = vunpack.c.l.b16 %v1716
  %v1805 = vunpack.c.h.b16 %v1716
  %v1806 = vunpack.c.l.b16 %v1717
  %v1807 = vunpack.c.h.b16 %v1717
  %v1808 = vunpack.c.l.b16 %v1718
  %v1809 = vunpack.c.h.b16 %v1718
  %v1810 = vunpack.c.l.b16 %v1719
  %v1811 = vunpack.c.h.b16 %v1719
  %v1812 = vunpack.c.l.b16 %v1720
  %v1813 = vunpack.c.h.b16 %v1720
  %v1814 = vunpack.c.l.b16 %v1721
  %v1815 = vunpack.c.h.b16 %v1721
  %v1816 = vunpack.c.l.b16 %v1722
  %v1817 = vunpack.c.h.b16 %v1722
  %v1818 = vunpack.c.l.b16 %v1723
  %v1819 = vunpack.c.h.b16 %v1723
  %v1820 = vunpack.c.l.b16 %v1724
  %v1821 = vunpack.c.h.b16 %v1724
  %v1822 = vunpack.c.l.b16 %v1725
  %v1823 = vunpack.c.h.b16 %v1725
  %v1824 = vunpack.c.l.b16 %v1726
  %v1825 = vunpack.c.h.b16 %v1726
  %v1826 = vunpack.c.l.b16 %v1727
  %v1827 = vunpack.c.h.b16 %v1727
  %v1828 = vunpack.c.l.b16 %v1728
  %v1829 = vunpack.c.h.b16 %v1728
  %v1830 = vunpack.c.l.b16 %v1729
  %v1831 = vunpack.c.h.b16 %v1729
  %v1832 = vunpack.c.l.b16 %v1730
  %v1833 = vunpack.c.h.b16 %v1730
  %v1834 = vunpack.c.l.b16 %v1731
  %v1835 = vunpack.c.h.b16 %v1731
  %v1836 = vunpack.c.l.b16 %v1732
  %v1837 = vunpack.c.h.b16 %v1732
  %v1838 = vunpack.c.l.b16 %v1733
  %v1839 = vunpack.c.h.b16 %v1733
  %v1840 = vunpack.c.l.b16 %v1734
  %v1841 = vunpack.c.h.b16 %v1734
  %v1842 = vunpack.c.l.b16 %v1735
  %v1843 = vunpack.c.h.b16 %v1735
  %v1844 = vunpack.c.l.b16 %v1736
  %v1845 = vunpack.c.h.b16 %v1736
  %v1846 = vunpack.c.l.b16 %v1737
  %v1847 = vunpack.c.h.b16 %v1737
  %v1848 = vunpack.c.l.b16 %v1738
  %v1849 = vunpack.c.h.b16 %v1738
  %v1850 = vunpack.c.l.b16 %v1739
  %v1851 = vunpack.c.h.b16 %v1739
  %v1852 = vunpack.c.l.b16 %v1740
  %v1853 = vunpack.c.h.b16 %v1740
  %v1854 = vunpack.c.l.b16 %v1741
  %v1855 = vunpack.c.h.b16 %v1741
  %v1856 = vunpack.c.l.b16 %v1742
  %v1857 = vunpack.c.h.b16 %v1742
  %v1858 = vunpack.c.l.b16 %v1743
  %v1859 = vunpack.c.h.b16 %v1743
  %v1860 = vunpack.c.l.b16 %v1744
  %v1861 = vunpack.c.h.b16 %v1744
  %v1862 = vpack.c.b16 %v1800, %v1798
  %v1863 = vpack.c.b16 %v1801, %v1799
  %v1864 = vpack.c.b16 %v1804, %v1802
  %v1865 = vpack.c.b16 %v1805, %v1803
  %v1866 = vpack.c.b16 %v1808, %v1806
  %v1867 = vpack.c.b16 %v1809, %v1807
  %v1868 = vpack.c.b16 %v1812, %v1810
  %v1869 = vpack.c.b16 %v1813, %v1811
  %v1870 = vpack.c.b16 %v1816, %v1814
  %v1871 = vpack.c.b16 %v1817, %v1815
  %v1872 = vpack.c.b16 %v1820, %v1818
  %v1873 = vpack.c.b16 %v1821, %v1819
  %v1874 = vpack.c.b16 %v1824, %v1822
  %v1875 = vpack.c.b16 %v1825, %v1823
  %v1876 = vpack.c.b16 %v1828, %v1826
  %v1877 = vpack.c.b16 %v1829, %v1827
  %v1878 = vpack.c.b16 %v1832, %v1830
  %v1879 = vpack.c.b16 %v1833, %v1831
  %v1880 = vpack.c.b16 %v1836, %v1834
  %v1881 = vpack.c.b16 %v1837, %v1835
  %v1882 = vpack.c.b16 %v1840, %v1838
  %v1883 = vpack.c.b16 %v1841, %v1839
  %v1884 = vpack.c.b16 %v1844, %v1842
  %v1885 = vpack.c.b16 %v1845, %v1843
  %v1886 = vpack.c.b16 %v1848, %v1846
  %v1887 = vpack.c.b16 %v1849, %v1847
  %v1888 = vpack.c.b16 %v1852, %v1850
  %v1889 = vpack.c.b16 %v1853, %v1851
  %v1890 = vpack.c.b16 %v1856, %v1854
  %v1891 = vpack.c.b16 %v1857, %v1855
  %v1892 = vpack.c.b16 %v1860, %v1858
  %v1893 = vpack.c.b16 %v1861, %v1859
  %1926 = vmatprep.subr.bf16.mxu0 %v1863
  %1927 = vmatpush1.bf16.msra.mxu0 %v1862
  %1928 = vmatprep.subr.bf16.mxu0 %v1865
  %1929 = vmatpush1.bf16.msra.mxu0 %v1864
  %1930 = vmatprep.subr.bf16.mxu0 %v1867
  %1931 = vmatpush1.bf16.msra.mxu0 %v1866
  %1932 = vmatprep.subr.bf16.mxu0 %v1869
  %1933 = vmatpush1.bf16.msra.mxu0 %v1868
  %1934 = vmatprep.subr.bf16.mxu0 %v1871
  %1935 = vmatpush1.bf16.msra.mxu0 %v1870
  %1936 = vmatprep.subr.bf16.mxu0 %v1873
  %1937 = vmatpush1.bf16.msra.mxu0 %v1872
  %1938 = vmatprep.subr.bf16.mxu0 %v1875
  %1939 = vmatpush1.bf16.msra.mxu0 %v1874
  %1940 = vmatprep.subr.bf16.mxu0 %v1877
  %1941 = vmatpush1.bf16.msra.mxu0 %v1876
  %1942 = vmatprep.subr.bf16.mxu0 %v1879
  %1943 = vmatpush1.bf16.msra.mxu0 %v1878
  %1944 = vmatprep.subr.bf16.mxu0 %v1881
  %1945 = vmatpush1.bf16.msra.mxu0 %v1880
  %1946 = vmatprep.subr.bf16.mxu0 %v1883
  %1947 = vmatpush1.bf16.msra.mxu0 %v1882
  %1948 = vmatprep.subr.bf16.mxu0 %v1885
  %1949 = vmatpush1.bf16.msra.mxu0 %v1884
  %1950 = vmatprep.subr.bf16.mxu0 %v1887
  %1951 = vmatpush1.bf16.msra.mxu0 %v1886
  %1952 = vmatprep.subr.bf16.mxu0 %v1889
  %1953 = vmatpush1.bf16.msra.mxu0 %v1888
  %1954 = vmatprep.subr.bf16.mxu0 %v1891
  %1955 = vmatpush1.bf16.msra.mxu0 %v1890
  %1956 = vmatprep.subr.bf16.mxu0 %v1893
  %1957 = vmatpush1.bf16.msra.mxu0 %v1892
  %1958 = vmatprep.mubr.bf16.mxu0 %v1757
  %1959 = vmatmul.mubr.bf16.gmra.mrb[0].mxu0 %v1754
  %v1960 = vpop.f32.mrb[0].mxu0
  %v1961 = vadd.f32 0.0, %v1960
  %v1962 = vpop.f32.mrb[0].mxu0
  %v1963 = vadd.f32 0.0, %v1962
  %v1964 = vpop.f32.mrb[0].mxu0
  %v1965 = vadd.f32 0.0, %v1964
  %v1966 = vpop.f32.mrb[0].mxu0
  %v1967 = vadd.f32 0.0, %v1966
  %1968 = vmatprep.mubr.bf16.mxu0 %v1761
  %1969 = vmatmul.mubr.bf16.gmra.mrb[0].mxu0 %v1759
  %v1970 = vpop.f32.mrb[0].mxu0
  %v1971 = vadd.f32 0.0, %v1970
  %v1972 = vpop.f32.mrb[0].mxu0
  %v1973 = vadd.f32 0.0, %v1972
  %v1974 = vpop.f32.mrb[0].mxu0
  %v1975 = vadd.f32 0.0, %v1974
  %v1976 = vpop.f32.mrb[0].mxu0
  %v1977 = vadd.f32 0.0, %v1976
  %1978 = vdwg.mxu0
  %v1979 = vadd.f32 %v1688, %v1961
  %v1980 = vadd.f32 %v1689, %v1963
  %v1981 = vadd.f32 %v1690, %v1965
  %v1982 = vadd.f32 %v1691, %v1967
  %v1983 = vadd.f32 %v1692, %v1971
  %v1984 = vadd.f32 %v1693, %v1973
  %v1985 = vadd.f32 %v1694, %v1975
  %v1986 = vadd.f32 %v1695, %v1977
  %v1987 = vld [vmem:[#allocation3 + $0x40] sm:$0xf]
  %v1988 = vld [vmem:[#allocation3 + $0x48] sm:$0xf]
  %v1989 = vpack.c.bf16 %v1700, %v1698
  %v1990 = vpack.c.bf16 %v1701, %v1699
  %v1991 = vpack.c.bf16 %v1987, %v1702
  %v1992 = vpack.c.bf16 %v1988, %v1703
  %s1993 = scalar_lea.vmem %s3, 1024
  %v1994 = vld [vmem:[%s1993] sm:$0xff]
  %v1995 = vld [vmem:[%s1993 + $0x8] sm:$0xff]
  %v1996 = vld [vmem:[%s1993 + $0x10] sm:$0xff]
  %v1997 = vld [vmem:[%s1993 + $0x18] sm:$0xff]
  %v1998 = vld [vmem:[%s1993 + $0x20] sm:$0xff]
  %v1999 = vld [vmem:[%s1993 + $0x28] sm:$0xff]
  %v2000 = vld [vmem:[%s1993 + $0x30] sm:$0xff]
  %v2001 = vld [vmem:[%s1993 + $0x38] sm:$0xff]
  %v2002 = vld [vmem:[%s1993 + $0x40] sm:$0xff]
  %v2003 = vld [vmem:[%s1993 + $0x48] sm:$0xff]
  %v2004 = vld [vmem:[%s1993 + $0x50] sm:$0xff]
  %v2005 = vld [vmem:[%s1993 + $0x58] sm:$0xff]
  %v2006 = vld [vmem:[%s1993 + $0x60] sm:$0xff]
  %v2007 = vld [vmem:[%s1993 + $0x68] sm:$0xff]
  %v2008 = vld [vmem:[%s1993 + $0x70] sm:$0xff]
  %v2009 = vld [vmem:[%s1993 + $0x78] sm:$0xff]
  %v2010 = vld [vmem:[%s1993 + $0x80] sm:$0xff]
  %v2011 = vld [vmem:[%s1993 + $0x88] sm:$0xff]
  %v2012 = vld [vmem:[%s1993 + $0x90] sm:$0xff]
  %v2013 = vld [vmem:[%s1993 + $0x98] sm:$0xff]
  %v2014 = vld [vmem:[%s1993 + $0xa0] sm:$0xff]
  %v2015 = vld [vmem:[%s1993 + $0xa8] sm:$0xff]
  %v2016 = vld [vmem:[%s1993 + $0xb0] sm:$0xff]
  %v2017 = vld [vmem:[%s1993 + $0xb8] sm:$0xff]
  %v2018 = vld [vmem:[%s1993 + $0xc0] sm:$0xff]
  %v2019 = vld [vmem:[%s1993 + $0xc8] sm:$0xff]
  %v2020 = vld [vmem:[%s1993 + $0xd0] sm:$0xff]
  %v2021 = vld [vmem:[%s1993 + $0xd8] sm:$0xff]
  %v2022 = vld [vmem:[%s1993 + $0xe0] sm:$0xff]
  %v2023 = vld [vmem:[%s1993 + $0xe8] sm:$0xff]
  %v2024 = vld [vmem:[%s1993 + $0xf0] sm:$0xff]
  %v2025 = vld [vmem:[%s1993 + $0xf8] sm:$0xff]
  %v2058 = vunpack.c.l.b16 %v1994
  %v2059 = vunpack.c.h.b16 %v1994
  %v2060 = vunpack.c.l.b16 %v1995
  %v2061 = vunpack.c.h.b16 %v1995
  %v2062 = vunpack.c.l.b16 %v1996
  %v2063 = vunpack.c.h.b16 %v1996
  %v2064 = vunpack.c.l.b16 %v1997
  %v2065 = vunpack.c.h.b16 %v1997
  %v2066 = vunpack.c.l.b16 %v1998
  %v2067 = vunpack.c.h.b16 %v1998
  %v2068 = vunpack.c.l.b16 %v1999
  %v2069 = vunpack.c.h.b16 %v1999
  %v2070 = vunpack.c.l.b16 %v2000
  %v2071 = vunpack.c.h.b16 %v2000
  %v2072 = vunpack.c.l.b16 %v2001
  %v2073 = vunpack.c.h.b16 %v2001
  %v2074 = vunpack.c.l.b16 %v2002
  %v2075 = vunpack.c.h.b16 %v2002
  %v2076 = vunpack.c.l.b16 %v2003
  %v2077 = vunpack.c.h.b16 %v2003
  %v2078 = vunpack.c.l.b16 %v2004
  %v2079 = vunpack.c.h.b16 %v2004
  %v2080 = vunpack.c.l.b16 %v2005
  %v2081 = vunpack.c.h.b16 %v2005
  %v2082 = vunpack.c.l.b16 %v2006
  %v2083 = vunpack.c.h.b16 %v2006
  %v2084 = vunpack.c.l.b16 %v2007
  %v2085 = vunpack.c.h.b16 %v2007
  %v2086 = vunpack.c.l.b16 %v2008
  %v2087 = vunpack.c.h.b16 %v2008
  %v2088 = vunpack.c.l.b16 %v2009
  %v2089 = vunpack.c.h.b16 %v2009
  %v2090 = vunpack.c.l.b16 %v2010
  %v2091 = vunpack.c.h.b16 %v2010
  %v2092 = vunpack.c.l.b16 %v2011
  %v2093 = vunpack.c.h.b16 %v2011
  %v2094 = vunpack.c.l.b16 %v2012
  %v2095 = vunpack.c.h.b16 %v2012
  %v2096 = vunpack.c.l.b16 %v2013
  %v2097 = vunpack.c.h.b16 %v2013
  %v2098 = vunpack.c.l.b16 %v2014
  %v2099 = vunpack.c.h.b16 %v2014
  %v2100 = vunpack.c.l.b16 %v2015
  %v2101 = vunpack.c.h.b16 %v2015
  %v2102 = vunpack.c.l.b16 %v2016
  %v2103 = vunpack.c.h.b16 %v2016
  %v2104 = vunpack.c.l.b16 %v2017
  %v2105 = vunpack.c.h.b16 %v2017
  %v2106 = vunpack.c.l.b16 %v2018
  %v2107 = vunpack.c.h.b16 %v2018
  %v2108 = vunpack.c.l.b16 %v2019
  %v2109 = vunpack.c.h.b16 %v2019
  %v2110 = vunpack.c.l.b16 %v2020
  %v2111 = vunpack.c.h.b16 %v2020
  %v2112 = vunpack.c.l.b16 %v2021
  %v2113 = vunpack.c.h.b16 %v2021
  %v2114 = vunpack.c.l.b16 %v2022
  %v2115 = vunpack.c.h.b16 %v2022
  %v2116 = vunpack.c.l.b16 %v2023
  %v2117 = vunpack.c.h.b16 %v2023
  %v2118 = vunpack.c.l.b16 %v2024
  %v2119 = vunpack.c.h.b16 %v2024
  %v2120 = vunpack.c.l.b16 %v2025
  %v2121 = vunpack.c.h.b16 %v2025
  %v2122 = vpack.c.b16 %v2060, %v2058
  %v2123 = vpack.c.b16 %v2061, %v2059
  %v2124 = vpack.c.b16 %v2064, %v2062
  %v2125 = vpack.c.b16 %v2065, %v2063
  %v2126 = vpack.c.b16 %v2068, %v2066
  %v2127 = vpack.c.b16 %v2069, %v2067
  %v2128 = vpack.c.b16 %v2072, %v2070
  %v2129 = vpack.c.b16 %v2073, %v2071
  %v2130 = vpack.c.b16 %v2076, %v2074
  %v2131 = vpack.c.b16 %v2077, %v2075
  %v2132 = vpack.c.b16 %v2080, %v2078
  %v2133 = vpack.c.b16 %v2081, %v2079
  %v2134 = vpack.c.b16 %v2084, %v2082
  %v2135 = vpack.c.b16 %v2085, %v2083
  %v2136 = vpack.c.b16 %v2088, %v2086
  %v2137 = vpack.c.b16 %v2089, %v2087
  %v2138 = vpack.c.b16 %v2092, %v2090
  %v2139 = vpack.c.b16 %v2093, %v2091
  %v2140 = vpack.c.b16 %v2096, %v2094
  %v2141 = vpack.c.b16 %v2097, %v2095
  %v2142 = vpack.c.b16 %v2100, %v2098
  %v2143 = vpack.c.b16 %v2101, %v2099
  %v2144 = vpack.c.b16 %v2104, %v2102
  %v2145 = vpack.c.b16 %v2105, %v2103
  %v2146 = vpack.c.b16 %v2108, %v2106
  %v2147 = vpack.c.b16 %v2109, %v2107
  %v2148 = vpack.c.b16 %v2112, %v2110
  %v2149 = vpack.c.b16 %v2113, %v2111
  %v2150 = vpack.c.b16 %v2116, %v2114
  %v2151 = vpack.c.b16 %v2117, %v2115
  %v2152 = vpack.c.b16 %v2120, %v2118
  %v2153 = vpack.c.b16 %v2121, %v2119
  %2186 = vmatprep.subr.bf16.mxu0 %v2123
  %2187 = vmatpush1.bf16.msra.mxu0 %v2122
  %2188 = vmatprep.subr.bf16.mxu0 %v2125
  %2189 = vmatpush1.bf16.msra.mxu0 %v2124
  %2190 = vmatprep.subr.bf16.mxu0 %v2127
  %2191 = vmatpush1.bf16.msra.mxu0 %v2126
  %2192 = vmatprep.subr.bf16.mxu0 %v2129
  %2193 = vmatpush1.bf16.msra.mxu0 %v2128
  %2194 = vmatprep.subr.bf16.mxu0 %v2131
  %2195 = vmatpush1.bf16.msra.mxu0 %v2130
  %2196 = vmatprep.subr.bf16.mxu0 %v2133
  %2197 = vmatpush1.bf16.msra.mxu0 %v2132
  %2198 = vmatprep.subr.bf16.mxu0 %v2135
  %2199 = vmatpush1.bf16.msra.mxu0 %v2134
  %2200 = vmatprep.subr.bf16.mxu0 %v2137
  %2201 = vmatpush1.bf16.msra.mxu0 %v2136
  %2202 = vmatprep.subr.bf16.mxu0 %v2139
  %2203 = vmatpush1.bf16.msra.mxu0 %v2138
  %2204 = vmatprep.subr.bf16.mxu0 %v2141
  %2205 = vmatpush1.bf16.msra.mxu0 %v2140
  %2206 = vmatprep.subr.bf16.mxu0 %v2143
  %2207 = vmatpush1.bf16.msra.mxu0 %v2142
  %2208 = vmatprep.subr.bf16.mxu0 %v2145
  %2209 = vmatpush1.bf16.msra.mxu0 %v2144
  %2210 = vmatprep.subr.bf16.mxu0 %v2147
  %2211 = vmatpush1.bf16.msra.mxu0 %v2146
  %2212 = vmatprep.subr.bf16.mxu0 %v2149
  %2213 = vmatpush1.bf16.msra.mxu0 %v2148
  %2214 = vmatprep.subr.bf16.mxu0 %v2151
  %2215 = vmatpush1.bf16.msra.mxu0 %v2150
  %2216 = vmatprep.subr.bf16.mxu0 %v2153
  %2217 = vmatpush1.bf16.msra.mxu0 %v2152
  %2218 = vmatprep.mubr.bf16.mxu0 %v1990
  %2219 = vmatmul.mubr.bf16.gmra.mrb[0].mxu0 %v1989
  %v2220 = vpop.f32.mrb[0].mxu0
  %v2221 = vadd.f32 0.0, %v2220
  %v2222 = vpop.f32.mrb[0].mxu0
  %v2223 = vadd.f32 0.0, %v2222
  %v2224 = vpop.f32.mrb[0].mxu0
  %v2225 = vadd.f32 0.0, %v2224
  %v2226 = vpop.f32.mrb[0].mxu0
  %v2227 = vadd.f32 0.0, %v2226
  %2228 = vmatprep.mubr.bf16.mxu0 %v1992
  %2229 = vmatmul.mubr.bf16.gmra.mrb[0].mxu0 %v1991
  %v2230 = vpop.f32.mrb[0].mxu0
  %v2231 = vadd.f32 0.0, %v2230
  %v2232 = vpop.f32.mrb[0].mxu0
  %v2233 = vadd.f32 0.0, %v2232
  %v2234 = vpop.f32.mrb[0].mxu0
  %v2235 = vadd.f32 0.0, %v2234
  %v2236 = vpop.f32.mrb[0].mxu0
  %v2237 = vadd.f32 0.0, %v2236
  %2238 = vdwg.mxu0
  %v2239 = vadd.f32 %v1979, %v2221
  %v2240 = vadd.f32 %v1980, %v2223
  %v2241 = vadd.f32 %v1981, %v2225
  %v2242 = vadd.f32 %v1982, %v2227
  %v2243 = vadd.f32 %v1983, %v2231
  %v2244 = vadd.f32 %v1984, %v2233
  %v2245 = vadd.f32 %v1985, %v2235
  %v2246 = vadd.f32 %v1986, %v2237
  %v2247 = vld [vmem:[%s6] sm:$0xff]
  %v2248 = vld [vmem:[%s6 + $0x8] sm:$0xff]
  %v2249 = vld [vmem:[%s6 + $0x10] sm:$0xff]
  %v2250 = vld [vmem:[%s6 + $0x18] sm:$0xff]
  %v2251 = vld [vmem:[%s6 + $0x20] sm:$0xff]
  %v2252 = vld [vmem:[%s6 + $0x28] sm:$0xff]
  %v2253 = vld [vmem:[%s6 + $0x30] sm:$0xff]
  %v2254 = vld [vmem:[%s6 + $0x38] sm:$0xff]
  %v2255 = vld [vmem:[%s6 + $0x40] sm:$0xff]
  %v2256 = vld [vmem:[%s6 + $0x48] sm:$0xff]
  %v2257 = vld [vmem:[%s6 + $0x50] sm:$0xff]
  %v2258 = vld [vmem:[%s6 + $0x58] sm:$0xff]
  %v2259 = vld [vmem:[%s6 + $0x60] sm:$0xff]
  %v2260 = vld [vmem:[%s6 + $0x68] sm:$0xff]
  %v2261 = vld [vmem:[%s6 + $0x70] sm:$0xff]
  %v2262 = vld [vmem:[%s6 + $0x78] sm:$0xff]
  %v2263 = vld [vmem:[%s6 + $0x80] sm:$0xff]
  %v2264 = vld [vmem:[%s6 + $0x88] sm:$0xff]
  %v2265 = vld [vmem:[%s6 + $0x90] sm:$0xff]
  %v2266 = vld [vmem:[%s6 + $0x98] sm:$0xff]
  %v2267 = vld [vmem:[%s6 + $0xa0] sm:$0xff]
  %v2268 = vld [vmem:[%s6 + $0xa8] sm:$0xff]
  %v2269 = vld [vmem:[%s6 + $0xb0] sm:$0xff]
  %v2270 = vld [vmem:[%s6 + $0xb8] sm:$0xff]
  %v2271 = vld [vmem:[%s6 + $0xc0] sm:$0xff]
  %v2272 = vld [vmem:[%s6 + $0xc8] sm:$0xff]
  %v2273 = vld [vmem:[%s6 + $0xd0] sm:$0xff]
  %v2274 = vld [vmem:[%s6 + $0xd8] sm:$0xff]
  %v2275 = vld [vmem:[%s6 + $0xe0] sm:$0xff]
  %v2276 = vld [vmem:[%s6 + $0xe8] sm:$0xff]
  %v2277 = vld [vmem:[%s6 + $0xf0] sm:$0xff]
  %v2278 = vld [vmem:[%s6 + $0xf8] sm:$0xff]
  %v2279 = vld [vmem:[%s6 + $0x100] sm:$0xff]
  %v2280 = vld [vmem:[%s6 + $0x108] sm:$0xff]
  %v2281 = vld [vmem:[%s6 + $0x110] sm:$0xff]
  %v2282 = vld [vmem:[%s6 + $0x118] sm:$0xff]
  %v2283 = vld [vmem:[%s6 + $0x120] sm:$0xff]
  %v2284 = vld [vmem:[%s6 + $0x128] sm:$0xff]
  %v2285 = vld [vmem:[%s6 + $0x130] sm:$0xff]
  %v2286 = vld [vmem:[%s6 + $0x138] sm:$0xff]
  %v2287 = vld [vmem:[%s6 + $0x140] sm:$0xff]
  %v2288 = vld [vmem:[%s6 + $0x148] sm:$0xff]
  %v2289 = vld [vmem:[%s6 + $0x150] sm:$0xff]
  %v2290 = vld [vmem:[%s6 + $0x158] sm:$0xff]
  %v2291 = vld [vmem:[%s6 + $0x160] sm:$0xff]
  %v2292 = vld [vmem:[%s6 + $0x168] sm:$0xff]
  %v2293 = vld [vmem:[%s6 + $0x170] sm:$0xff]
  %v2294 = vld [vmem:[%s6 + $0x178] sm:$0xff]
  %v2295 = vld [vmem:[%s6 + $0x180] sm:$0xff]
  %v2296 = vld [vmem:[%s6 + $0x188] sm:$0xff]
  %v2297 = vld [vmem:[%s6 + $0x190] sm:$0xff]
  %v2298 = vld [vmem:[%s6 + $0x198] sm:$0xff]
  %v2299 = vld [vmem:[%s6 + $0x1a0] sm:$0xff]
  %v2300 = vld [vmem:[%s6 + $0x1a8] sm:$0xff]
  %v2301 = vld [vmem:[%s6 + $0x1b0] sm:$0xff]
  %v2302 = vld [vmem:[%s6 + $0x1b8] sm:$0xff]
  %v2303 = vadd.f32 %v2239, %v2241
  %v2304 = vadd.f32 %v2303, %v2243
  %vm2305 = vcmask 1043456
  %v2306 = vsel %vm2305, %v2245, 0.0
  %v2307 = vadd.f32 %v2304, %v2306
  %v2308 = vrot.slane %v2307, 4
  %v2309 = vadd.f32 %v2307, %v2308
  %v2310 = vrot.slane %v2309, 2
  %v2311 = vadd.f32 %v2309, %v2310
  %v2312 = vrot.slane %v2311, 1
  %v2313 = vadd.f32 %v2311, %v2312
  %vm2314 = vcmask 785408
  %v2315 = vsel %vm2314, %v2240, 0.0
  %v2316 = vsel %vm2314, %v2242, 0.0
  %v2317 = vadd.f32 %v2315, %v2316
  %v2318 = vsel %vm2314, %v2244, 0.0
  %v2319 = vadd.f32 %v2317, %v2318
  %vm2320 = vcmask 781312
  %v2321 = vsel %vm2320, %v2246, 0.0
  %v2322 = vadd.f32 %v2319, %v2321
  %v2323 = vrot.slane %v2322, 4
  %v2324 = vadd.f32 %v2322, %v2323
  %v2325 = vrot.slane %v2324, 2
  %v2326 = vadd.f32 %v2324, %v2325
  %v2327 = vrot.slane %v2326, 1
  %v2328 = vadd.f32 %v2326, %v2327
  %v2330 = vsel %vm2314, %v2328, 0
  %2332 = vmatprep.subr.mxu0 %v2248
  %2333 = vmatpush1.msra.mxu0 %v2247
  %2334 = vmatprep.subr.mxu0 %v2250
  %2335 = vmatpush1.msra.mxu0 %v2249
  %2336 = vmatprep.subr.mxu0 %v2252
  %2337 = vmatpush1.msra.mxu0 %v2251
  %2338 = vmatprep.subr.mxu0 %v2254
  %2339 = vmatpush1.msra.mxu0 %v2253
  %2340 = vmatprep.subr.mxu0 %v2256
  %2341 = vmatpush1.msra.mxu0 %v2255
  %2342 = vmatprep.subr.mxu0 %v2258
  %2343 = vmatpush1.msra.mxu0 %v2257
  %2344 = vmatprep.subr.mxu0 %v2260
  %2345 = vmatpush1.msra.mxu0 %v2259
  %2346 = vmatprep.subr.mxu0 %v2262
  %2347 = vmatpush1.msra.mxu0 %v2261
  %2348 = vmatprep.subr.mxu0 %v2264
  %2349 = vmatpush1.msra.mxu0 %v2263
  %2350 = vmatprep.subr.mxu0 %v2266
  %2351 = vmatpush1.msra.mxu0 %v2265
  %2352 = vmatprep.subr.mxu0 %v2268
  %2353 = vmatpush1.msra.mxu0 %v2267
  %2354 = vmatprep.subr.mxu0 %v2270
  %2355 = vmatpush1.msra.mxu0 %v2269
  %2356 = vmatprep.subr.mxu0 %v2272
  %2357 = vmatpush1.msra.mxu0 %v2271
  %2358 = vmatprep.subr.mxu0 %v2274
  %2359 = vmatpush1.msra.mxu0 %v2273
  %2360 = vmatprep.subr.mxu0 %v2276
  %2361 = vmatpush1.msra.mxu0 %v2275
  %2362 = vmatprep.subr.mxu0 %v2278
  %2363 = vmatpush1.msra.mxu0 %v2277
  %2364 = vmatprep.subr.mxu0 %v2280
  %2365 = vmatpush1.msra.mxu0 %v2279
  %2366 = vmatprep.subr.mxu0 %v2282
  %2367 = vmatpush1.msra.mxu0 %v2281
  %2368 = vmatprep.subr.mxu0 %v2284
  %2369 = vmatpush1.msra.mxu0 %v2283
  %2370 = vmatprep.subr.mxu0 %v2286
  %2371 = vmatpush1.msra.mxu0 %v2285
  %2372 = vmatprep.subr.mxu0 %v2288
  %2373 = vmatpush1.msra.mxu0 %v2287
  %2374 = vmatprep.subr.mxu0 %v2290
  %2375 = vmatpush1.msra.mxu0 %v2289
  %2376 = vmatprep.subr.mxu0 %v2292
  %2377 = vmatpush1.msra.mxu0 %v2291
  %2378 = vmatprep.subr.mxu0 %v2294
  %2379 = vmatpush1.msra.mxu0 %v2293
  %2380 = vmatprep.subr.mxu0 %v2296
  %2381 = vmatpush1.msra.mxu0 %v2295
  %2382 = vmatprep.subr.mxu0 %v2298
  %2383 = vmatpush1.msra.mxu0 %v2297
  %2384 = vmatprep.subr.mxu0 %v2300
  %2385 = vmatpush1.msra.mxu0 %v2299
  %2386 = vmatprep.subr.mxu0 %v2302
  %2387 = vmatpush1.msra.mxu0 %v2301
  %2388 = vmatprep.subr.mxu0 0.0
  %2389 = vmatpush1.msra.mxu0 0.0
  %2390 = vmatprep.subr.mxu0 0.0
  %2391 = vmatpush1.msra.mxu0 0.0
  %2392 = vmatprep.subr.mxu0 0.0
  %2393 = vmatpush1.msra.mxu0 0.0
  %2394 = vmatprep.subr.mxu0 0.0
  %2395 = vmatpush1.msra.mxu0 0.0
  %2396 = vmatprep.mubr.f32.mxu0 %v2330
  %2397 = vmatmul.mubr.f32.gmra.mrb[0].mxu0 %v2313
  %v2398 = vpop.f32.mrb[0].mxu0
  %v2399 = vadd.f32 0.0, %v2398
  %v2400 = vpop.f32.mrb[0].mxu0
  %v2401 = vadd.f32 0.0, %v2400
  %2402 = vdwg.mxu0
  %v2403 = vrcp.pop 392.0
  %v2404 = vmul.f32 %v2399, %v2403
  %v2405 = vmul.f32 %v2401, %v2403
  %v2406 = vlaneseq
  %v2407 = vshrl.u32 %v2406, 7
  %v2408 = vsub.s32 0, %v2407
  %v2409 = vrot.slane %v2404, %v2408
  %v2410 = vlaneseq
  %v2411 = vshrl.u32 %v2410, 7
  %v2412 = vsub.s32 0, %v2411
  %v2413 = vrot.slane %v2405, %v2412
  %v2414 = vsub.f32 %v2239, %v2409
  %v2415 = vsub.f32 %v2240, %v2413
  %v2416 = vsub.f32 %v2241, %v2409
  %v2417 = vsub.f32 %v2242, %v2413
  %v2418 = vsub.f32 %v2243, %v2409
  %v2419 = vsub.f32 %v2244, %v2413
  %v2420 = vsub.f32 %v2245, %v2409
  %v2421 = vsub.f32 %v2246, %v2413
  %v2422 = vmul.f32 %v2414, %v2414
  %v2423 = vmul.f32 %v2415, %v2415
  %v2424 = vmul.f32 %v2416, %v2416
  %v2425 = vmul.f32 %v2417, %v2417
  %v2426 = vmul.f32 %v2418, %v2418
  %v2427 = vmul.f32 %v2419, %v2419
  %v2428 = vmul.f32 %v2420, %v2420
  %v2429 = vmul.f32 %v2421, %v2421
  %v2430 = vadd.f32 %v2422, %v2424
  %v2431 = vadd.f32 %v2430, %v2426
  %v2432 = vsel %vm2305, %v2428, 0.0
  %v2433 = vadd.f32 %v2431, %v2432
  %v2434 = vrot.slane %v2433, 4
  %v2435 = vadd.f32 %v2433, %v2434
  %v2436 = vrot.slane %v2435, 2
  %v2437 = vadd.f32 %v2435, %v2436
  %v2438 = vrot.slane %v2437, 1
  %v2439 = vadd.f32 %v2437, %v2438
  %v2440 = vsel %vm2314, %v2423, 0.0
  %v2441 = vsel %vm2314, %v2425, 0.0
  %v2442 = vadd.f32 %v2440, %v2441
  %v2443 = vsel %vm2314, %v2427, 0.0
  %v2444 = vadd.f32 %v2442, %v2443
  %v2445 = vsel %vm2320, %v2429, 0.0
  %v2446 = vadd.f32 %v2444, %v2445
  %v2447 = vrot.slane %v2446, 4
  %v2448 = vadd.f32 %v2446, %v2447
  %v2449 = vrot.slane %v2448, 2
  %v2450 = vadd.f32 %v2448, %v2449
  %v2451 = vrot.slane %v2450, 1
  %v2452 = vadd.f32 %v2450, %v2451
  %v2454 = vsel %vm2314, %v2452, 0
  %2456 = vmatprep.subr.mxu0 %v2248
  %2457 = vmatpush1.msra.mxu0 %v2247
  %2458 = vmatprep.subr.mxu0 %v2250
  %2459 = vmatpush1.msra.mxu0 %v2249
  %2460 = vmatprep.subr.mxu0 %v2252
  %2461 = vmatpush1.msra.mxu0 %v2251
  %2462 = vmatprep.subr.mxu0 %v2254
  %2463 = vmatpush1.msra.mxu0 %v2253
  %2464 = vmatprep.subr.mxu0 %v2256
  %2465 = vmatpush1.msra.mxu0 %v2255
  %2466 = vmatprep.subr.mxu0 %v2258
  %2467 = vmatpush1.msra.mxu0 %v2257
  %2468 = vmatprep.subr.mxu0 %v2260
  %2469 = vmatpush1.msra.mxu0 %v2259
  %2470 = vmatprep.subr.mxu0 %v2262
  %2471 = vmatpush1.msra.mxu0 %v2261
  %2472 = vmatprep.subr.mxu0 %v2264
  %2473 = vmatpush1.msra.mxu0 %v2263
  %2474 = vmatprep.subr.mxu0 %v2266
  %2475 = vmatpush1.msra.mxu0 %v2265
  %2476 = vmatprep.subr.mxu0 %v2268
  %2477 = vmatpush1.msra.mxu0 %v2267
  %2478 = vmatprep.subr.mxu0 %v2270
  %2479 = vmatpush1.msra.mxu0 %v2269
  %2480 = vmatprep.subr.mxu0 %v2272
  %2481 = vmatpush1.msra.mxu0 %v2271
  %2482 = vmatprep.subr.mxu0 %v2274
  %2483 = vmatpush1.msra.mxu0 %v2273
  %2484 = vmatprep.subr.mxu0 %v2276
  %2485 = vmatpush1.msra.mxu0 %v2275
  %2486 = vmatprep.subr.mxu0 %v2278
  %2487 = vmatpush1.msra.mxu0 %v2277
  %2488 = vmatprep.subr.mxu0 %v2280
  %2489 = vmatpush1.msra.mxu0 %v2279
  %2490 = vmatprep.subr.mxu0 %v2282
  %2491 = vmatpush1.msra.mxu0 %v2281
  %2492 = vmatprep.subr.mxu0 %v2284
  %2493 = vmatpush1.msra.mxu0 %v2283
  %2494 = vmatprep.subr.mxu0 %v2286
  %2495 = vmatpush1.msra.mxu0 %v2285
  %2496 = vmatprep.subr.mxu0 %v2288
  %2497 = vmatpush1.msra.mxu0 %v2287
  %2498 = vmatprep.subr.mxu0 %v2290
  %2499 = vmatpush1.msra.mxu0 %v2289
  %2500 = vmatprep.subr.mxu0 %v2292
  %2501 = vmatpush1.msra.mxu0 %v2291
  %2502 = vmatprep.subr.mxu0 %v2294
  %2503 = vmatpush1.msra.mxu0 %v2293
  %2504 = vmatprep.subr.mxu0 %v2296
  %2505 = vmatpush1.msra.mxu0 %v2295
  %2506 = vmatprep.subr.mxu0 %v2298
  %2507 = vmatpush1.msra.mxu0 %v2297
  %2508 = vmatprep.subr.mxu0 %v2300
  %2509 = vmatpush1.msra.mxu0 %v2299
  %2510 = vmatprep.subr.mxu0 %v2302
  %2511 = vmatpush1.msra.mxu0 %v2301
  %2512 = vmatprep.subr.mxu0 0.0
  %2513 = vmatpush1.msra.mxu0 0.0
  %2514 = vmatprep.subr.mxu0 0.0
  %2515 = vmatpush1.msra.mxu0 0.0
  %2516 = vmatprep.subr.mxu0 0.0
  %2517 = vmatpush1.msra.mxu0 0.0
  %2518 = vmatprep.subr.mxu0 0.0
  %2519 = vmatpush1.msra.mxu0 0.0
  %2520 = vmatprep.mubr.f32.mxu0 %v2454
  %2521 = vmatmul.mubr.f32.gmra.mrb[0].mxu0 %v2439
  %v2522 = vpop.f32.mrb[0].mxu0
  %v2523 = vadd.f32 0.0, %v2522
  %v2524 = vpop.f32.mrb[0].mxu0
  %v2525 = vadd.f32 0.0, %v2524
  %2526 = vdwg.mxu0
  %v2527 = vmul.f32 %v2523, %v2403
  %v2528 = vmul.f32 %v2525, %v2403
  %v2529 = vadd.f32 %v2527, 0.0001
  %v2530 = vadd.f32 %v2528, 0.0001
  %v2531 = vrsqrt.pop %v2529
  %v2532 = vrsqrt.pop %v2530
  %v2533 = vlaneseq
  %v2534 = vshrl.u32 %v2533, 7
  %v2535 = vsub.s32 0, %v2534
  %v2536 = vrot.slane %v2531, %v2535
  %v2537 = vlaneseq
  %v2538 = vshrl.u32 %v2537, 7
  %v2539 = vsub.s32 0, %v2538
  %v2540 = vrot.slane %v2532, %v2539
  %v2541 = vmul.f32 %v2414, %v2536
  %v2542 = vmul.f32 %v2415, %v2540
  %v2543 = vmul.f32 %v2416, %v2536
  %v2544 = vmul.f32 %v2417, %v2540
  %v2545 = vmul.f32 %v2418, %v2536
  %v2546 = vmul.f32 %v2419, %v2540
  %v2547 = vmul.f32 %v2420, %v2536
  %v2548 = vmul.f32 %v2421, %v2540
  %vm2549 = vcmp.ge.f32.partialorder %v2541, 0.0
  %vm2550 = vcmp.ge.f32.partialorder %v2542, 0.0
  %vm2551 = vcmp.ge.f32.partialorder %v2543, 0.0
  %vm2552 = vcmp.ge.f32.partialorder %v2544, 0.0
  %vm2553 = vcmp.ge.f32.partialorder %v2545, 0.0
  %vm2554 = vcmp.ge.f32.partialorder %v2546, 0.0
  %vm2555 = vcmp.ge.f32.partialorder %v2547, 0.0
  %vm2556 = vcmp.ge.f32.partialorder %v2548, 0.0
  %v2557 = vmul.f32 %v2541, 0.01
  %v2558 = vmul.f32 %v2542, 0.01
  %v2559 = vmul.f32 %v2543, 0.01
  %v2560 = vmul.f32 %v2544, 0.01
  %v2561 = vmul.f32 %v2545, 0.01
  %v2562 = vmul.f32 %v2546, 0.01
  %v2563 = vmul.f32 %v2547, 0.01
  %v2564 = vmul.f32 %v2548, 0.01
  %v2565 = vsel %vm2549, %v2541, %v2557
  %v2566 = vsel %vm2550, %v2542, %v2558
  %v2567 = vsel %vm2551, %v2543, %v2559
  %v2568 = vsel %vm2552, %v2544, %v2560
  %v2569 = vsel %vm2553, %v2545, %v2561
  %v2570 = vsel %vm2554, %v2546, %v2562
  %v2571 = vsel %vm2555, %v2547, %v2563
  %v2572 = vsel %vm2556, %v2548, %v2564
  %2573 = vst [vmem:[#allocation4] sm:$0xff] 0.0
  %2574 = vst.msk [vmem:[#allocation4 + $0x8] sm:$0xff] %vm2314, 0.0
  %2575 = vst [vmem:[#allocation4 + $0x10] sm:$0xff] 0.0
  %2576 = vst.msk [vmem:[#allocation4 + $0x18] sm:$0xff] %vm2314, 0.0
  %2577 = vst [vmem:[#allocation4 + $0x20] sm:$0xff] 0.0
  %2578 = vst.msk [vmem:[#allocation4 + $0x28] sm:$0xff] %vm2314, 0.0
  %2579 = vst [vmem:[#allocation4 + $0x30] sm:$0xff] 0.0
  %2580 = vst.msk [vmem:[#allocation4 + $0x38] sm:$0xff] %vm2314, 0.0
  %2581 = vst [vmem:[#allocation4 + $0x40] sm:$0xff] 0.0
  %2582 = vst.msk [vmem:[#allocation4 + $0x48] sm:$0xff] %vm2314, 0.0
  %2583 = vst [vmem:[#allocation4 + $0x50] sm:$0xff] 0.0
  %2584 = vst.msk [vmem:[#allocation4 + $0x58] sm:$0xff] %vm2314, 0.0
  %2585 = vst [vmem:[#allocation4 + $0x60] sm:$0xff] 0.0
  %2586 = vst.msk [vmem:[#allocation4 + $0x68] sm:$0xff] %vm2314, 0.0
  %2587 = vst [vmem:[#allocation4 + $0x70] sm:$0xff] 0.0
  %2588 = vst.msk [vmem:[#allocation4 + $0x78] sm:$0xff] %vm2314, 0.0
  %v2591 = vrot.slane %v2565, 4
  %v2592 = vrot.slane %v2566, 4
  %2595 = vst [vmem:[#allocation4] sm:$0x30] %v2591
  %vm2596 = vcmask 783364
  %2597 = vst.msk [vmem:[#allocation4 + $0x8] sm:$0x30] %vm2596, %v2592
  %v2598 = vrot.slane %v2565, 2
  %v2599 = vrot.slane %v2566, 2
  %2602 = vst [vmem:[#allocation4] sm:$0xc0] %v2598
  %vm2603 = vcmask 785414
  %2604 = vst.msk [vmem:[#allocation4 + $0x8] sm:$0xc0] %vm2603, %v2599
  %2605 = vst [vmem:[#allocation4 + $0x10] sm:$0x3] %v2598
  %vm2606 = vcmask 779264
  %2607 = vst.msk [vmem:[#allocation4 + $0x18] sm:$0x3] %vm2606, %v2599
  %2608 = vst [vmem:[#allocation4 + $0x10] sm:$0xc] %v2565
  %vm2609 = vcmask 781314
  %2610 = vst.msk [vmem:[#allocation4 + $0x18] sm:$0xc] %vm2609, %v2566
  %2611 = vst [vmem:[#allocation4 + $0x10] sm:$0x30] %v2565
  %2612 = vst.msk [vmem:[#allocation4 + $0x18] sm:$0x30] %vm2596, %v2566
  %v2613 = vrot.slane %v2565, 6
  %v2614 = vrot.slane %v2566, 6
  %2617 = vst [vmem:[#allocation4 + $0x10] sm:$0xc0] %v2613
  %2618 = vst.msk [vmem:[#allocation4 + $0x18] sm:$0xc0] %vm2603, %v2614
  %2619 = vst [vmem:[#allocation4 + $0x20] sm:$0x3] %v2613
  %2620 = vst.msk [vmem:[#allocation4 + $0x28] sm:$0x3] %vm2606, %v2614
  %2621 = vst [vmem:[#allocation4 + $0x20] sm:$0xc] %v2591
  %2622 = vst.msk [vmem:[#allocation4 + $0x28] sm:$0xc] %vm2609, %v2592
  %v2625 = vrot.slane %v2567, 4
  %v2626 = vrot.slane %v2568, 4
  %2629 = vst [vmem:[#allocation4 + $0x20] sm:$0x30] %v2625
  %2630 = vst.msk [vmem:[#allocation4 + $0x28] sm:$0x30] %vm2596, %v2626
  %v2631 = vrot.slane %v2567, 2
  %v2632 = vrot.slane %v2568, 2
  %2635 = vst [vmem:[#allocation4 + $0x20] sm:$0xc0] %v2631
  %2636 = vst.msk [vmem:[#allocation4 + $0x28] sm:$0xc0] %vm2603, %v2632
  %2637 = vst [vmem:[#allocation4 + $0x30] sm:$0x3] %v2631
  %2638 = vst.msk [vmem:[#allocation4 + $0x38] sm:$0x3] %vm2606, %v2632
  %2639 = vst [vmem:[#allocation4 + $0x30] sm:$0xc] %v2567
  %2640 = vst.msk [vmem:[#allocation4 + $0x38] sm:$0xc] %vm2609, %v2568
  %2641 = vst [vmem:[#allocation4 + $0x30] sm:$0x30] %v2567
  %2642 = vst.msk [vmem:[#allocation4 + $0x38] sm:$0x30] %vm2596, %v2568
  %v2643 = vrot.slane %v2567, 6
  %v2644 = vrot.slane %v2568, 6
  %2647 = vst [vmem:[#allocation4 + $0x30] sm:$0xc0] %v2643
  %2648 = vst.msk [vmem:[#allocation4 + $0x38] sm:$0xc0] %vm2603, %v2644
  %2649 = vst [vmem:[#allocation4 + $0x40] sm:$0x3] %v2643
  %2650 = vst.msk [vmem:[#allocation4 + $0x48] sm:$0x3] %vm2606, %v2644
  %2651 = vst [vmem:[#allocation4 + $0x40] sm:$0xc] %v2625
  %2652 = vst.msk [vmem:[#allocation4 + $0x48] sm:$0xc] %vm2609, %v2626
  %v2655 = vrot.slane %v2569, 4
  %v2656 = vrot.slane %v2570, 4
  %2659 = vst [vmem:[#allocation4 + $0x40] sm:$0x30] %v2655
  %2660 = vst.msk [vmem:[#allocation4 + $0x48] sm:$0x30] %vm2596, %v2656
  %v2661 = vrot.slane %v2569, 2
  %v2662 = vrot.slane %v2570, 2
  %2665 = vst [vmem:[#allocation4 + $0x40] sm:$0xc0] %v2661
  %2666 = vst.msk [vmem:[#allocation4 + $0x48] sm:$0xc0] %vm2603, %v2662
  %2667 = vst [vmem:[#allocation4 + $0x50] sm:$0x3] %v2661
  %2668 = vst.msk [vmem:[#allocation4 + $0x58] sm:$0x3] %vm2606, %v2662
  %2669 = vst [vmem:[#allocation4 + $0x50] sm:$0xc] %v2569
  %2670 = vst.msk [vmem:[#allocation4 + $0x58] sm:$0xc] %vm2609, %v2570
  %2671 = vst [vmem:[#allocation4 + $0x50] sm:$0x30] %v2569
  %2672 = vst.msk [vmem:[#allocation4 + $0x58] sm:$0x30] %vm2596, %v2570
  %v2673 = vrot.slane %v2569, 6
  %v2674 = vrot.slane %v2570, 6
  %2677 = vst [vmem:[#allocation4 + $0x50] sm:$0xc0] %v2673
  %2678 = vst.msk [vmem:[#allocation4 + $0x58] sm:$0xc0] %vm2603, %v2674
  %2679 = vst [vmem:[#allocation4 + $0x60] sm:$0x3] %v2673
  %2680 = vst.msk [vmem:[#allocation4 + $0x68] sm:$0x3] %vm2606, %v2674
  %2681 = vst [vmem:[#allocation4 + $0x60] sm:$0xc] %v2655
  %2682 = vst.msk [vmem:[#allocation4 + $0x68] sm:$0xc] %vm2609, %v2656
  %v2685 = vrot.slane %v2571, 4
  %v2686 = vrot.slane %v2572, 4
  %2689 = vst [vmem:[#allocation4 + $0x60] sm:$0x30] %v2685
  %2690 = vst.msk [vmem:[#allocation4 + $0x68] sm:$0x30] %vm2596, %v2686
  %v2691 = vrot.slane %v2571, 2
  %v2692 = vrot.slane %v2572, 2
  %2695 = vst [vmem:[#allocation4 + $0x60] sm:$0xc0] %v2691
  %2696 = vst.msk [vmem:[#allocation4 + $0x68] sm:$0xc0] %vm2603, %v2692
  %2697 = vst [vmem:[#allocation4 + $0x70] sm:$0x3] %v2691
  %2698 = vst.msk [vmem:[#allocation4 + $0x78] sm:$0x3] %vm2606, %v2692
  %2699 = vst [vmem:[#allocation4 + $0x70] sm:$0xc] %v2571
  %2700 = vst.msk [vmem:[#allocation4 + $0x78] sm:$0xc] %vm2609, %v2572
  %v2701 = vld [vmem:[#allocation4] sm:$0xff]
  %v2702 = vld [vmem:[#allocation4 + $0x8] sm:$0xff]
  %v2703 = vld [vmem:[#allocation4 + $0x10] sm:$0xff]
  %v2704 = vld [vmem:[#allocation4 + $0x18] sm:$0xff]
  %v2705 = vld [vmem:[#allocation4 + $0x20] sm:$0xff]
  %v2706 = vld [vmem:[#allocation4 + $0x28] sm:$0xff]
  %v2707 = vld [vmem:[#allocation4 + $0x30] sm:$0xff]
  %v2708 = vld [vmem:[#allocation4 + $0x38] sm:$0xff]
  %v2709 = vld [vmem:[#allocation4 + $0x40] sm:$0xff]
  %v2710 = vld [vmem:[#allocation4 + $0x48] sm:$0xff]
  %v2711 = vld [vmem:[#allocation4 + $0x50] sm:$0xff]
  %v2712 = vld [vmem:[#allocation4 + $0x58] sm:$0xff]
  %v2713 = vld [vmem:[#allocation4 + $0x60] sm:$0xff]
  %v2714 = vld [vmem:[#allocation4 + $0x68] sm:$0xff]
  %v2715 = vpack.c.bf16 %v2703, %v2701
  %v2716 = vpack.c.bf16 %v2704, %v2702
  %v2717 = vpack.c.bf16 %v2707, %v2705
  %v2718 = vpack.c.bf16 %v2708, %v2706
  %v2719 = vpack.c.bf16 %v2711, %v2709
  %v2720 = vpack.c.bf16 %v2712, %v2710
  %v2721 = vpack.c.bf16 %v2713, %v2713
  %v2722 = vpack.c.bf16 %v2714, %v2714
  %v2723 = vld [vmem:[%s4] sm:$0xf]
  %v2724 = vld [vmem:[%s4 + $0x4] sm:$0xf]
  %v2725 = vld [vmem:[%s4 + $0x8] sm:$0xf]
  %v2726 = vld [vmem:[%s4 + $0xc] sm:$0xf]
  %v2727 = vld [vmem:[%s4 + $0x10] sm:$0xf]
  %v2728 = vld [vmem:[%s4 + $0x14] sm:$0xf]
  %v2729 = vld [vmem:[%s4 + $0x18] sm:$0xf]
  %v2730 = vld [vmem:[%s4 + $0x1c] sm:$0xf]
  %v2731 = vld [vmem:[%s4 + $0x20] sm:$0xf]
  %v2732 = vld [vmem:[%s4 + $0x24] sm:$0xf]
  %v2733 = vld [vmem:[%s4 + $0x28] sm:$0xf]
  %v2734 = vld [vmem:[%s4 + $0x2c] sm:$0xf]
  %v2735 = vld [vmem:[%s4 + $0x30] sm:$0xf]
  %v2736 = vld [vmem:[%s4 + $0x34] sm:$0xf]
  %v2737 = vld [vmem:[%s4 + $0x38] sm:$0xf]
  %v2738 = vld [vmem:[%s4 + $0x3c] sm:$0xf]
  %v2739 = vld [vmem:[%s4 + $0x40] sm:$0xf]
  %v2740 = vld [vmem:[%s4 + $0x44] sm:$0xf]
  %v2741 = vld [vmem:[%s4 + $0x48] sm:$0xf]
  %v2742 = vld [vmem:[%s4 + $0x4c] sm:$0xf]
  %v2743 = vld [vmem:[%s4 + $0x50] sm:$0xf]
  %v2744 = vld [vmem:[%s4 + $0x54] sm:$0xf]
  %v2745 = vld [vmem:[%s4 + $0x58] sm:$0xf]
  %v2746 = vld [vmem:[%s4 + $0x5c] sm:$0xf]
  %v2747 = vld [vmem:[%s4 + $0x60] sm:$0xf]
  %v2748 = vld [vmem:[%s4 + $0x64] sm:$0xf]
  %v2749 = vld [vmem:[%s4 + $0x68] sm:$0xf]
  %v2750 = vld [vmem:[%s4 + $0x6c] sm:$0xf]
  %v2751 = vld [vmem:[#allocation4] sm:$0xfc]
  %v2752 = vld [vmem:[#allocation4 + $0x8] sm:$0xfc]
  %v2753 = vld [vmem:[#allocation4 + $0x70] sm:$0x3]
  %v2754 = vld [vmem:[#allocation4 + $0x78] sm:$0x3]
  %v2755 = vpack.c.bf16 %v2703, %v2751
  %v2756 = vpack.c.bf16 %v2704, %v2752
  %v2757 = vpack.c.bf16 %v2753, %v2713
  %v2758 = vpack.c.bf16 %v2754, %v2714
  %s2759 = scalar_lea.vmem %s4, 112
  %v2760 = vld [vmem:[%s2759] sm:$0xf]
  %v2761 = vld [vmem:[%s2759 + $0x4] sm:$0xf]
  %v2762 = vld [vmem:[%s2759 + $0x8] sm:$0xf]
  %v2763 = vld [vmem:[%s2759 + $0xc] sm:$0xf]
  %v2764 = vld [vmem:[%s2759 + $0x10] sm:$0xf]
  %v2765 = vld [vmem:[%s2759 + $0x14] sm:$0xf]
  %v2766 = vld [vmem:[%s2759 + $0x18] sm:$0xf]
  %v2767 = vld [vmem:[%s2759 + $0x1c] sm:$0xf]
  %v2768 = vld [vmem:[%s2759 + $0x20] sm:$0xf]
  %v2769 = vld [vmem:[%s2759 + $0x24] sm:$0xf]
  %v2770 = vld [vmem:[%s2759 + $0x28] sm:$0xf]
  %v2771 = vld [vmem:[%s2759 + $0x2c] sm:$0xf]
  %v2772 = vld [vmem:[%s2759 + $0x30] sm:$0xf]
  %v2773 = vld [vmem:[%s2759 + $0x34] sm:$0xf]
  %v2774 = vld [vmem:[%s2759 + $0x38] sm:$0xf]
  %v2775 = vld [vmem:[%s2759 + $0x3c] sm:$0xf]
  %v2776 = vld [vmem:[%s2759 + $0x40] sm:$0xf]
  %v2777 = vld [vmem:[%s2759 + $0x44] sm:$0xf]
  %v2778 = vld [vmem:[%s2759 + $0x48] sm:$0xf]
  %v2779 = vld [vmem:[%s2759 + $0x4c] sm:$0xf]
  %v2780 = vld [vmem:[%s2759 + $0x50] sm:$0xf]
  %v2781 = vld [vmem:[%s2759 + $0x54] sm:$0xf]
  %v2782 = vld [vmem:[%s2759 + $0x58] sm:$0xf]
  %v2783 = vld [vmem:[%s2759 + $0x5c] sm:$0xf]
  %v2784 = vld [vmem:[%s2759 + $0x60] sm:$0xf]
  %v2785 = vld [vmem:[%s2759 + $0x64] sm:$0xf]
  %v2786 = vld [vmem:[%s2759 + $0x68] sm:$0xf]
  %v2787 = vld [vmem:[%s2759 + $0x6c] sm:$0xf]
  %v2796 = vrot.slane %v2755, 1
  %v2797 = vrot.slane %v2717, 1
  %v2798 = vsel %vm982, %v2796, %v2797
  %v2799 = vrot.slane %v2756, 1
  %v2800 = vrot.slane %v2718, 1
  %v2801 = vsel %vm982, %v2799, %v2800
  %v2802 = vrot.slane %v2719, 1
  %v2803 = vsel %vm982, %v2797, %v2802
  %v2804 = vrot.slane %v2720, 1
  %v2805 = vsel %vm982, %v2800, %v2804
  %v2806 = vrot.slane %v2757, 1
  %v2807 = vsel %vm982, %v2802, %v2806
  %v2808 = vrot.slane %v2758, 1
  %v2809 = vsel %vm982, %v2804, %v2808
  %v2842 = vunpack.c.l.b16 %v2760
  %v2843 = vunpack.c.l.b16 %v2761
  %v2844 = vunpack.c.l.b16 %v2762
  %v2845 = vunpack.c.l.b16 %v2763
  %v2846 = vunpack.c.l.b16 %v2764
  %v2847 = vunpack.c.l.b16 %v2765
  %v2848 = vunpack.c.l.b16 %v2766
  %v2849 = vunpack.c.l.b16 %v2767
  %v2850 = vunpack.c.l.b16 %v2768
  %v2851 = vunpack.c.l.b16 %v2769
  %v2852 = vunpack.c.l.b16 %v2770
  %v2853 = vunpack.c.l.b16 %v2771
  %v2854 = vunpack.c.l.b16 %v2772
  %v2855 = vunpack.c.l.b16 %v2773
  %v2856 = vunpack.c.l.b16 %v2774
  %v2857 = vunpack.c.l.b16 %v2775
  %v2858 = vunpack.c.l.b16 %v2776
  %v2859 = vunpack.c.l.b16 %v2777
  %v2860 = vunpack.c.l.b16 %v2778
  %v2861 = vunpack.c.l.b16 %v2779
  %v2862 = vunpack.c.l.b16 %v2780
  %v2863 = vunpack.c.l.b16 %v2781
  %v2864 = vunpack.c.l.b16 %v2782
  %v2865 = vunpack.c.l.b16 %v2783
  %v2866 = vunpack.c.l.b16 %v2784
  %v2867 = vunpack.c.l.b16 %v2785
  %v2868 = vunpack.c.l.b16 %v2786
  %v2869 = vunpack.c.l.b16 %v2787
  %v2870 = vpack.c.b16 %v2843, %v2842
  %v2871 = vpack.c.b16 %v2845, %v2844
  %v2872 = vpack.c.b16 %v2847, %v2846
  %v2873 = vpack.c.b16 %v2849, %v2848
  %v2874 = vpack.c.b16 %v2851, %v2850
  %v2875 = vpack.c.b16 %v2853, %v2852
  %v2876 = vpack.c.b16 %v2855, %v2854
  %v2877 = vpack.c.b16 %v2857, %v2856
  %v2878 = vpack.c.b16 %v2859, %v2858
  %v2879 = vpack.c.b16 %v2861, %v2860
  %v2880 = vpack.c.b16 %v2863, %v2862
  %v2881 = vpack.c.b16 %v2865, %v2864
  %v2882 = vpack.c.b16 %v2867, %v2866
  %v2883 = vpack.c.b16 %v2869, %v2868
  %v2899 = vsel %vm2314, %v2801, 0
  %v2902 = vsel %vm2314, %v2805, 0
  %v2905 = vsel %vm2314, %v2809, 0
  %v2908 = vsel %vm2314, %v2808, 0
  %2910 = vmatprep.subr.bf16.mxu0 0
  %2911 = vmatpush1.bf16.msra.mxu0 %v2870
  %2912 = vmatprep.subr.bf16.mxu0 0
  %2913 = vmatpush1.bf16.msra.mxu0 %v2871
  %2914 = vmatprep.subr.bf16.mxu0 0
  %2915 = vmatpush1.bf16.msra.mxu0 %v2872
  %2916 = vmatprep.subr.bf16.mxu0 0
  %2917 = vmatpush1.bf16.msra.mxu0 %v2873
  %2918 = vmatprep.subr.bf16.mxu0 0
  %2919 = vmatpush1.bf16.msra.mxu0 %v2874
  %2920 = vmatprep.subr.bf16.mxu0 0
  %2921 = vmatpush1.bf16.msra.mxu0 %v2875
  %2922 = vmatprep.subr.bf16.mxu0 0
  %2923 = vmatpush1.bf16.msra.mxu0 %v2876
  %2924 = vmatprep.subr.bf16.mxu0 0
  %2925 = vmatpush1.bf16.msra.mxu0 %v2877
  %2926 = vmatprep.subr.bf16.mxu0 0
  %2927 = vmatpush1.bf16.msra.mxu0 %v2878
  %2928 = vmatprep.subr.bf16.mxu0 0
  %2929 = vmatpush1.bf16.msra.mxu0 %v2879
  %2930 = vmatprep.subr.bf16.mxu0 0
  %2931 = vmatpush1.bf16.msra.mxu0 %v2880
  %2932 = vmatprep.subr.bf16.mxu0 0
  %2933 = vmatpush1.bf16.msra.mxu0 %v2881
  %2934 = vmatprep.subr.bf16.mxu0 0
  %2935 = vmatpush1.bf16.msra.mxu0 %v2882
  %2936 = vmatprep.subr.bf16.mxu0 0
  %2937 = vmatpush1.bf16.msra.mxu0 %v2883
  %2938 = vmatprep.subr.bf16.mxu0 0
  %2939 = vmatpush1.bf16.msra.mxu0 0
  %2940 = vmatprep.subr.bf16.mxu0 0
  %2941 = vmatpush1.bf16.msra.mxu0 0
  %2942 = vmatprep.mubr.bf16.mxu0 %v2899
  %2943 = vmatmul.mubr.bf16.gmra.mrb[0].mxu0 %v2798
  %v2944 = vpop.f32.mrb[0].mxu0
  %v2945 = vadd.f32 0.0, %v2944
  %v2946 = vpop.f32.mrb[0].mxu0
  %v2947 = vpop.f32.mrb[0].mxu0
  %v2948 = vadd.f32 0.0, %v2947
  %v2949 = vpop.f32.mrb[0].mxu0
  %2950 = vmatprep.mubr.bf16.mxu0 %v2902
  %2951 = vmatmul.mubr.bf16.gmra.mrb[0].mxu0 %v2803
  %v2952 = vpop.f32.mrb[0].mxu0
  %v2953 = vadd.f32 0.0, %v2952
  %v2954 = vpop.f32.mrb[0].mxu0
  %v2955 = vpop.f32.mrb[0].mxu0
  %v2956 = vadd.f32 0.0, %v2955
  %v2957 = vpop.f32.mrb[0].mxu0
  %2958 = vmatprep.mubr.bf16.mxu0 %v2905
  %2959 = vmatmul.mubr.bf16.gmra.mrb[0].mxu0 %v2807
  %v2960 = vpop.f32.mrb[0].mxu0
  %v2961 = vadd.f32 0.0, %v2960
  %v2962 = vpop.f32.mrb[0].mxu0
  %v2963 = vpop.f32.mrb[0].mxu0
  %v2964 = vadd.f32 0.0, %v2963
  %v2965 = vpop.f32.mrb[0].mxu0
  %2966 = vmatprep.mubr.bf16.mxu0 %v2908
  %2967 = vmatmul.mubr.bf16.gmra.mrb[0].mxu0 %v2806
  %v2968 = vpop.f32.mrb[0].mxu0
  %v2969 = vadd.f32 0.0, %v2968
  %v2970 = vpop.f32.mrb[0].mxu0
  %v2971 = vpop.f32.mrb[0].mxu0
  %v2972 = vpop.f32.mrb[0].mxu0
  %2973 = vdwg.mxu0
  %v3002 = vunpack.c.l.b16 %v2723
  %v3003 = vunpack.c.l.b16 %v2724
  %v3004 = vunpack.c.l.b16 %v2725
  %v3005 = vunpack.c.l.b16 %v2726
  %v3006 = vunpack.c.l.b16 %v2727
  %v3007 = vunpack.c.l.b16 %v2728
  %v3008 = vunpack.c.l.b16 %v2729
  %v3009 = vunpack.c.l.b16 %v2730
  %v3010 = vunpack.c.l.b16 %v2731
  %v3011 = vunpack.c.l.b16 %v2732
  %v3012 = vunpack.c.l.b16 %v2733
  %v3013 = vunpack.c.l.b16 %v2734
  %v3014 = vunpack.c.l.b16 %v2735
  %v3015 = vunpack.c.l.b16 %v2736
  %v3016 = vunpack.c.l.b16 %v2737
  %v3017 = vunpack.c.l.b16 %v2738
  %v3018 = vunpack.c.l.b16 %v2739
  %v3019 = vunpack.c.l.b16 %v2740
  %v3020 = vunpack.c.l.b16 %v2741
  %v3021 = vunpack.c.l.b16 %v2742
  %v3022 = vunpack.c.l.b16 %v2743
  %v3023 = vunpack.c.l.b16 %v2744
  %v3024 = vunpack.c.l.b16 %v2745
  %v3025 = vunpack.c.l.b16 %v2746
  %v3026 = vunpack.c.l.b16 %v2747
  %v3027 = vunpack.c.l.b16 %v2748
  %v3028 = vunpack.c.l.b16 %v2749
  %v3029 = vunpack.c.l.b16 %v2750
  %v3030 = vpack.c.b16 %v3003, %v3002
  %v3031 = vpack.c.b16 %v3005, %v3004
  %v3032 = vpack.c.b16 %v3007, %v3006
  %v3033 = vpack.c.b16 %v3009, %v3008
  %v3034 = vpack.c.b16 %v3011, %v3010
  %v3035 = vpack.c.b16 %v3013, %v3012
  %v3036 = vpack.c.b16 %v3015, %v3014
  %v3037 = vpack.c.b16 %v3017, %v3016
  %v3038 = vpack.c.b16 %v3019, %v3018
  %v3039 = vpack.c.b16 %v3021, %v3020
  %v3040 = vpack.c.b16 %v3023, %v3022
  %v3041 = vpack.c.b16 %v3025, %v3024
  %v3042 = vpack.c.b16 %v3027, %v3026
  %v3043 = vpack.c.b16 %v3029, %v3028
  %v3059 = vsel %vm2314, %v2716, 0
  %v3062 = vsel %vm2314, %v2718, 0
  %v3065 = vsel %vm2314, %v2720, 0
  %v3068 = vsel %vm2314, %v2722, 0
  %3070 = vmatprep.subr.bf16.mxu0 0
  %3071 = vmatpush1.bf16.msra.mxu0 %v3030
  %3072 = vmatprep.subr.bf16.mxu0 0
  %3073 = vmatpush1.bf16.msra.mxu0 %v3031
  %3074 = vmatprep.subr.bf16.mxu0 0
  %3075 = vmatpush1.bf16.msra.mxu0 %v3032
  %3076 = vmatprep.subr.bf16.mxu0 0
  %3077 = vmatpush1.bf16.msra.mxu0 %v3033
  %3078 = vmatprep.subr.bf16.mxu0 0
  %3079 = vmatpush1.bf16.msra.mxu0 %v3034
  %3080 = vmatprep.subr.bf16.mxu0 0
  %3081 = vmatpush1.bf16.msra.mxu0 %v3035
  %3082 = vmatprep.subr.bf16.mxu0 0
  %3083 = vmatpush1.bf16.msra.mxu0 %v3036
  %3084 = vmatprep.subr.bf16.mxu0 0
  %3085 = vmatpush1.bf16.msra.mxu0 %v3037
  %3086 = vmatprep.subr.bf16.mxu0 0
  %3087 = vmatpush1.bf16.msra.mxu0 %v3038
  %3088 = vmatprep.subr.bf16.mxu0 0
  %3089 = vmatpush1.bf16.msra.mxu0 %v3039
  %3090 = vmatprep.subr.bf16.mxu0 0
  %3091 = vmatpush1.bf16.msra.mxu0 %v3040
  %3092 = vmatprep.subr.bf16.mxu0 0
  %3093 = vmatpush1.bf16.msra.mxu0 %v3041
  %3094 = vmatprep.subr.bf16.mxu0 0
  %3095 = vmatpush1.bf16.msra.mxu0 %v3042
  %3096 = vmatprep.subr.bf16.mxu0 0
  %3097 = vmatpush1.bf16.msra.mxu0 %v3043
  %3098 = vmatprep.subr.bf16.mxu0 0
  %3099 = vmatpush1.bf16.msra.mxu0 0
  %3100 = vmatprep.subr.bf16.mxu0 0
  %3101 = vmatpush1.bf16.msra.mxu0 0
  %3102 = vmatprep.mubr.bf16.mxu0 %v3059
  %3103 = vmatmul.mubr.bf16.gmra.mrb[0].mxu0 %v2715
  %v3104 = vpop.f32.mrb[0].mxu0
  %v3105 = vadd.f32 %v2945, %v3104
  %v3106 = vpop.f32.mrb[0].mxu0
  %v3107 = vpop.f32.mrb[0].mxu0
  %v3108 = vadd.f32 %v2948, %v3107
  %v3109 = vpop.f32.mrb[0].mxu0
  %3110 = vmatprep.mubr.bf16.mxu0 %v3062
  %3111 = vmatmul.mubr.bf16.gmra.mrb[0].mxu0 %v2717
  %v3112 = vpop.f32.mrb[0].mxu0
  %v3113 = vadd.f32 %v2953, %v3112
  %v3114 = vpop.f32.mrb[0].mxu0
  %v3115 = vpop.f32.mrb[0].mxu0
  %v3116 = vadd.f32 %v2956, %v3115
  %v3117 = vpop.f32.mrb[0].mxu0
  %3118 = vmatprep.mubr.bf16.mxu0 %v3065
  %3119 = vmatmul.mubr.bf16.gmra.mrb[0].mxu0 %v2719
  %v3120 = vpop.f32.mrb[0].mxu0
  %v3121 = vadd.f32 %v2961, %v3120
  %v3122 = vpop.f32.mrb[0].mxu0
  %v3123 = vpop.f32.mrb[0].mxu0
  %v3124 = vadd.f32 %v2964, %v3123
  %v3125 = vpop.f32.mrb[0].mxu0
  %3126 = vmatprep.mubr.bf16.mxu0 %v3068
  %3127 = vmatmul.mubr.bf16.gmra.mrb[0].mxu0 %v2721
  %v3128 = vpop.f32.mrb[0].mxu0
  %v3129 = vadd.f32 %v2969, %v3128
  %v3130 = vpop.f32.mrb[0].mxu0
  %v3131 = vpop.f32.mrb[0].mxu0
  %v3132 = vpop.f32.mrb[0].mxu0
  %3133 = vdwg.mxu0
  %v3134 = vld [vmem:[#allocation4] sm:$0xf0]
  %v3135 = vld [vmem:[#allocation4 + $0x8] sm:$0xf0]
  %v3136 = vld [vmem:[#allocation4 + $0x70] sm:$0xf]
  %v3137 = vld [vmem:[#allocation4 + $0x78] sm:$0xf]
  %v3138 = vpack.c.bf16 %v2703, %v3134
  %v3139 = vpack.c.bf16 %v2704, %v3135
  %v3140 = vpack.c.bf16 %v3136, %v2713
  %v3141 = vpack.c.bf16 %v3137, %v2714
  %s3142 = scalar_lea.vmem %s4, 224
  %v3143 = vld [vmem:[%s3142] sm:$0xf]
  %v3144 = vld [vmem:[%s3142 + $0x4] sm:$0xf]
  %v3145 = vld [vmem:[%s3142 + $0x8] sm:$0xf]
  %v3146 = vld [vmem:[%s3142 + $0xc] sm:$0xf]
  %v3147 = vld [vmem:[%s3142 + $0x10] sm:$0xf]
  %v3148 = vld [vmem:[%s3142 + $0x14] sm:$0xf]
  %v3149 = vld [vmem:[%s3142 + $0x18] sm:$0xf]
  %v3150 = vld [vmem:[%s3142 + $0x1c] sm:$0xf]
  %v3151 = vld [vmem:[%s3142 + $0x20] sm:$0xf]
  %v3152 = vld [vmem:[%s3142 + $0x24] sm:$0xf]
  %v3153 = vld [vmem:[%s3142 + $0x28] sm:$0xf]
  %v3154 = vld [vmem:[%s3142 + $0x2c] sm:$0xf]
  %v3155 = vld [vmem:[%s3142 + $0x30] sm:$0xf]
  %v3156 = vld [vmem:[%s3142 + $0x34] sm:$0xf]
  %v3157 = vld [vmem:[%s3142 + $0x38] sm:$0xf]
  %v3158 = vld [vmem:[%s3142 + $0x3c] sm:$0xf]
  %v3159 = vld [vmem:[%s3142 + $0x40] sm:$0xf]
  %v3160 = vld [vmem:[%s3142 + $0x44] sm:$0xf]
  %v3161 = vld [vmem:[%s3142 + $0x48] sm:$0xf]
  %v3162 = vld [vmem:[%s3142 + $0x4c] sm:$0xf]
  %v3163 = vld [vmem:[%s3142 + $0x50] sm:$0xf]
  %v3164 = vld [vmem:[%s3142 + $0x54] sm:$0xf]
  %v3165 = vld [vmem:[%s3142 + $0x58] sm:$0xf]
  %v3166 = vld [vmem:[%s3142 + $0x5c] sm:$0xf]
  %v3167 = vld [vmem:[%s3142 + $0x60] sm:$0xf]
  %v3168 = vld [vmem:[%s3142 + $0x64] sm:$0xf]
  %v3169 = vld [vmem:[%s3142 + $0x68] sm:$0xf]
  %v3170 = vld [vmem:[%s3142 + $0x6c] sm:$0xf]
  %v3175 = vrot.slane %v3138, 2
  %v3176 = vrot.slane %v2717, 2
  %v3177 = vsel %vm1464, %v3175, %v3176
  %v3178 = vrot.slane %v3139, 2
  %v3179 = vrot.slane %v2718, 2
  %v3180 = vsel %vm1464, %v3178, %v3179
  %v3181 = vrot.slane %v2719, 2
  %v3182 = vsel %vm1464, %v3176, %v3181
  %v3183 = vrot.slane %v2720, 2
  %v3184 = vsel %vm1464, %v3179, %v3183
  %v3185 = vrot.slane %v3140, 2
  %v3186 = vsel %vm1464, %v3181, %v3185
  %v3187 = vrot.slane %v3141, 2
  %v3188 = vsel %vm1464, %v3183, %v3187
  %v3221 = vunpack.c.l.b16 %v3143
  %v3222 = vunpack.c.l.b16 %v3144
  %v3223 = vunpack.c.l.b16 %v3145
  %v3224 = vunpack.c.l.b16 %v3146
  %v3225 = vunpack.c.l.b16 %v3147
  %v3226 = vunpack.c.l.b16 %v3148
  %v3227 = vunpack.c.l.b16 %v3149
  %v3228 = vunpack.c.l.b16 %v3150
  %v3229 = vunpack.c.l.b16 %v3151
  %v3230 = vunpack.c.l.b16 %v3152
  %v3231 = vunpack.c.l.b16 %v3153
  %v3232 = vunpack.c.l.b16 %v3154
  %v3233 = vunpack.c.l.b16 %v3155
  %v3234 = vunpack.c.l.b16 %v3156
  %v3235 = vunpack.c.l.b16 %v3157
  %v3236 = vunpack.c.l.b16 %v3158
  %v3237 = vunpack.c.l.b16 %v3159
  %v3238 = vunpack.c.l.b16 %v3160
  %v3239 = vunpack.c.l.b16 %v3161
  %v3240 = vunpack.c.l.b16 %v3162
  %v3241 = vunpack.c.l.b16 %v3163
  %v3242 = vunpack.c.l.b16 %v3164
  %v3243 = vunpack.c.l.b16 %v3165
  %v3244 = vunpack.c.l.b16 %v3166
  %v3245 = vunpack.c.l.b16 %v3167
  %v3246 = vunpack.c.l.b16 %v3168
  %v3247 = vunpack.c.l.b16 %v3169
  %v3248 = vunpack.c.l.b16 %v3170
  %v3249 = vpack.c.b16 %v3222, %v3221
  %v3250 = vpack.c.b16 %v3224, %v3223
  %v3251 = vpack.c.b16 %v3226, %v3225
  %v3252 = vpack.c.b16 %v3228, %v3227
  %v3253 = vpack.c.b16 %v3230, %v3229
  %v3254 = vpack.c.b16 %v3232, %v3231
  %v3255 = vpack.c.b16 %v3234, %v3233
  %v3256 = vpack.c.b16 %v3236, %v3235
  %v3257 = vpack.c.b16 %v3238, %v3237
  %v3258 = vpack.c.b16 %v3240, %v3239
  %v3259 = vpack.c.b16 %v3242, %v3241
  %v3260 = vpack.c.b16 %v3244, %v3243
  %v3261 = vpack.c.b16 %v3246, %v3245
  %v3262 = vpack.c.b16 %v3248, %v3247
  %v3278 = vsel %vm2314, %v3180, 0
  %v3281 = vsel %vm2314, %v3184, 0
  %v3284 = vsel %vm2314, %v3188, 0
  %v3287 = vsel %vm2314, %v3187, 0
  %3289 = vmatprep.subr.bf16.mxu0 0
  %3290 = vmatpush1.bf16.msra.mxu0 %v3249
  %3291 = vmatprep.subr.bf16.mxu0 0
  %3292 = vmatpush1.bf16.msra.mxu0 %v3250
  %3293 = vmatprep.subr.bf16.mxu0 0
  %3294 = vmatpush1.bf16.msra.mxu0 %v3251
  %3295 = vmatprep.subr.bf16.mxu0 0
  %3296 = vmatpush1.bf16.msra.mxu0 %v3252
  %3297 = vmatprep.subr.bf16.mxu0 0
  %3298 = vmatpush1.bf16.msra.mxu0 %v3253
  %3299 = vmatprep.subr.bf16.mxu0 0
  %3300 = vmatpush1.bf16.msra.mxu0 %v3254
  %3301 = vmatprep.subr.bf16.mxu0 0
  %3302 = vmatpush1.bf16.msra.mxu0 %v3255
  %3303 = vmatprep.subr.bf16.mxu0 0
  %3304 = vmatpush1.bf16.msra.mxu0 %v3256
  %3305 = vmatprep.subr.bf16.mxu0 0
  %3306 = vmatpush1.bf16.msra.mxu0 %v3257
  %3307 = vmatprep.subr.bf16.mxu0 0
  %3308 = vmatpush1.bf16.msra.mxu0 %v3258
  %3309 = vmatprep.subr.bf16.mxu0 0
  %3310 = vmatpush1.bf16.msra.mxu0 %v3259
  %3311 = vmatprep.subr.bf16.mxu0 0
  %3312 = vmatpush1.bf16.msra.mxu0 %v3260
  %3313 = vmatprep.subr.bf16.mxu0 0
  %3314 = vmatpush1.bf16.msra.mxu0 %v3261
  %3315 = vmatprep.subr.bf16.mxu0 0
  %3316 = vmatpush1.bf16.msra.mxu0 %v3262
  %3317 = vmatprep.subr.bf16.mxu0 0
  %3318 = vmatpush1.bf16.msra.mxu0 0
  %3319 = vmatprep.subr.bf16.mxu0 0
  %3320 = vmatpush1.bf16.msra.mxu0 0
  %3321 = vmatprep.mubr.bf16.mxu0 %v3278
  %3322 = vmatmul.mubr.bf16.gmra.mrb[0].mxu0 %v3177
  %v3323 = vpop.f32.mrb[0].mxu0
  %v3324 = vadd.f32 0.0, %v3323
  %v3325 = vpop.f32.mrb[0].mxu0
  %v3326 = vpop.f32.mrb[0].mxu0
  %v3327 = vadd.f32 0.0, %v3326
  %v3328 = vpop.f32.mrb[0].mxu0
  %3329 = vmatprep.mubr.bf16.mxu0 %v3281
  %3330 = vmatmul.mubr.bf16.gmra.mrb[0].mxu0 %v3182
  %v3331 = vpop.f32.mrb[0].mxu0
  %v3332 = vadd.f32 0.0, %v3331
  %v3333 = vpop.f32.mrb[0].mxu0
  %v3334 = vpop.f32.mrb[0].mxu0
  %v3335 = vadd.f32 0.0, %v3334
  %v3336 = vpop.f32.mrb[0].mxu0
  %3337 = vmatprep.mubr.bf16.mxu0 %v3284
  %3338 = vmatmul.mubr.bf16.gmra.mrb[0].mxu0 %v3186
  %v3339 = vpop.f32.mrb[0].mxu0
  %v3340 = vadd.f32 0.0, %v3339
  %v3341 = vpop.f32.mrb[0].mxu0
  %v3342 = vpop.f32.mrb[0].mxu0
  %v3343 = vadd.f32 0.0, %v3342
  %v3344 = vpop.f32.mrb[0].mxu0
  %3345 = vmatprep.mubr.bf16.mxu0 %v3287
  %3346 = vmatmul.mubr.bf16.gmra.mrb[0].mxu0 %v3185
  %v3347 = vpop.f32.mrb[0].mxu0
  %v3348 = vadd.f32 0.0, %v3347
  %v3349 = vpop.f32.mrb[0].mxu0
  %v3350 = vpop.f32.mrb[0].mxu0
  %v3351 = vpop.f32.mrb[0].mxu0
  %3352 = vdwg.mxu0
  %v3353 = vadd.f32 %v3105, %v3324
  %v3354 = vadd.f32 %v3108, %v3327
  %v3355 = vadd.f32 %v3113, %v3332
  %v3356 = vadd.f32 %v3116, %v3335
  %v3357 = vadd.f32 %v3121, %v3340
  %v3358 = vadd.f32 %v3124, %v3343
  %v3359 = vadd.f32 %v3129, %v3348
  %v3360 = vld [vmem:[#allocation4] sm:$0xc0]
  %v3361 = vld [vmem:[#allocation4 + $0x8] sm:$0xc0]
  %v3362 = vld [vmem:[#allocation4 + $0x70] sm:$0x3f]
  %v3363 = vld [vmem:[#allocation4 + $0x78] sm:$0x3f]
  %v3364 = vpack.c.bf16 %v2703, %v3360
  %v3365 = vpack.c.bf16 %v2704, %v3361
  %v3366 = vpack.c.bf16 %v3362, %v2713
  %v3367 = vpack.c.bf16 %v3363, %v2714
  %s3368 = scalar_lea.vmem %s4, 336
  %v3369 = vld [vmem:[%s3368] sm:$0xf]
  %v3370 = vld [vmem:[%s3368 + $0x4] sm:$0xf]
  %v3371 = vld [vmem:[%s3368 + $0x8] sm:$0xf]
  %v3372 = vld [vmem:[%s3368 + $0xc] sm:$0xf]
  %v3373 = vld [vmem:[%s3368 + $0x10] sm:$0xf]
  %v3374 = vld [vmem:[%s3368 + $0x14] sm:$0xf]
  %v3375 = vld [vmem:[%s3368 + $0x18] sm:$0xf]
  %v3376 = vld [vmem:[%s3368 + $0x1c] sm:$0xf]
  %v3377 = vld [vmem:[%s3368 + $0x20] sm:$0xf]
  %v3378 = vld [vmem:[%s3368 + $0x24] sm:$0xf]
  %v3379 = vld [vmem:[%s3368 + $0x28] sm:$0xf]
  %v3380 = vld [vmem:[%s3368 + $0x2c] sm:$0xf]
  %v3381 = vld [vmem:[%s3368 + $0x30] sm:$0xf]
  %v3382 = vld [vmem:[%s3368 + $0x34] sm:$0xf]
  %v3383 = vld [vmem:[%s3368 + $0x38] sm:$0xf]
  %v3384 = vld [vmem:[%s3368 + $0x3c] sm:$0xf]
  %v3385 = vld [vmem:[%s3368 + $0x40] sm:$0xf]
  %v3386 = vld [vmem:[%s3368 + $0x44] sm:$0xf]
  %v3387 = vld [vmem:[%s3368 + $0x48] sm:$0xf]
  %v3388 = vld [vmem:[%s3368 + $0x4c] sm:$0xf]
  %v3389 = vld [vmem:[%s3368 + $0x50] sm:$0xf]
  %v3390 = vld [vmem:[%s3368 + $0x54] sm:$0xf]
  %v3391 = vld [vmem:[%s3368 + $0x58] sm:$0xf]
  %v3392 = vld [vmem:[%s3368 + $0x5c] sm:$0xf]
  %v3393 = vld [vmem:[%s3368 + $0x60] sm:$0xf]
  %v3394 = vld [vmem:[%s3368 + $0x64] sm:$0xf]
  %v3395 = vld [vmem:[%s3368 + $0x68] sm:$0xf]
  %v3396 = vld [vmem:[%s3368 + $0x6c] sm:$0xf]
  %v3401 = vrot.slane %v3364, 3
  %v3402 = vrot.slane %v2717, 3
  %v3403 = vsel %vm1751, %v3401, %v3402
  %v3404 = vrot.slane %v3365, 3
  %v3405 = vrot.slane %v2718, 3
  %v3406 = vsel %vm1751, %v3404, %v3405
  %v3407 = vrot.slane %v2719, 3
  %v3408 = vsel %vm1751, %v3402, %v3407
  %v3409 = vrot.slane %v2720, 3
  %v3410 = vsel %vm1751, %v3405, %v3409
  %v3411 = vrot.slane %v3366, 3
  %v3412 = vsel %vm1751, %v3407, %v3411
  %v3413 = vrot.slane %v3367, 3
  %v3414 = vsel %vm1751, %v3409, %v3413
  %v3447 = vunpack.c.l.b16 %v3369
  %v3448 = vunpack.c.l.b16 %v3370
  %v3449 = vunpack.c.l.b16 %v3371
  %v3450 = vunpack.c.l.b16 %v3372
  %v3451 = vunpack.c.l.b16 %v3373
  %v3452 = vunpack.c.l.b16 %v3374
  %v3453 = vunpack.c.l.b16 %v3375
  %v3454 = vunpack.c.l.b16 %v3376
  %v3455 = vunpack.c.l.b16 %v3377
  %v3456 = vunpack.c.l.b16 %v3378
  %v3457 = vunpack.c.l.b16 %v3379
  %v3458 = vunpack.c.l.b16 %v3380
  %v3459 = vunpack.c.l.b16 %v3381
  %v3460 = vunpack.c.l.b16 %v3382
  %v3461 = vunpack.c.l.b16 %v3383
  %v3462 = vunpack.c.l.b16 %v3384
  %v3463 = vunpack.c.l.b16 %v3385
  %v3464 = vunpack.c.l.b16 %v3386
  %v3465 = vunpack.c.l.b16 %v3387
  %v3466 = vunpack.c.l.b16 %v3388
  %v3467 = vunpack.c.l.b16 %v3389
  %v3468 = vunpack.c.l.b16 %v3390
  %v3469 = vunpack.c.l.b16 %v3391
  %v3470 = vunpack.c.l.b16 %v3392
  %v3471 = vunpack.c.l.b16 %v3393
  %v3472 = vunpack.c.l.b16 %v3394
  %v3473 = vunpack.c.l.b16 %v3395
  %v3474 = vunpack.c.l.b16 %v3396
  %v3475 = vpack.c.b16 %v3448, %v3447
  %v3476 = vpack.c.b16 %v3450, %v3449
  %v3477 = vpack.c.b16 %v3452, %v3451
  %v3478 = vpack.c.b16 %v3454, %v3453
  %v3479 = vpack.c.b16 %v3456, %v3455
  %v3480 = vpack.c.b16 %v3458, %v3457
  %v3481 = vpack.c.b16 %v3460, %v3459
  %v3482 = vpack.c.b16 %v3462, %v3461
  %v3483 = vpack.c.b16 %v3464, %v3463
  %v3484 = vpack.c.b16 %v3466, %v3465
  %v3485 = vpack.c.b16 %v3468, %v3467
  %v3486 = vpack.c.b16 %v3470, %v3469
  %v3487 = vpack.c.b16 %v3472, %v3471
  %v3488 = vpack.c.b16 %v3474, %v3473
  %v3504 = vsel %vm2314, %v3406, 0
  %v3507 = vsel %vm2314, %v3410, 0
  %v3510 = vsel %vm2314, %v3414, 0
  %v3513 = vsel %vm2314, %v3413, 0
  %3515 = vmatprep.subr.bf16.mxu0 0
  %3516 = vmatpush1.bf16.msra.mxu0 %v3475
  %3517 = vmatprep.subr.bf16.mxu0 0
  %3518 = vmatpush1.bf16.msra.mxu0 %v3476
  %3519 = vmatprep.subr.bf16.mxu0 0
  %3520 = vmatpush1.bf16.msra.mxu0 %v3477
  %3521 = vmatprep.subr.bf16.mxu0 0
  %3522 = vmatpush1.bf16.msra.mxu0 %v3478
  %3523 = vmatprep.subr.bf16.mxu0 0
  %3524 = vmatpush1.bf16.msra.mxu0 %v3479
  %3525 = vmatprep.subr.bf16.mxu0 0
  %3526 = vmatpush1.bf16.msra.mxu0 %v3480
  %3527 = vmatprep.subr.bf16.mxu0 0
  %3528 = vmatpush1.bf16.msra.mxu0 %v3481
  %3529 = vmatprep.subr.bf16.mxu0 0
  %3530 = vmatpush1.bf16.msra.mxu0 %v3482
  %3531 = vmatprep.subr.bf16.mxu0 0
  %3532 = vmatpush1.bf16.msra.mxu0 %v3483
  %3533 = vmatprep.subr.bf16.mxu0 0
  %3534 = vmatpush1.bf16.msra.mxu0 %v3484
  %3535 = vmatprep.subr.bf16.mxu0 0
  %3536 = vmatpush1.bf16.msra.mxu0 %v3485
  %3537 = vmatprep.subr.bf16.mxu0 0
  %3538 = vmatpush1.bf16.msra.mxu0 %v3486
  %3539 = vmatprep.subr.bf16.mxu0 0
  %3540 = vmatpush1.bf16.msra.mxu0 %v3487
  %3541 = vmatprep.subr.bf16.mxu0 0
  %3542 = vmatpush1.bf16.msra.mxu0 %v3488
  %3543 = vmatprep.subr.bf16.mxu0 0
  %3544 = vmatpush1.bf16.msra.mxu0 0
  %3545 = vmatprep.subr.bf16.mxu0 0
  %3546 = vmatpush1.bf16.msra.mxu0 0
  %3547 = vmatprep.mubr.bf16.mxu0 %v3504
  %3548 = vmatmul.mubr.bf16.gmra.mrb[0].mxu0 %v3403
  %v3549 = vpop.f32.mrb[0].mxu0
  %v3550 = vadd.f32 0.0, %v3549
  %v3551 = vpop.f32.mrb[0].mxu0
  %v3552 = vpop.f32.mrb[0].mxu0
  %v3553 = vadd.f32 0.0, %v3552
  %v3554 = vpop.f32.mrb[0].mxu0
  %3555 = vmatprep.mubr.bf16.mxu0 %v3507
  %3556 = vmatmul.mubr.bf16.gmra.mrb[0].mxu0 %v3408
  %v3557 = vpop.f32.mrb[0].mxu0
  %v3558 = vadd.f32 0.0, %v3557
  %v3559 = vpop.f32.mrb[0].mxu0
  %v3560 = vpop.f32.mrb[0].mxu0
  %v3561 = vadd.f32 0.0, %v3560
  %v3562 = vpop.f32.mrb[0].mxu0
  %3563 = vmatprep.mubr.bf16.mxu0 %v3510
  %3564 = vmatmul.mubr.bf16.gmra.mrb[0].mxu0 %v3412
  %v3565 = vpop.f32.mrb[0].mxu0
  %v3566 = vadd.f32 0.0, %v3565
  %v3567 = vpop.f32.mrb[0].mxu0
  %v3568 = vpop.f32.mrb[0].mxu0
  %v3569 = vadd.f32 0.0, %v3568
  %v3570 = vpop.f32.mrb[0].mxu0
  %3571 = vmatprep.mubr.bf16.mxu0 %v3513
  %3572 = vmatmul.mubr.bf16.gmra.mrb[0].mxu0 %v3411
  %v3573 = vpop.f32.mrb[0].mxu0
  %v3574 = vadd.f32 0.0, %v3573
  %v3575 = vpop.f32.mrb[0].mxu0
  %v3576 = vpop.f32.mrb[0].mxu0
  %v3577 = vpop.f32.mrb[0].mxu0
  %3578 = vdwg.mxu0
  %v3579 = vadd.f32 %v3353, %v3550
  %v3580 = vadd.f32 %v3354, %v3553
  %v3581 = vadd.f32 %v3355, %v3558
  %v3582 = vadd.f32 %v3356, %v3561
  %v3583 = vadd.f32 %v3357, %v3566
  %v3584 = vadd.f32 %v3358, %v3569
  %v3585 = vadd.f32 %v3359, %v3574
  %v3586 = vld [vmem:[#allocation4 + $0x70] sm:$0xff]
  %v3587 = vld [vmem:[#allocation4 + $0x78] sm:$0xff]
  %v3588 = vpack.c.bf16 %v2705, %v2703
  %v3589 = vpack.c.bf16 %v2706, %v2704
  %v3590 = vpack.c.bf16 %v2709, %v2707
  %v3591 = vpack.c.bf16 %v2710, %v2708
  %v3592 = vpack.c.bf16 %v2713, %v2711
  %v3593 = vpack.c.bf16 %v2714, %v2712
  %v3594 = vpack.c.bf16 %v3586, %v3586
  %v3595 = vpack.c.bf16 %v3587, %v3587
  %s3596 = scalar_lea.vmem %s4, 448
  %v3597 = vld [vmem:[%s3596] sm:$0xf]
  %v3598 = vld [vmem:[%s3596 + $0x4] sm:$0xf]
  %v3599 = vld [vmem:[%s3596 + $0x8] sm:$0xf]
  %v3600 = vld [vmem:[%s3596 + $0xc] sm:$0xf]
  %v3601 = vld [vmem:[%s3596 + $0x10] sm:$0xf]
  %v3602 = vld [vmem:[%s3596 + $0x14] sm:$0xf]
  %v3603 = vld [vmem:[%s3596 + $0x18] sm:$0xf]
  %v3604 = vld [vmem:[%s3596 + $0x1c] sm:$0xf]
  %v3605 = vld [vmem:[%s3596 + $0x20] sm:$0xf]
  %v3606 = vld [vmem:[%s3596 + $0x24] sm:$0xf]
  %v3607 = vld [vmem:[%s3596 + $0x28] sm:$0xf]
  %v3608 = vld [vmem:[%s3596 + $0x2c] sm:$0xf]
  %v3609 = vld [vmem:[%s3596 + $0x30] sm:$0xf]
  %v3610 = vld [vmem:[%s3596 + $0x34] sm:$0xf]
  %v3611 = vld [vmem:[%s3596 + $0x38] sm:$0xf]
  %v3612 = vld [vmem:[%s3596 + $0x3c] sm:$0xf]
  %v3613 = vld [vmem:[%s3596 + $0x40] sm:$0xf]
  %v3614 = vld [vmem:[%s3596 + $0x44] sm:$0xf]
  %v3615 = vld [vmem:[%s3596 + $0x48] sm:$0xf]
  %v3616 = vld [vmem:[%s3596 + $0x4c] sm:$0xf]
  %v3617 = vld [vmem:[%s3596 + $0x50] sm:$0xf]
  %v3618 = vld [vmem:[%s3596 + $0x54] sm:$0xf]
  %v3619 = vld [vmem:[%s3596 + $0x58] sm:$0xf]
  %v3620 = vld [vmem:[%s3596 + $0x5c] sm:$0xf]
  %v3621 = vld [vmem:[%s3596 + $0x60] sm:$0xf]
  %v3622 = vld [vmem:[%s3596 + $0x64] sm:$0xf]
  %v3623 = vld [vmem:[%s3596 + $0x68] sm:$0xf]
  %v3624 = vld [vmem:[%s3596 + $0x6c] sm:$0xf]
  %v3653 = vunpack.c.l.b16 %v3597
  %v3654 = vunpack.c.l.b16 %v3598
  %v3655 = vunpack.c.l.b16 %v3599
  %v3656 = vunpack.c.l.b16 %v3600
  %v3657 = vunpack.c.l.b16 %v3601
  %v3658 = vunpack.c.l.b16 %v3602
  %v3659 = vunpack.c.l.b16 %v3603
  %v3660 = vunpack.c.l.b16 %v3604
  %v3661 = vunpack.c.l.b16 %v3605
  %v3662 = vunpack.c.l.b16 %v3606
  %v3663 = vunpack.c.l.b16 %v3607
  %v3664 = vunpack.c.l.b16 %v3608
  %v3665 = vunpack.c.l.b16 %v3609
  %v3666 = vunpack.c.l.b16 %v3610
  %v3667 = vunpack.c.l.b16 %v3611
  %v3668 = vunpack.c.l.b16 %v3612
  %v3669 = vunpack.c.l.b16 %v3613
  %v3670 = vunpack.c.l.b16 %v3614
  %v3671 = vunpack.c.l.b16 %v3615
  %v3672 = vunpack.c.l.b16 %v3616
  %v3673 = vunpack.c.l.b16 %v3617
  %v3674 = vunpack.c.l.b16 %v3618
  %v3675 = vunpack.c.l.b16 %v3619
  %v3676 = vunpack.c.l.b16 %v3620
  %v3677 = vunpack.c.l.b16 %v3621
  %v3678 = vunpack.c.l.b16 %v3622
  %v3679 = vunpack.c.l.b16 %v3623
  %v3680 = vunpack.c.l.b16 %v3624
  %v3681 = vpack.c.b16 %v3654, %v3653
  %v3682 = vpack.c.b16 %v3656, %v3655
  %v3683 = vpack.c.b16 %v3658, %v3657
  %v3684 = vpack.c.b16 %v3660, %v3659
  %v3685 = vpack.c.b16 %v3662, %v3661
  %v3686 = vpack.c.b16 %v3664, %v3663
  %v3687 = vpack.c.b16 %v3666, %v3665
  %v3688 = vpack.c.b16 %v3668, %v3667
  %v3689 = vpack.c.b16 %v3670, %v3669
  %v3690 = vpack.c.b16 %v3672, %v3671
  %v3691 = vpack.c.b16 %v3674, %v3673
  %v3692 = vpack.c.b16 %v3676, %v3675
  %v3693 = vpack.c.b16 %v3678, %v3677
  %v3694 = vpack.c.b16 %v3680, %v3679
  %v3710 = vsel %vm2314, %v3589, 0
  %v3713 = vsel %vm2314, %v3591, 0
  %v3716 = vsel %vm2314, %v3593, 0
  %v3719 = vsel %vm2314, %v3595, 0
  %3721 = vmatprep.subr.bf16.mxu0 0
  %3722 = vmatpush1.bf16.msra.mxu0 %v3681
  %3723 = vmatprep.subr.bf16.mxu0 0
  %3724 = vmatpush1.bf16.msra.mxu0 %v3682
  %3725 = vmatprep.subr.bf16.mxu0 0
  %3726 = vmatpush1.bf16.msra.mxu0 %v3683
  %3727 = vmatprep.subr.bf16.mxu0 0
  %3728 = vmatpush1.bf16.msra.mxu0 %v3684
  %3729 = vmatprep.subr.bf16.mxu0 0
  %3730 = vmatpush1.bf16.msra.mxu0 %v3685
  %3731 = vmatprep.subr.bf16.mxu0 0
  %3732 = vmatpush1.bf16.msra.mxu0 %v3686
  %3733 = vmatprep.subr.bf16.mxu0 0
  %3734 = vmatpush1.bf16.msra.mxu0 %v3687
  %3735 = vmatprep.subr.bf16.mxu0 0
  %3736 = vmatpush1.bf16.msra.mxu0 %v3688
  %3737 = vmatprep.subr.bf16.mxu0 0
  %3738 = vmatpush1.bf16.msra.mxu0 %v3689
  %3739 = vmatprep.subr.bf16.mxu0 0
  %3740 = vmatpush1.bf16.msra.mxu0 %v3690
  %3741 = vmatprep.subr.bf16.mxu0 0
  %3742 = vmatpush1.bf16.msra.mxu0 %v3691
  %3743 = vmatprep.subr.bf16.mxu0 0
  %3744 = vmatpush1.bf16.msra.mxu0 %v3692
  %3745 = vmatprep.subr.bf16.mxu0 0
  %3746 = vmatpush1.bf16.msra.mxu0 %v3693
  %3747 = vmatprep.subr.bf16.mxu0 0
  %3748 = vmatpush1.bf16.msra.mxu0 %v3694
  %3749 = vmatprep.subr.bf16.mxu0 0
  %3750 = vmatpush1.bf16.msra.mxu0 0
  %3751 = vmatprep.subr.bf16.mxu0 0
  %3752 = vmatpush1.bf16.msra.mxu0 0
  %3753 = vmatprep.mubr.bf16.mxu0 %v3710
  %3754 = vmatmul.mubr.bf16.gmra.mrb[0].mxu0 %v3588
  %v3755 = vpop.f32.mrb[0].mxu0
  %v3756 = vadd.f32 0.0, %v3755
  %v3757 = vpop.f32.mrb[0].mxu0
  %v3758 = vpop.f32.mrb[0].mxu0
  %v3759 = vadd.f32 0.0, %v3758
  %v3760 = vpop.f32.mrb[0].mxu0
  %3761 = vmatprep.mubr.bf16.mxu0 %v3713
  %3762 = vmatmul.mubr.bf16.gmra.mrb[0].mxu0 %v3590
  %v3763 = vpop.f32.mrb[0].mxu0
  %v3764 = vadd.f32 0.0, %v3763
  %v3765 = vpop.f32.mrb[0].mxu0
  %v3766 = vpop.f32.mrb[0].mxu0
  %v3767 = vadd.f32 0.0, %v3766
  %v3768 = vpop.f32.mrb[0].mxu0
  %3769 = vmatprep.mubr.bf16.mxu0 %v3716
  %3770 = vmatmul.mubr.bf16.gmra.mrb[0].mxu0 %v3592
  %v3771 = vpop.f32.mrb[0].mxu0
  %v3772 = vadd.f32 0.0, %v3771
  %v3773 = vpop.f32.mrb[0].mxu0
  %v3774 = vpop.f32.mrb[0].mxu0
  %v3775 = vadd.f32 0.0, %v3774
  %v3776 = vpop.f32.mrb[0].mxu0
  %3777 = vmatprep.mubr.bf16.mxu0 %v3719
  %3778 = vmatmul.mubr.bf16.gmra.mrb[0].mxu0 %v3594
  %v3779 = vpop.f32.mrb[0].mxu0
  %v3780 = vadd.f32 0.0, %v3779
  %v3781 = vpop.f32.mrb[0].mxu0
  %v3782 = vpop.f32.mrb[0].mxu0
  %v3783 = vpop.f32.mrb[0].mxu0
  %3784 = vdwg.mxu0
  %v3785 = vadd.f32 %v3579, %v3756
  %v3786 = vadd.f32 %v3580, %v3759
  %v3787 = vadd.f32 %v3581, %v3764
  %v3788 = vadd.f32 %v3582, %v3767
  %v3789 = vadd.f32 %v3583, %v3772
  %v3790 = vadd.f32 %v3584, %v3775
  %v3791 = vadd.f32 %v3585, %v3780
  %v3792 = vxor.u32 %v3785, 2147483648
  %v3793 = vxor.u32 %v3786, 2147483648
  %v3794 = vxor.u32 %v3787, 2147483648
  %v3795 = vxor.u32 %v3788, 2147483648
  %v3796 = vxor.u32 %v3789, 2147483648
  %v3797 = vxor.u32 %v3790, 2147483648
  %v3798 = vxor.u32 %v3791, 2147483648
  %v3799 = vmul.f32 %v3792, 1.442695
  %v3800 = vpow.pop %v3799
  %v3801 = vmul.f32 %v3793, 1.442695
  %v3802 = vpow.pop %v3801
  %v3803 = vmul.f32 %v3794, 1.442695
  %v3804 = vpow.pop %v3803
  %v3805 = vmul.f32 %v3795, 1.442695
  %v3806 = vpow.pop %v3805
  %v3807 = vmul.f32 %v3796, 1.442695
  %v3808 = vpow.pop %v3807
  %v3809 = vmul.f32 %v3797, 1.442695
  %v3810 = vpow.pop %v3809
  %v3811 = vmul.f32 %v3798, 1.442695
  %v3812 = vpow.pop %v3811
  %v3813 = vadd.f32 %v3800, 1.0
  %v3814 = vadd.f32 %v3802, 1.0
  %v3815 = vadd.f32 %v3804, 1.0
  %v3816 = vadd.f32 %v3806, 1.0
  %v3817 = vadd.f32 %v3808, 1.0
  %v3818 = vadd.f32 %v3810, 1.0
  %v3819 = vadd.f32 %v3812, 1.0
  %v3820 = vrcp.pop %v3813
  %v3821 = vmul.f32 1.0, %v3820
  %v3822 = vrcp.pop %v3814
  %v3823 = vmul.f32 1.0, %v3822
  %v3824 = vrcp.pop %v3815
  %v3825 = vmul.f32 1.0, %v3824
  %v3826 = vrcp.pop %v3816
  %v3827 = vmul.f32 1.0, %v3826
  %v3828 = vrcp.pop %v3817
  %v3829 = vmul.f32 1.0, %v3828
  %v3830 = vrcp.pop %v3818
  %v3831 = vmul.f32 1.0, %v3830
  %v3832 = vrcp.pop %v3819
  %v3833 = vmul.f32 1.0, %v3832
  %vm3834 = vcmask 228352
  %3835 = vst.msk [vmem:[%s7] sm:$0xff] %vm3834, %v3821
  %3836 = vst.msk [vmem:[%s7 + $0x8] sm:$0xff] %vm3834, %v3823
  %3837 = vst.msk [vmem:[%s7 + $0x10] sm:$0xff] %vm3834, %v3825
  %3838 = vst.msk [vmem:[%s7 + $0x18] sm:$0xff] %vm3834, %v3827
  %3839 = vst.msk [vmem:[%s7 + $0x20] sm:$0xff] %vm3834, %v3829
  %3840 = vst.msk [vmem:[%s7 + $0x28] sm:$0xff] %vm3834, %v3831
  %3841 = vst.msk [vmem:[%s7 + $0x30] sm:$0xff] %vm3834, %v3833
  // Predicated region
  $region30: #{lenet_decoder_forward.1} parent=0 // pred_check
    _
  $region31: #{lenet_decoder_forward.1} parent=0 // pred_check_branch
    %3843 = sbr.rel (0) target = $region33
  $region32: #{lenet_decoder_forward.1} parent=0 // pred_region
    _
  $region33: #{lenet_decoder_forward.1} parent=0 // pred_fallthru
    _
  // Predicated region
  $region34: #{lenet_decoder_forward.1} parent=0 // pred_check
    _
  $region35: #{lenet_decoder_forward.1} parent=0 // pred_check_branch
    %3845 = sbr.rel (0) target = $region37
  $region36: #{lenet_decoder_forward.1} parent=0 // pred_region
    _
  $region37: #{lenet_decoder_forward.1} parent=0 // pred_fallthru
    _

</llo_original>
